<compile_context>
chip_gen: v6e
topology: v6e:2x2x1
jax: 0.10.0
libtpu: 0.0.40
codegen_flags: <defaults>
</compile_context>

<pallas_src>
import functools

import jax
import jax.numpy as jnp
from jax.experimental import pallas as pl
from jax.experimental.pallas import tpu as pltpu


def _dwconv_bn_kernel(x_ref, w_ref, gamma_ref, beta_ref, o_ref, *, eps, valid_w):
    # x_ref:     (N, H+2, Wo+2, Cb)  zero-padded input block (NHWC, lanes = C)
    # w_ref:     (3, 3, Cb)          depthwise 3x3 filters
    # gamma_ref: (1, Cb)
    # beta_ref:  (1, Cb)
    # o_ref:     (N, H, Wo, Cb)      Wo = round_up(W, 8); columns >= valid_w are junk
    N, H, Wo, Cb = o_ref.shape

    x = x_ref[...].astype(jnp.float32)      # single hoisted load of the input block
    w = w_ref[...].astype(jnp.float32)      # single hoisted load of all 9 taps

    # j-shifted width-Wo views of the input: only j=1,2 cross a sublane boundary,
    # so exactly two relayout copies total (instead of six per-tap ones).
    xj = [x[:, :, j:j + Wo, :] for j in range(3)]

    # Depthwise 3x3 convolution, stride 1 ("same" via pre-padded input).
    # H shifts are slices along a major (untiled) dim -> free.
    acc = jnp.zeros((N, H, Wo, Cb), jnp.float32)
    for i in range(3):
        for j in range(3):
            acc = acc + xj[j][:, i:i + H, :, :] * w[i, j, :]

    # Training-mode BatchNorm, single pass: per-channel batch mean / biased var
    # over the valid H x valid_w region, folded into one scale/shift.
    col = jax.lax.broadcasted_iota(jnp.int32, (Wo, 1), 0)   # (Wo, 1) sublane iota
    masked = jnp.where(col < valid_w, acc, 0.0)
    count = float(N * H * valid_w)
    mean = jnp.sum(masked, axis=(0, 1, 2), keepdims=True) / count
    msq = jnp.sum(masked * masked, axis=(0, 1, 2), keepdims=True) / count
    var = jnp.maximum(msq - mean * mean, 0.0)

    gamma = gamma_ref[...].astype(jnp.float32).reshape(1, 1, 1, Cb)
    beta = beta_ref[...].astype(jnp.float32).reshape(1, 1, 1, Cb)
    scale = gamma * jax.lax.rsqrt(var + eps)
    shift = beta - mean * scale

    # Sublane-dense store over the full Wo width (junk columns are finite and are
    # sliced off by the wrapper).
    o_ref[...] = (acc * scale + shift).astype(o_ref.dtype)


def dwconv_bn_nhwc(x_nhwc, w_hwc, gamma, beta, *, eps=1e-3, channel_blocks=1):
    """Fused depthwise conv3x3 (stride 1, pad 1) + training BatchNorm, NHWC.

    Use this entry point when the surrounding model is NHWC: there are no layout
    transposes around the kernel, only cheap zero-pads.
      x_nhwc: (N, H, W, C) f32; w_hwc: (3, 3, C); gamma, beta: (C,)
    Returns (N, H, W, C).
    `channel_blocks` > 1 (e.g. 3) splits channels over a parallel grid axis — only
    useful on multi-TensorCore chips (v7x); keep 1 on v5e/v6e.
    """
    N, H, W, C = x_nhwc.shape
    Cp = pl.cdiv(C, 128) * 128            # lane-multiple channel padding
    assert Cp % channel_blocks == 0
    Cb = Cp // channel_blocks
    assert Cb % 128 == 0
    Wo = pl.cdiv(W, 8) * 8                # sublane-dense output width

    # Zero-pad: H by (1,1) for "same" conv; W by (1, Wo-W+1) so the three width-Wo
    # shifted views exist; channels up to a lane multiple.
    x = jnp.pad(x_nhwc, ((0, 0), (1, 1), (1, Wo - W + 1), (0, Cp - C)))
    w = jnp.pad(w_hwc, ((0, 0), (0, 0), (0, Cp - C)))
    g = jnp.pad(gamma, (0, Cp - C), constant_values=1.0).reshape(1, Cp)
    b = jnp.pad(beta, (0, Cp - C)).reshape(1, Cp)

    out = pl.pallas_call(
        functools.partial(_dwconv_bn_kernel, eps=eps, valid_w=W),
        out_shape=jax.ShapeDtypeStruct((N, H, Wo, Cp), x_nhwc.dtype),
        grid=(channel_blocks,),
        in_specs=[
            pl.BlockSpec((N, H + 2, Wo + 2, Cb), lambda c: (0, 0, 0, c)),
            pl.BlockSpec((3, 3, Cb), lambda c: (0, 0, c)),
            pl.BlockSpec((1, Cb), lambda c: (0, c)),
            pl.BlockSpec((1, Cb), lambda c: (0, c)),
        ],
        out_specs=pl.BlockSpec((N, H, Wo, Cb), lambda c: (0, 0, 0, c)),
        compiler_params=pltpu.CompilerParams(
            dimension_semantics=("parallel",)),
    )(x, w, g, b)

    # Drop W/channel padding (fuses into whatever consumes the output).
    return out[:, :, :W, :C]


def dwconv_bn(x_nchw, w_oihw, gamma, beta, eps=1e-3, channel_blocks=1):
    """NCHW wrapper matching the PyTorch module layout.

    x_nchw: (N, C, H, W) f32; w_oihw: (C, 1, 3, 3) depthwise weights.
    The single NCHW->NHWC transpose (in) and slice+transpose (out) are the only
    relayouts; under jit each fuses with the adjacent pad/slice.
    """
    x = jnp.transpose(x_nchw, (0, 2, 3, 1))
    w = jnp.transpose(w_oihw[:, 0, :, :], (1, 2, 0))
    out = dwconv_bn_nhwc(x, w, gamma, beta, eps=eps, channel_blocks=channel_blocks)
    return jnp.transpose(out, (0, 3, 1, 2))


def _reference(x_nchw, w_oihw, gamma, beta, eps=1e-3):
    C = x_nchw.shape[1]
    conv = jax.lax.conv_general_dilated(
        x_nchw, w_oihw, window_strides=(1, 1), padding=((1, 1), (1, 1)),
        feature_group_count=C, dimension_numbers=("NCHW", "OIHW", "NCHW"))
    mean = conv.mean(axis=(0, 2, 3), keepdims=True)
    var = conv.var(axis=(0, 2, 3), keepdims=True)
    return ((conv - mean) / jnp.sqrt(var + eps)
            * gamma.reshape(1, -1, 1, 1) + beta.reshape(1, -1, 1, 1))


if __name__ == "__main__":
    # Shapes implied by the module: x201 is (1, 1104, 7, 7).
    N, C, H, W = 1, 1104, 7, 7
    eps = 1e-3

    key = jax.random.PRNGKey(0)
    kx, kw, kg, kb = jax.random.split(key, 4)
    x = jax.random.normal(kx, (N, C, H, W), dtype=jnp.float32)
    # Depthwise conv weight matches PyTorch: (C_out=1104, C_in/groups=1, 3, 3)
    w = jax.random.normal(kw, (C, 1, 3, 3), dtype=jnp.float32) * 0.1
    gamma = 1.0 + 0.1 * jax.random.normal(kg, (C,), dtype=jnp.float32)
    beta = 0.1 * jax.random.normal(kb, (C,), dtype=jnp.float32)

    fn = jax.jit(functools.partial(dwconv_bn, eps=eps))
    out = jax.block_until_ready(fn(x, w, gamma, beta))

    ref = jax.block_until_ready(_reference(x, w, gamma, beta, eps=eps))
    assert out.shape == (N, C, H, W)
    err = float(jnp.max(jnp.abs(out - ref)))
    assert jnp.allclose(out, ref, atol=1e-4, rtol=1e-4), err

    print("KERNEL_OK")
</pallas_src>

<mosaic_0001>
module attributes {stable_mosaic.version = 11 : i64} {
  func.func @_dwconv_bn_kernel(%arg0: i32, %arg1: memref<1x9x10x1152xf32, #tpu.memory_space<vmem>>, %arg2: memref<3x3x1152xf32, #tpu.memory_space<vmem>>, %arg3: memref<1x1152xf32, #tpu.memory_space<vmem>>, %arg4: memref<1x1152xf32, #tpu.memory_space<vmem>>, %arg5: memref<1x7x8x1152xf32, #tpu.memory_space<vmem>>) attributes {dimension_semantics = [#tpu.dimension_semantics<parallel>], iteration_bounds = array<i64: 1>, scalar_prefetch = 0 : i64, scratch_operands = 0 : i64, tpu.core_type = #tpu.core_type<tc>, window_params = [{transform_indices = @transform_0, window_bounds = array<i64: 1, 9, 10, 1152>}, {transform_indices = @transform_1, window_bounds = array<i64: 3, 3, 1152>}, {transform_indices = @transform_2, window_bounds = array<i64: 1, 1152>}, {transform_indices = @transform_3, window_bounds = array<i64: 1, 1152>}, {transform_indices = @transform_4, window_bounds = array<i64: 1, 7, 8, 1152>}]} {
    %c0 = arith.constant 0 : index
    %c0_0 = arith.constant 0 : index
    %c0_1 = arith.constant 0 : index
    %c0_2 = arith.constant 0 : index
    %0 = vector.load %arg1[%c0, %c0_0, %c0_1, %c0_2] : memref<1x9x10x1152xf32, #tpu.memory_space<vmem>>, vector<1x9x10x1152xf32>
    %c0_3 = arith.constant 0 : index
    %c0_4 = arith.constant 0 : index
    %c0_5 = arith.constant 0 : index
    %1 = vector.load %arg2[%c0_3, %c0_4, %c0_5] : memref<3x3x1152xf32, #tpu.memory_space<vmem>>, vector<3x3x1152xf32>
    %2 = vector.extract_strided_slice %0 {offsets = [0, 0, 0, 0], sizes = [1, 9, 8, 1152], strides = [1, 1, 1, 1]} : vector<1x9x10x1152xf32> to vector<1x9x8x1152xf32>
    %3 = vector.extract_strided_slice %0 {offsets = [0, 0, 1, 0], sizes = [1, 9, 8, 1152], strides = [1, 1, 1, 1]} : vector<1x9x10x1152xf32> to vector<1x9x8x1152xf32>
    %4 = vector.extract_strided_slice %0 {offsets = [0, 0, 2, 0], sizes = [1, 9, 8, 1152], strides = [1, 1, 1, 1]} : vector<1x9x10x1152xf32> to vector<1x9x8x1152xf32>
    %cst = arith.constant 0.000000e+00 : f32
    %5 = vector.broadcast %cst : f32 to vector<1x7x8x1152xf32>
    %6 = vector.extract_strided_slice %2 {offsets = [0, 0, 0, 0], sizes = [1, 7, 8, 1152], strides = [1, 1, 1, 1]} : vector<1x9x8x1152xf32> to vector<1x7x8x1152xf32>
    %7 = vector.extract_strided_slice %1 {offsets = [0, 0, 0], sizes = [1, 1, 1152], strides = [1, 1, 1]} : vector<3x3x1152xf32> to vector<1x1x1152xf32>
    %8 = vector.shape_cast %7 : vector<1x1x1152xf32> to vector<1152xf32>
    %9 = vector.shape_cast %8 : vector<1152xf32> to vector<1x1x1x1152xf32>
    %10 = vector.broadcast %9 : vector<1x1x1x1152xf32> to vector<1x7x8x1152xf32>
    %11 = arith.mulf %6, %10 : vector<1x7x8x1152xf32>
    %12 = arith.addf %5, %11 : vector<1x7x8x1152xf32>
    %13 = vector.extract_strided_slice %3 {offsets = [0, 0, 0, 0], sizes = [1, 7, 8, 1152], strides = [1, 1, 1, 1]} : vector<1x9x8x1152xf32> to vector<1x7x8x1152xf32>
    %14 = vector.extract_strided_slice %1 {offsets = [0, 1, 0], sizes = [1, 1, 1152], strides = [1, 1, 1]} : vector<3x3x1152xf32> to vector<1x1x1152xf32>
    %15 = vector.shape_cast %14 : vector<1x1x1152xf32> to vector<1152xf32>
    %16 = vector.shape_cast %15 : vector<1152xf32> to vector<1x1x1x1152xf32>
    %17 = vector.broadcast %16 : vector<1x1x1x1152xf32> to vector<1x7x8x1152xf32>
    %18 = arith.mulf %13, %17 : vector<1x7x8x1152xf32>
    %19 = arith.addf %12, %18 : vector<1x7x8x1152xf32>
    %20 = vector.extract_strided_slice %4 {offsets = [0, 0, 0, 0], sizes = [1, 7, 8, 1152], strides = [1, 1, 1, 1]} : vector<1x9x8x1152xf32> to vector<1x7x8x1152xf32>
    %21 = vector.extract_strided_slice %1 {offsets = [0, 2, 0], sizes = [1, 1, 1152], strides = [1, 1, 1]} : vector<3x3x1152xf32> to vector<1x1x1152xf32>
    %22 = vector.shape_cast %21 : vector<1x1x1152xf32> to vector<1152xf32>
    %23 = vector.shape_cast %22 : vector<1152xf32> to vector<1x1x1x1152xf32>
    %24 = vector.broadcast %23 : vector<1x1x1x1152xf32> to vector<1x7x8x1152xf32>
    %25 = arith.mulf %20, %24 : vector<1x7x8x1152xf32>
    %26 = arith.addf %19, %25 : vector<1x7x8x1152xf32>
    %27 = vector.extract_strided_slice %2 {offsets = [0, 1, 0, 0], sizes = [1, 7, 8, 1152], strides = [1, 1, 1, 1]} : vector<1x9x8x1152xf32> to vector<1x7x8x1152xf32>
    %28 = vector.extract_strided_slice %1 {offsets = [1, 0, 0], sizes = [1, 1, 1152], strides = [1, 1, 1]} : vector<3x3x1152xf32> to vector<1x1x1152xf32>
    %29 = vector.shape_cast %28 : vector<1x1x1152xf32> to vector<1152xf32>
    %30 = vector.shape_cast %29 : vector<1152xf32> to vector<1x1x1x1152xf32>
    %31 = vector.broadcast %30 : vector<1x1x1x1152xf32> to vector<1x7x8x1152xf32>
    %32 = arith.mulf %27, %31 : vector<1x7x8x1152xf32>
    %33 = arith.addf %26, %32 : vector<1x7x8x1152xf32>
    %34 = vector.extract_strided_slice %3 {offsets = [0, 1, 0, 0], sizes = [1, 7, 8, 1152], strides = [1, 1, 1, 1]} : vector<1x9x8x1152xf32> to vector<1x7x8x1152xf32>
    %35 = vector.extract_strided_slice %1 {offsets = [1, 1, 0], sizes = [1, 1, 1152], strides = [1, 1, 1]} : vector<3x3x1152xf32> to vector<1x1x1152xf32>
    %36 = vector.shape_cast %35 : vector<1x1x1152xf32> to vector<1152xf32>
    %37 = vector.shape_cast %36 : vector<1152xf32> to vector<1x1x1x1152xf32>
    %38 = vector.broadcast %37 : vector<1x1x1x1152xf32> to vector<1x7x8x1152xf32>
    %39 = arith.mulf %34, %38 : vector<1x7x8x1152xf32>
    %40 = arith.addf %33, %39 : vector<1x7x8x1152xf32>
    %41 = vector.extract_strided_slice %4 {offsets = [0, 1, 0, 0], sizes = [1, 7, 8, 1152], strides = [1, 1, 1, 1]} : vector<1x9x8x1152xf32> to vector<1x7x8x1152xf32>
    %42 = vector.extract_strided_slice %1 {offsets = [1, 2, 0], sizes = [1, 1, 1152], strides = [1, 1, 1]} : vector<3x3x1152xf32> to vector<1x1x1152xf32>
    %43 = vector.shape_cast %42 : vector<1x1x1152xf32> to vector<1152xf32>
    %44 = vector.shape_cast %43 : vector<1152xf32> to vector<1x1x1x1152xf32>
    %45 = vector.broadcast %44 : vector<1x1x1x1152xf32> to vector<1x7x8x1152xf32>
    %46 = arith.mulf %41, %45 : vector<1x7x8x1152xf32>
    %47 = arith.addf %40, %46 : vector<1x7x8x1152xf32>
    %48 = vector.extract_strided_slice %2 {offsets = [0, 2, 0, 0], sizes = [1, 7, 8, 1152], strides = [1, 1, 1, 1]} : vector<1x9x8x1152xf32> to vector<1x7x8x1152xf32>
    %49 = vector.extract_strided_slice %1 {offsets = [2, 0, 0], sizes = [1, 1, 1152], strides = [1, 1, 1]} : vector<3x3x1152xf32> to vector<1x1x1152xf32>
    %50 = vector.shape_cast %49 : vector<1x1x1152xf32> to vector<1152xf32>
    %51 = vector.shape_cast %50 : vector<1152xf32> to vector<1x1x1x1152xf32>
    %52 = vector.broadcast %51 : vector<1x1x1x1152xf32> to vector<1x7x8x1152xf32>
    %53 = arith.mulf %48, %52 : vector<1x7x8x1152xf32>
    %54 = arith.addf %47, %53 : vector<1x7x8x1152xf32>
    %55 = vector.extract_strided_slice %3 {offsets = [0, 2, 0, 0], sizes = [1, 7, 8, 1152], strides = [1, 1, 1, 1]} : vector<1x9x8x1152xf32> to vector<1x7x8x1152xf32>
    %56 = vector.extract_strided_slice %1 {offsets = [2, 1, 0], sizes = [1, 1, 1152], strides = [1, 1, 1]} : vector<3x3x1152xf32> to vector<1x1x1152xf32>
    %57 = vector.shape_cast %56 : vector<1x1x1152xf32> to vector<1152xf32>
    %58 = vector.shape_cast %57 : vector<1152xf32> to vector<1x1x1x1152xf32>
    %59 = vector.broadcast %58 : vector<1x1x1x1152xf32> to vector<1x7x8x1152xf32>
    %60 = arith.mulf %55, %59 : vector<1x7x8x1152xf32>
    %61 = arith.addf %54, %60 : vector<1x7x8x1152xf32>
    %62 = vector.extract_strided_slice %4 {offsets = [0, 2, 0, 0], sizes = [1, 7, 8, 1152], strides = [1, 1, 1, 1]} : vector<1x9x8x1152xf32> to vector<1x7x8x1152xf32>
    %63 = vector.extract_strided_slice %1 {offsets = [2, 2, 0], sizes = [1, 1, 1152], strides = [1, 1, 1]} : vector<3x3x1152xf32> to vector<1x1x1152xf32>
    %64 = vector.shape_cast %63 : vector<1x1x1152xf32> to vector<1152xf32>
    %65 = vector.shape_cast %64 : vector<1152xf32> to vector<1x1x1x1152xf32>
    %66 = vector.broadcast %65 : vector<1x1x1x1152xf32> to vector<1x7x8x1152xf32>
    %67 = arith.mulf %62, %66 : vector<1x7x8x1152xf32>
    %68 = arith.addf %61, %67 : vector<1x7x8x1152xf32>
    %69 = tpu.iota {dimensions = array<i32: 0>} : vector<8x1xi32>
    %c7_i32 = arith.constant 7 : i32
    %70 = vector.broadcast %c7_i32 : i32 to vector<8x1xi32>
    %71 = arith.cmpi slt, %69, %70 : vector<8x1xi32>
    %cst_6 = arith.constant 0.000000e+00 : f32
    %72 = vector.shape_cast %71 : vector<8x1xi1> to vector<1x1x8x1xi1>
    %73 = vector.broadcast %72 : vector<1x1x8x1xi1> to vector<1x7x8x1152xi1>
    %74 = vector.broadcast %cst_6 : f32 to vector<1x7x8x1152xf32>
    %75 = arith.select %73, %68, %74 : vector<1x7x8x1152xi1>, vector<1x7x8x1152xf32>
    %cst_7 = arith.constant dense<0.000000e+00> : vector<1152xf32>
    %76 = vector.multi_reduction <add>, %75, %cst_7 [0, 1, 2] : vector<1x7x8x1152xf32> to vector<1152xf32>
    %77 = vector.shape_cast %76 : vector<1152xf32> to vector<1x1x1x1152xf32>
    %cst_8 = arith.constant 4.900000e+01 : f32
    %78 = vector.broadcast %cst_8 : f32 to vector<1x1x1x1152xf32>
    %79 = arith.divf %77, %78 : vector<1x1x1x1152xf32>
    %80 = arith.mulf %75, %75 : vector<1x7x8x1152xf32>
    %cst_9 = arith.constant dense<0.000000e+00> : vector<1152xf32>
    %81 = vector.multi_reduction <add>, %80, %cst_9 [0, 1, 2] : vector<1x7x8x1152xf32> to vector<1152xf32>
    %82 = vector.shape_cast %81 : vector<1152xf32> to vector<1x1x1x1152xf32>
    %cst_10 = arith.constant 4.900000e+01 : f32
    %83 = vector.broadcast %cst_10 : f32 to vector<1x1x1x1152xf32>
    %84 = arith.divf %82, %83 : vector<1x1x1x1152xf32>
    %85 = arith.mulf %79, %79 : vector<1x1x1x1152xf32>
    %86 = arith.subf %84, %85 : vector<1x1x1x1152xf32>
    %cst_11 = arith.constant 0.000000e+00 : f32
    %87 = vector.broadcast %cst_11 : f32 to vector<1x1x1x1152xf32>
    %88 = arith.maximumf %86, %87 : vector<1x1x1x1152xf32>
    %c0_12 = arith.constant 0 : index
    %c0_13 = arith.constant 0 : index
    %89 = vector.load %arg3[%c0_12, %c0_13] : memref<1x1152xf32, #tpu.memory_space<vmem>>, vector<1x1152xf32>
    %90 = vector.shape_cast %89 : vector<1x1152xf32> to vector<1x1x1x1152xf32>
    %c0_14 = arith.constant 0 : index
    %c0_15 = arith.constant 0 : index
    %91 = vector.load %arg4[%c0_14, %c0_15] : memref<1x1152xf32, #tpu.memory_space<vmem>>, vector<1x1152xf32>
    %92 = vector.shape_cast %91 : vector<1x1152xf32> to vector<1x1x1x1152xf32>
    %cst_16 = arith.constant 1.000000e-03 : f32
    %93 = vector.broadcast %cst_16 : f32 to vector<1x1x1x1152xf32>
    %94 = arith.addf %88, %93 : vector<1x1x1x1152xf32>
    %95 = math.rsqrt %94 : vector<1x1x1x1152xf32>
    %96 = arith.mulf %90, %95 : vector<1x1x1x1152xf32>
    %97 = arith.mulf %79, %96 : vector<1x1x1x1152xf32>
    %98 = arith.subf %92, %97 : vector<1x1x1x1152xf32>
    %99 = vector.broadcast %96 : vector<1x1x1x1152xf32> to vector<1x7x8x1152xf32>
    %100 = arith.mulf %68, %99 : vector<1x7x8x1152xf32>
    %101 = vector.broadcast %98 : vector<1x1x1x1152xf32> to vector<1x7x8x1152xf32>
    %102 = arith.addf %100, %101 : vector<1x7x8x1152xf32>
    %c0_17 = arith.constant 0 : index
    %c0_18 = arith.constant 0 : index
    %c0_19 = arith.constant 0 : index
    %c0_20 = arith.constant 0 : index
    %103 = vector.load %arg5[%c0_17, %c0_18, %c0_19, %c0_20] : memref<1x7x8x1152xf32, #tpu.memory_space<vmem>>, vector<1x7x8x1152xf32>
    tpu.vector_store %arg5[%c0_17, %c0_18, %c0_19, %c0_20], %102 {strides = array<i32>} : memref<1x7x8x1152xf32, #tpu.memory_space<vmem>>, vector<1x7x8x1152xf32>,
    return
  }
  func.func @transform_0(%arg0: i32) -> (i32, i32, i32, i32) {
    %c0_i32 = arith.constant 0 : i32
    %c0_i32_0 = arith.constant 0 : i32
    %c0_i32_1 = arith.constant 0 : i32
    %c0_i32_2 = arith.constant 0 : i32
    return %c0_i32, %c0_i32_0, %c0_i32_1, %arg0 : i32, i32, i32, i32
  }
  func.func @transform_1(%arg0: i32) -> (i32, i32, i32) {
    %c0_i32 = arith.constant 0 : i32
    %c0_i32_0 = arith.constant 0 : i32
    %c0_i32_1 = arith.constant 0 : i32
    return %c0_i32, %c0_i32_0, %arg0 : i32, i32, i32
  }
  func.func @transform_2(%arg0: i32) -> (i32, i32) {
    %c0_i32 = arith.constant 0 : i32
    %c0_i32_0 = arith.constant 0 : i32
    return %c0_i32, %arg0 : i32, i32
  }
  func.func @transform_3(%arg0: i32) -> (i32, i32) {
    %c0_i32 = arith.constant 0 : i32
    %c0_i32_0 = arith.constant 0 : i32
    return %c0_i32, %arg0 : i32, i32
  }
  func.func @transform_4(%arg0: i32) -> (i32, i32, i32, i32) {
    %c0_i32 = arith.constant 0 : i32
    %c0_i32_0 = arith.constant 0 : i32
    %c0_i32_1 = arith.constant 0 : i32
    %c0_i32_2 = arith.constant 0 : i32
    return %c0_i32, %c0_i32_0, %c0_i32_1, %arg0 : i32, i32, i32, i32
  }
}

</mosaic_0001>

<llo_original>
// kernel: dwconv_bn.1
$region0: #{dwconv_bn.1}
  #allocation0 [shape = 'u32[]', space=smem, size = 0x4, offset = 0x4, fixed_abs, tag = 'smem constant byte address 0x4 - core index']
  #allocation1 [shape = 'u32[144,128]{1,0:T(1,128)}', space=vmem, size = 0x12000, scoped, tag = 'internal scratch']
  %s0 = inlined_call_operand.vmem [shape: f32[1,9,10,1152], index: 0, kind: input, shape index: {}]
  %s1 = inlined_call_operand.vmem [shape: f32[3,3,1152], index: 1, kind: input, shape index: {}]
  %s2 = inlined_call_operand.vmem [shape: f32[1,1152], index: 2, kind: input, shape index: {}]
  %s3 = inlined_call_operand.vmem [shape: f32[1,1152], index: 3, kind: input, shape index: {}]
  %s4 = inlined_call_operand.vmem [shape: f32[1,7,8,1152], index: 4, kind: output, shape index: {}]
  %s5 = sld [smem:[#allocation0]]
  $region26: #{dwconv_bn.1} parent=0
    _
  %s7 = ssub.s32 1, %s5
  %s8 = scalar_select 0, %s7, %s5
  // Predicated region
  $region2: #{dwconv_bn.1} parent=0 // pred_check
    _
  $region3: #{dwconv_bn.1} parent=0 // pred_check_branch
    %10 = sbr.rel (0) target = $region5
  $region4: #{dwconv_bn.1} parent=0 // pred_region
    _
  $region5: #{dwconv_bn.1} parent=0 // pred_fallthru
    _
  // Predicated region
  $region6: #{dwconv_bn.1} parent=0 // pred_check
    _
  $region7: #{dwconv_bn.1} parent=0 // pred_check_branch
    %12 = sbr.rel (0) target = $region9
  $region8: #{dwconv_bn.1} parent=0 // pred_region
    _
  $region9: #{dwconv_bn.1} parent=0 // pred_fallthru
    _
  // Predicated region
  $region10: #{dwconv_bn.1} parent=0 // pred_check
    _
  $region11: #{dwconv_bn.1} parent=0 // pred_check_branch
    %14 = sbr.rel (0) target = $region13
  $region12: #{dwconv_bn.1} parent=0 // pred_region
    _
  $region13: #{dwconv_bn.1} parent=0 // pred_fallthru
    _
  // Predicated region
  $region14: #{dwconv_bn.1} parent=0 // pred_check
    _
  $region15: #{dwconv_bn.1} parent=0 // pred_check_branch
    %16 = sbr.rel (0) target = $region17
  $region16: #{dwconv_bn.1} parent=0 // pred_region
    _
  $region17: #{dwconv_bn.1} parent=0 // pred_fallthru
    _
  %v17 = vld [vmem:[%s0] sm:$0xff]
  %v18 = vld [vmem:[%s0 + $0x8] sm:$0xff]
  %v19 = vld [vmem:[%s0 + $0x10] sm:$0xff]
  %v20 = vld [vmem:[%s0 + $0x18] sm:$0xff]
  %v21 = vld [vmem:[%s0 + $0x20] sm:$0xff]
  %v22 = vld [vmem:[%s0 + $0x28] sm:$0xff]
  %v23 = vld [vmem:[%s0 + $0x30] sm:$0xff]
  %v24 = vld [vmem:[%s0 + $0x38] sm:$0xff]
  %v25 = vld [vmem:[%s0 + $0x40] sm:$0xff]
  %v26 = vld [vmem:[%s0 + $0x48] sm:$0x3]
  %v27 = vld [vmem:[%s0 + $0x50] sm:$0x3]
  %v28 = vld [vmem:[%s0 + $0x58] sm:$0x3]
  %v29 = vld [vmem:[%s0 + $0x60] sm:$0x3]
  %v30 = vld [vmem:[%s0 + $0x68] sm:$0x3]
  %v31 = vld [vmem:[%s0 + $0x70] sm:$0x3]
  %v32 = vld [vmem:[%s0 + $0x78] sm:$0x3]
  %v33 = vld [vmem:[%s0 + $0x80] sm:$0x3]
  %v34 = vld [vmem:[%s0 + $0x88] sm:$0x3]
  %v35 = vld [vmem:[%s0 + $0x90] sm:$0xff]
  %v36 = vld [vmem:[%s0 + $0x98] sm:$0xff]
  %v37 = vld [vmem:[%s0 + $0xa0] sm:$0xff]
  %v38 = vld [vmem:[%s0 + $0xa8] sm:$0xff]
  %v39 = vld [vmem:[%s0 + $0xb0] sm:$0xff]
  %v40 = vld [vmem:[%s0 + $0xb8] sm:$0xff]
  %v41 = vld [vmem:[%s0 + $0xc0] sm:$0xff]
  %v42 = vld [vmem:[%s0 + $0xc8] sm:$0xff]
  %v43 = vld [vmem:[%s0 + $0xd0] sm:$0xff]
  %v44 = vld [vmem:[%s0 + $0xd8] sm:$0x3]
  %v45 = vld [vmem:[%s0 + $0xe0] sm:$0x3]
  %v46 = vld [vmem:[%s0 + $0xe8] sm:$0x3]
  %v47 = vld [vmem:[%s0 + $0xf0] sm:$0x3]
  %v48 = vld [vmem:[%s0 + $0xf8] sm:$0x3]
  %v49 = vld [vmem:[%s0 + $0x100] sm:$0x3]
  %v50 = vld [vmem:[%s0 + $0x108] sm:$0x3]
  %v51 = vld [vmem:[%s0 + $0x110] sm:$0x3]
  %v52 = vld [vmem:[%s0 + $0x118] sm:$0x3]
  %v53 = vld [vmem:[%s0 + $0x120] sm:$0xff]
  %v54 = vld [vmem:[%s0 + $0x128] sm:$0xff]
  %v55 = vld [vmem:[%s0 + $0x130] sm:$0xff]
  %v56 = vld [vmem:[%s0 + $0x138] sm:$0xff]
  %v57 = vld [vmem:[%s0 + $0x140] sm:$0xff]
  %v58 = vld [vmem:[%s0 + $0x148] sm:$0xff]
  %v59 = vld [vmem:[%s0 + $0x150] sm:$0xff]
  %v60 = vld [vmem:[%s0 + $0x158] sm:$0xff]
  %v61 = vld [vmem:[%s0 + $0x160] sm:$0xff]
  %v62 = vld [vmem:[%s0 + $0x168] sm:$0x3]
  %v63 = vld [vmem:[%s0 + $0x170] sm:$0x3]
  %v64 = vld [vmem:[%s0 + $0x178] sm:$0x3]
  %v65 = vld [vmem:[%s0 + $0x180] sm:$0x3]
  %v66 = vld [vmem:[%s0 + $0x188] sm:$0x3]
  %v67 = vld [vmem:[%s0 + $0x190] sm:$0x3]
  %v68 = vld [vmem:[%s0 + $0x198] sm:$0x3]
  %v69 = vld [vmem:[%s0 + $0x1a0] sm:$0x3]
  %v70 = vld [vmem:[%s0 + $0x1a8] sm:$0x3]
  %v71 = vld [vmem:[%s0 + $0x1b0] sm:$0xff]
  %v72 = vld [vmem:[%s0 + $0x1b8] sm:$0xff]
  %v73 = vld [vmem:[%s0 + $0x1c0] sm:$0xff]
  %v74 = vld [vmem:[%s0 + $0x1c8] sm:$0xff]
  %v75 = vld [vmem:[%s0 + $0x1d0] sm:$0xff]
  %v76 = vld [vmem:[%s0 + $0x1d8] sm:$0xff]
  %v77 = vld [vmem:[%s0 + $0x1e0] sm:$0xff]
  %v78 = vld [vmem:[%s0 + $0x1e8] sm:$0xff]
  %v79 = vld [vmem:[%s0 + $0x1f0] sm:$0xff]
  %v80 = vld [vmem:[%s0 + $0x1f8] sm:$0x3]
  %v81 = vld [vmem:[%s0 + $0x200] sm:$0x3]
  %v82 = vld [vmem:[%s0 + $0x208] sm:$0x3]
  %v83 = vld [vmem:[%s0 + $0x210] sm:$0x3]
  %v84 = vld [vmem:[%s0 + $0x218] sm:$0x3]
  %v85 = vld [vmem:[%s0 + $0x220] sm:$0x3]
  %v86 = vld [vmem:[%s0 + $0x228] sm:$0x3]
  %v87 = vld [vmem:[%s0 + $0x230] sm:$0x3]
  %v88 = vld [vmem:[%s0 + $0x238] sm:$0x3]
  %v89 = vld [vmem:[%s0 + $0x240] sm:$0xff]
  %v90 = vld [vmem:[%s0 + $0x248] sm:$0xff]
  %v91 = vld [vmem:[%s0 + $0x250] sm:$0xff]
  %v92 = vld [vmem:[%s0 + $0x258] sm:$0xff]
  %v93 = vld [vmem:[%s0 + $0x260] sm:$0xff]
  %v94 = vld [vmem:[%s0 + $0x268] sm:$0xff]
  %v95 = vld [vmem:[%s0 + $0x270] sm:$0xff]
  %v96 = vld [vmem:[%s0 + $0x278] sm:$0xff]
  %v97 = vld [vmem:[%s0 + $0x280] sm:$0xff]
  %v98 = vld [vmem:[%s0 + $0x288] sm:$0x3]
  %v99 = vld [vmem:[%s0 + $0x290] sm:$0x3]
  %v100 = vld [vmem:[%s0 + $0x298] sm:$0x3]
  %v101 = vld [vmem:[%s0 + $0x2a0] sm:$0x3]
  %v102 = vld [vmem:[%s0 + $0x2a8] sm:$0x3]
  %v103 = vld [vmem:[%s0 + $0x2b0] sm:$0x3]
  %v104 = vld [vmem:[%s0 + $0x2b8] sm:$0x3]
  %v105 = vld [vmem:[%s0 + $0x2c0] sm:$0x3]
  %v106 = vld [vmem:[%s0 + $0x2c8] sm:$0x3]
  %v107 = vld [vmem:[%s0 + $0x2d0] sm:$0xff]
  %v108 = vld [vmem:[%s0 + $0x2d8] sm:$0xff]
  %v109 = vld [vmem:[%s0 + $0x2e0] sm:$0xff]
  %v110 = vld [vmem:[%s0 + $0x2e8] sm:$0xff]
  %v111 = vld [vmem:[%s0 + $0x2f0] sm:$0xff]
  %v112 = vld [vmem:[%s0 + $0x2f8] sm:$0xff]
  %v113 = vld [vmem:[%s0 + $0x300] sm:$0xff]
  %v114 = vld [vmem:[%s0 + $0x308] sm:$0xff]
  %v115 = vld [vmem:[%s0 + $0x310] sm:$0xff]
  %v116 = vld [vmem:[%s0 + $0x318] sm:$0x3]
  %v117 = vld [vmem:[%s0 + $0x320] sm:$0x3]
  %v118 = vld [vmem:[%s0 + $0x328] sm:$0x3]
  %v119 = vld [vmem:[%s0 + $0x330] sm:$0x3]
  %v120 = vld [vmem:[%s0 + $0x338] sm:$0x3]
  %v121 = vld [vmem:[%s0 + $0x340] sm:$0x3]
  %v122 = vld [vmem:[%s0 + $0x348] sm:$0x3]
  %v123 = vld [vmem:[%s0 + $0x350] sm:$0x3]
  %v124 = vld [vmem:[%s0 + $0x358] sm:$0x3]
  %v125 = vld [vmem:[%s0 + $0x360] sm:$0xff]
  %v126 = vld [vmem:[%s0 + $0x368] sm:$0xff]
  %v127 = vld [vmem:[%s0 + $0x370] sm:$0xff]
  %v128 = vld [vmem:[%s0 + $0x378] sm:$0xff]
  %v129 = vld [vmem:[%s0 + $0x380] sm:$0xff]
  %v130 = vld [vmem:[%s0 + $0x388] sm:$0xff]
  %v131 = vld [vmem:[%s0 + $0x390] sm:$0xff]
  %v132 = vld [vmem:[%s0 + $0x398] sm:$0xff]
  %v133 = vld [vmem:[%s0 + $0x3a0] sm:$0xff]
  %v134 = vld [vmem:[%s0 + $0x3a8] sm:$0x3]
  %v135 = vld [vmem:[%s0 + $0x3b0] sm:$0x3]
  %v136 = vld [vmem:[%s0 + $0x3b8] sm:$0x3]
  %v137 = vld [vmem:[%s0 + $0x3c0] sm:$0x3]
  %v138 = vld [vmem:[%s0 + $0x3c8] sm:$0x3]
  %v139 = vld [vmem:[%s0 + $0x3d0] sm:$0x3]
  %v140 = vld [vmem:[%s0 + $0x3d8] sm:$0x3]
  %v141 = vld [vmem:[%s0 + $0x3e0] sm:$0x3]
  %v142 = vld [vmem:[%s0 + $0x3e8] sm:$0x3]
  %v143 = vld [vmem:[%s0 + $0x3f0] sm:$0xff]
  %v144 = vld [vmem:[%s0 + $0x3f8] sm:$0xff]
  %v145 = vld [vmem:[%s0 + $0x400] sm:$0xff]
  %v146 = vld [vmem:[%s0 + $0x408] sm:$0xff]
  %v147 = vld [vmem:[%s0 + $0x410] sm:$0xff]
  %v148 = vld [vmem:[%s0 + $0x418] sm:$0xff]
  %v149 = vld [vmem:[%s0 + $0x420] sm:$0xff]
  %v150 = vld [vmem:[%s0 + $0x428] sm:$0xff]
  %v151 = vld [vmem:[%s0 + $0x430] sm:$0xff]
  %v152 = vld [vmem:[%s0 + $0x438] sm:$0x3]
  %v153 = vld [vmem:[%s0 + $0x440] sm:$0x3]
  %v154 = vld [vmem:[%s0 + $0x448] sm:$0x3]
  %v155 = vld [vmem:[%s0 + $0x450] sm:$0x3]
  %v156 = vld [vmem:[%s0 + $0x458] sm:$0x3]
  %v157 = vld [vmem:[%s0 + $0x460] sm:$0x3]
  %v158 = vld [vmem:[%s0 + $0x468] sm:$0x3]
  %v159 = vld [vmem:[%s0 + $0x470] sm:$0x3]
  %v160 = vld [vmem:[%s0 + $0x478] sm:$0x3]
  %v161 = vld [vmem:[%s0 + $0x480] sm:$0xff]
  %v162 = vld [vmem:[%s0 + $0x488] sm:$0xff]
  %v163 = vld [vmem:[%s0 + $0x490] sm:$0xff]
  %v164 = vld [vmem:[%s0 + $0x498] sm:$0xff]
  %v165 = vld [vmem:[%s0 + $0x4a0] sm:$0xff]
  %v166 = vld [vmem:[%s0 + $0x4a8] sm:$0xff]
  %v167 = vld [vmem:[%s0 + $0x4b0] sm:$0xff]
  %v168 = vld [vmem:[%s0 + $0x4b8] sm:$0xff]
  %v169 = vld [vmem:[%s0 + $0x4c0] sm:$0xff]
  %v170 = vld [vmem:[%s0 + $0x4c8] sm:$0x3]
  %v171 = vld [vmem:[%s0 + $0x4d0] sm:$0x3]
  %v172 = vld [vmem:[%s0 + $0x4d8] sm:$0x3]
  %v173 = vld [vmem:[%s0 + $0x4e0] sm:$0x3]
  %v174 = vld [vmem:[%s0 + $0x4e8] sm:$0x3]
  %v175 = vld [vmem:[%s0 + $0x4f0] sm:$0x3]
  %v176 = vld [vmem:[%s0 + $0x4f8] sm:$0x3]
  %v177 = vld [vmem:[%s0 + $0x500] sm:$0x3]
  %v178 = vld [vmem:[%s0 + $0x508] sm:$0x3]
  %v179 = vld [vmem:[%s1] sm:$0x77]
  %v180 = vld [vmem:[%s1 + $0x8] sm:$0x77]
  %v181 = vld [vmem:[%s1 + $0x10] sm:$0x77]
  %v182 = vld [vmem:[%s1 + $0x18] sm:$0x77]
  %v183 = vld [vmem:[%s1 + $0x20] sm:$0x7]
  %v184 = vld [vmem:[%s1 + $0x24] sm:$0x77]
  %v185 = vld [vmem:[%s1 + $0x2c] sm:$0x77]
  %v186 = vld [vmem:[%s1 + $0x34] sm:$0x77]
  %v187 = vld [vmem:[%s1 + $0x3c] sm:$0x77]
  %v188 = vld [vmem:[%s1 + $0x44] sm:$0x7]
  %v189 = vld [vmem:[%s1 + $0x48] sm:$0x77]
  %v190 = vld [vmem:[%s1 + $0x50] sm:$0x77]
  %v191 = vld [vmem:[%s1 + $0x58] sm:$0x77]
  %v192 = vld [vmem:[%s1 + $0x60] sm:$0x77]
  %v193 = vld [vmem:[%s1 + $0x68] sm:$0x7]
  %v199 = vlaneseq
  %v200 = vshrl.u32 %v199, 7
  %v201 = vsub.s32 0, %v200
  %v202 = vrot.slane %v179, %v201
  %v203 = vlaneseq
  %v204 = vshrl.u32 %v203, 7
  %v205 = vsub.s32 4, %v204
  %v206 = vrot.slane %v179, %v205
  %v207 = vlaneseq
  %v208 = vshrl.u32 %v207, 7
  %v209 = vsub.s32 0, %v208
  %v210 = vrot.slane %v180, %v209
  %v211 = vlaneseq
  %v212 = vshrl.u32 %v211, 7
  %v213 = vsub.s32 4, %v212
  %v214 = vrot.slane %v180, %v213
  %v215 = vlaneseq
  %v216 = vshrl.u32 %v215, 7
  %v217 = vsub.s32 0, %v216
  %v218 = vrot.slane %v181, %v217
  %v219 = vlaneseq
  %v220 = vshrl.u32 %v219, 7
  %v221 = vsub.s32 4, %v220
  %v222 = vrot.slane %v181, %v221
  %v223 = vlaneseq
  %v224 = vshrl.u32 %v223, 7
  %v225 = vsub.s32 0, %v224
  %v226 = vrot.slane %v182, %v225
  %v227 = vlaneseq
  %v228 = vshrl.u32 %v227, 7
  %v229 = vsub.s32 4, %v228
  %v230 = vrot.slane %v182, %v229
  %v231 = vlaneseq
  %v232 = vshrl.u32 %v231, 7
  %v233 = vsub.s32 0, %v232
  %v234 = vrot.slane %v183, %v233
  %v244 = vlaneseq
  %v245 = vshrl.u32 %v244, 7
  %v246 = vsub.s32 0, %v245
  %v247 = vrot.slane %v202, %v246
  %v248 = vlaneseq
  %v249 = vshrl.u32 %v248, 7
  %v250 = vsub.s32 0, %v249
  %v251 = vrot.slane %v206, %v250
  %v252 = vlaneseq
  %v253 = vshrl.u32 %v252, 7
  %v254 = vsub.s32 0, %v253
  %v255 = vrot.slane %v210, %v254
  %v256 = vlaneseq
  %v257 = vshrl.u32 %v256, 7
  %v258 = vsub.s32 0, %v257
  %v259 = vrot.slane %v214, %v258
  %v260 = vlaneseq
  %v261 = vshrl.u32 %v260, 7
  %v262 = vsub.s32 0, %v261
  %v263 = vrot.slane %v218, %v262
  %v264 = vlaneseq
  %v265 = vshrl.u32 %v264, 7
  %v266 = vsub.s32 0, %v265
  %v267 = vrot.slane %v222, %v266
  %v268 = vlaneseq
  %v269 = vshrl.u32 %v268, 7
  %v270 = vsub.s32 0, %v269
  %v271 = vrot.slane %v226, %v270
  %v272 = vlaneseq
  %v273 = vshrl.u32 %v272, 7
  %v274 = vsub.s32 0, %v273
  %v275 = vrot.slane %v230, %v274
  %v276 = vlaneseq
  %v277 = vshrl.u32 %v276, 7
  %v278 = vsub.s32 0, %v277
  %v279 = vrot.slane %v234, %v278
  %v280 = vmul.f32 %v17, %v247
  %v281 = vmul.f32 %v18, %v251
  %v282 = vmul.f32 %v19, %v255
  %v283 = vmul.f32 %v20, %v259
  %v284 = vmul.f32 %v21, %v263
  %v285 = vmul.f32 %v22, %v267
  %v286 = vmul.f32 %v23, %v271
  %v287 = vmul.f32 %v24, %v275
  %v288 = vmul.f32 %v25, %v279
  %v289 = vmul.f32 %v35, %v247
  %v290 = vmul.f32 %v36, %v251
  %v291 = vmul.f32 %v37, %v255
  %v292 = vmul.f32 %v38, %v259
  %v293 = vmul.f32 %v39, %v263
  %v294 = vmul.f32 %v40, %v267
  %v295 = vmul.f32 %v41, %v271
  %v296 = vmul.f32 %v42, %v275
  %v297 = vmul.f32 %v43, %v279
  %v298 = vmul.f32 %v53, %v247
  %v299 = vmul.f32 %v54, %v251
  %v300 = vmul.f32 %v55, %v255
  %v301 = vmul.f32 %v56, %v259
  %v302 = vmul.f32 %v57, %v263
  %v303 = vmul.f32 %v58, %v267
  %v304 = vmul.f32 %v59, %v271
  %v305 = vmul.f32 %v60, %v275
  %v306 = vmul.f32 %v61, %v279
  %v307 = vmul.f32 %v71, %v247
  %v308 = vmul.f32 %v72, %v251
  %v309 = vmul.f32 %v73, %v255
  %v310 = vmul.f32 %v74, %v259
  %v311 = vmul.f32 %v75, %v263
  %v312 = vmul.f32 %v76, %v267
  %v313 = vmul.f32 %v77, %v271
  %v314 = vmul.f32 %v78, %v275
  %v315 = vmul.f32 %v79, %v279
  %v316 = vmul.f32 %v89, %v247
  %v317 = vmul.f32 %v90, %v251
  %v318 = vmul.f32 %v91, %v255
  %v319 = vmul.f32 %v92, %v259
  %v320 = vmul.f32 %v93, %v263
  %v321 = vmul.f32 %v94, %v267
  %v322 = vmul.f32 %v95, %v271
  %v323 = vmul.f32 %v96, %v275
  %v324 = vmul.f32 %v97, %v279
  %v325 = vmul.f32 %v107, %v247
  %v326 = vmul.f32 %v108, %v251
  %v327 = vmul.f32 %v109, %v255
  %v328 = vmul.f32 %v110, %v259
  %v329 = vmul.f32 %v111, %v263
  %v330 = vmul.f32 %v112, %v267
  %v331 = vmul.f32 %v113, %v271
  %v332 = vmul.f32 %v114, %v275
  %v333 = vmul.f32 %v115, %v279
  %v334 = vmul.f32 %v125, %v247
  %v335 = vmul.f32 %v126, %v251
  %v336 = vmul.f32 %v127, %v255
  %v337 = vmul.f32 %v128, %v259
  %v338 = vmul.f32 %v129, %v263
  %v339 = vmul.f32 %v130, %v267
  %v340 = vmul.f32 %v131, %v271
  %v341 = vmul.f32 %v132, %v275
  %v342 = vmul.f32 %v133, %v279
  %v343 = vadd.f32 %v280, 0.0
  %v344 = vadd.f32 %v281, 0.0
  %v345 = vadd.f32 %v282, 0.0
  %v346 = vadd.f32 %v283, 0.0
  %v347 = vadd.f32 %v284, 0.0
  %v348 = vadd.f32 %v285, 0.0
  %v349 = vadd.f32 %v286, 0.0
  %v350 = vadd.f32 %v287, 0.0
  %v351 = vadd.f32 %v288, 0.0
  %v352 = vadd.f32 %v289, 0.0
  %v353 = vadd.f32 %v290, 0.0
  %v354 = vadd.f32 %v291, 0.0
  %v355 = vadd.f32 %v292, 0.0
  %v356 = vadd.f32 %v293, 0.0
  %v357 = vadd.f32 %v294, 0.0
  %v358 = vadd.f32 %v295, 0.0
  %v359 = vadd.f32 %v296, 0.0
  %v360 = vadd.f32 %v297, 0.0
  %v361 = vadd.f32 %v298, 0.0
  %v362 = vadd.f32 %v299, 0.0
  %v363 = vadd.f32 %v300, 0.0
  %v364 = vadd.f32 %v301, 0.0
  %v365 = vadd.f32 %v302, 0.0
  %v366 = vadd.f32 %v303, 0.0
  %v367 = vadd.f32 %v304, 0.0
  %v368 = vadd.f32 %v305, 0.0
  %v369 = vadd.f32 %v306, 0.0
  %v370 = vadd.f32 %v307, 0.0
  %v371 = vadd.f32 %v308, 0.0
  %v372 = vadd.f32 %v309, 0.0
  %v373 = vadd.f32 %v310, 0.0
  %v374 = vadd.f32 %v311, 0.0
  %v375 = vadd.f32 %v312, 0.0
  %v376 = vadd.f32 %v313, 0.0
  %v377 = vadd.f32 %v314, 0.0
  %v378 = vadd.f32 %v315, 0.0
  %v379 = vadd.f32 %v316, 0.0
  %v380 = vadd.f32 %v317, 0.0
  %v381 = vadd.f32 %v318, 0.0
  %v382 = vadd.f32 %v319, 0.0
  %v383 = vadd.f32 %v320, 0.0
  %v384 = vadd.f32 %v321, 0.0
  %v385 = vadd.f32 %v322, 0.0
  %v386 = vadd.f32 %v323, 0.0
  %v387 = vadd.f32 %v324, 0.0
  %v388 = vadd.f32 %v325, 0.0
  %v389 = vadd.f32 %v326, 0.0
  %v390 = vadd.f32 %v327, 0.0
  %v391 = vadd.f32 %v328, 0.0
  %v392 = vadd.f32 %v329, 0.0
  %v393 = vadd.f32 %v330, 0.0
  %v394 = vadd.f32 %v331, 0.0
  %v395 = vadd.f32 %v332, 0.0
  %v396 = vadd.f32 %v333, 0.0
  %v397 = vadd.f32 %v334, 0.0
  %v398 = vadd.f32 %v335, 0.0
  %v399 = vadd.f32 %v336, 0.0
  %v400 = vadd.f32 %v337, 0.0
  %v401 = vadd.f32 %v338, 0.0
  %v402 = vadd.f32 %v339, 0.0
  %v403 = vadd.f32 %v340, 0.0
  %v404 = vadd.f32 %v341, 0.0
  %v405 = vadd.f32 %v342, 0.0
  %v406 = vlaneseq
  %v407 = vshrl.u32 %v406, 7
  %v408 = vsub.s32 1, %v407
  %v409 = vrot.slane %v179, %v408
  %v410 = vlaneseq
  %v411 = vshrl.u32 %v410, 7
  %v412 = vsub.s32 5, %v411
  %v413 = vrot.slane %v179, %v412
  %v414 = vlaneseq
  %v415 = vshrl.u32 %v414, 7
  %v416 = vsub.s32 1, %v415
  %v417 = vrot.slane %v180, %v416
  %v418 = vlaneseq
  %v419 = vshrl.u32 %v418, 7
  %v420 = vsub.s32 5, %v419
  %v421 = vrot.slane %v180, %v420
  %v422 = vlaneseq
  %v423 = vshrl.u32 %v422, 7
  %v424 = vsub.s32 1, %v423
  %v425 = vrot.slane %v181, %v424
  %v426 = vlaneseq
  %v427 = vshrl.u32 %v426, 7
  %v428 = vsub.s32 5, %v427
  %v429 = vrot.slane %v181, %v428
  %v430 = vlaneseq
  %v431 = vshrl.u32 %v430, 7
  %v432 = vsub.s32 1, %v431
  %v433 = vrot.slane %v182, %v432
  %v434 = vlaneseq
  %v435 = vshrl.u32 %v434, 7
  %v436 = vsub.s32 5, %v435
  %v437 = vrot.slane %v182, %v436
  %v438 = vlaneseq
  %v439 = vshrl.u32 %v438, 7
  %v440 = vsub.s32 1, %v439
  %v441 = vrot.slane %v183, %v440
  %v451 = vlaneseq
  %v452 = vshrl.u32 %v451, 7
  %v453 = vsub.s32 1, %v452
  %v454 = vrot.slane %v409, %v453
  %v455 = vlaneseq
  %v456 = vshrl.u32 %v455, 7
  %v457 = vsub.s32 1, %v456
  %v458 = vrot.slane %v413, %v457
  %v459 = vlaneseq
  %v460 = vshrl.u32 %v459, 7
  %v461 = vsub.s32 1, %v460
  %v462 = vrot.slane %v417, %v461
  %v463 = vlaneseq
  %v464 = vshrl.u32 %v463, 7
  %v465 = vsub.s32 1, %v464
  %v466 = vrot.slane %v421, %v465
  %v467 = vlaneseq
  %v468 = vshrl.u32 %v467, 7
  %v469 = vsub.s32 1, %v468
  %v470 = vrot.slane %v425, %v469
  %v471 = vlaneseq
  %v472 = vshrl.u32 %v471, 7
  %v473 = vsub.s32 1, %v472
  %v474 = vrot.slane %v429, %v473
  %v475 = vlaneseq
  %v476 = vshrl.u32 %v475, 7
  %v477 = vsub.s32 1, %v476
  %v478 = vrot.slane %v433, %v477
  %v479 = vlaneseq
  %v480 = vshrl.u32 %v479, 7
  %v481 = vsub.s32 1, %v480
  %v482 = vrot.slane %v437, %v481
  %v483 = vlaneseq
  %v484 = vshrl.u32 %v483, 7
  %v485 = vsub.s32 1, %v484
  %v486 = vrot.slane %v441, %v485
  %v487 = vmul.f32 %v17, %v454
  %v488 = vmul.f32 %v18, %v458
  %v489 = vmul.f32 %v19, %v462
  %v490 = vmul.f32 %v20, %v466
  %v491 = vmul.f32 %v21, %v470
  %v492 = vmul.f32 %v22, %v474
  %v493 = vmul.f32 %v23, %v478
  %v494 = vmul.f32 %v24, %v482
  %v495 = vmul.f32 %v25, %v486
  %v496 = vmul.f32 %v26, %v454
  %v497 = vmul.f32 %v27, %v458
  %v498 = vmul.f32 %v28, %v462
  %v499 = vmul.f32 %v29, %v466
  %v500 = vmul.f32 %v30, %v470
  %v501 = vmul.f32 %v31, %v474
  %v502 = vmul.f32 %v32, %v478
  %v503 = vmul.f32 %v33, %v482
  %v504 = vmul.f32 %v34, %v486
  %v505 = vmul.f32 %v35, %v454
  %v506 = vmul.f32 %v36, %v458
  %v507 = vmul.f32 %v37, %v462
  %v508 = vmul.f32 %v38, %v466
  %v509 = vmul.f32 %v39, %v470
  %v510 = vmul.f32 %v40, %v474
  %v511 = vmul.f32 %v41, %v478
  %v512 = vmul.f32 %v42, %v482
  %v513 = vmul.f32 %v43, %v486
  %v514 = vmul.f32 %v44, %v454
  %v515 = vmul.f32 %v45, %v458
  %v516 = vmul.f32 %v46, %v462
  %v517 = vmul.f32 %v47, %v466
  %v518 = vmul.f32 %v48, %v470
  %v519 = vmul.f32 %v49, %v474
  %v520 = vmul.f32 %v50, %v478
  %v521 = vmul.f32 %v51, %v482
  %v522 = vmul.f32 %v52, %v486
  %v523 = vmul.f32 %v53, %v454
  %v524 = vmul.f32 %v54, %v458
  %v525 = vmul.f32 %v55, %v462
  %v526 = vmul.f32 %v56, %v466
  %v527 = vmul.f32 %v57, %v470
  %v528 = vmul.f32 %v58, %v474
  %v529 = vmul.f32 %v59, %v478
  %v530 = vmul.f32 %v60, %v482
  %v531 = vmul.f32 %v61, %v486
  %v532 = vmul.f32 %v62, %v454
  %v533 = vmul.f32 %v63, %v458
  %v534 = vmul.f32 %v64, %v462
  %v535 = vmul.f32 %v65, %v466
  %v536 = vmul.f32 %v66, %v470
  %v537 = vmul.f32 %v67, %v474
  %v538 = vmul.f32 %v68, %v478
  %v539 = vmul.f32 %v69, %v482
  %v540 = vmul.f32 %v70, %v486
  %v541 = vmul.f32 %v71, %v454
  %v542 = vmul.f32 %v72, %v458
  %v543 = vmul.f32 %v73, %v462
  %v544 = vmul.f32 %v74, %v466
  %v545 = vmul.f32 %v75, %v470
  %v546 = vmul.f32 %v76, %v474
  %v547 = vmul.f32 %v77, %v478
  %v548 = vmul.f32 %v78, %v482
  %v549 = vmul.f32 %v79, %v486
  %v550 = vmul.f32 %v80, %v454
  %v551 = vmul.f32 %v81, %v458
  %v552 = vmul.f32 %v82, %v462
  %v553 = vmul.f32 %v83, %v466
  %v554 = vmul.f32 %v84, %v470
  %v555 = vmul.f32 %v85, %v474
  %v556 = vmul.f32 %v86, %v478
  %v557 = vmul.f32 %v87, %v482
  %v558 = vmul.f32 %v88, %v486
  %v559 = vmul.f32 %v89, %v454
  %v560 = vmul.f32 %v90, %v458
  %v561 = vmul.f32 %v91, %v462
  %v562 = vmul.f32 %v92, %v466
  %v563 = vmul.f32 %v93, %v470
  %v564 = vmul.f32 %v94, %v474
  %v565 = vmul.f32 %v95, %v478
  %v566 = vmul.f32 %v96, %v482
  %v567 = vmul.f32 %v97, %v486
  %v568 = vmul.f32 %v98, %v454
  %v569 = vmul.f32 %v99, %v458
  %v570 = vmul.f32 %v100, %v462
  %v571 = vmul.f32 %v101, %v466
  %v572 = vmul.f32 %v102, %v470
  %v573 = vmul.f32 %v103, %v474
  %v574 = vmul.f32 %v104, %v478
  %v575 = vmul.f32 %v105, %v482
  %v576 = vmul.f32 %v106, %v486
  %v577 = vmul.f32 %v107, %v454
  %v578 = vmul.f32 %v108, %v458
  %v579 = vmul.f32 %v109, %v462
  %v580 = vmul.f32 %v110, %v466
  %v581 = vmul.f32 %v111, %v470
  %v582 = vmul.f32 %v112, %v474
  %v583 = vmul.f32 %v113, %v478
  %v584 = vmul.f32 %v114, %v482
  %v585 = vmul.f32 %v115, %v486
  %v586 = vmul.f32 %v116, %v454
  %v587 = vmul.f32 %v117, %v458
  %v588 = vmul.f32 %v118, %v462
  %v589 = vmul.f32 %v119, %v466
  %v590 = vmul.f32 %v120, %v470
  %v591 = vmul.f32 %v121, %v474
  %v592 = vmul.f32 %v122, %v478
  %v593 = vmul.f32 %v123, %v482
  %v594 = vmul.f32 %v124, %v486
  %v595 = vmul.f32 %v125, %v454
  %v596 = vmul.f32 %v126, %v458
  %v597 = vmul.f32 %v127, %v462
  %v598 = vmul.f32 %v128, %v466
  %v599 = vmul.f32 %v129, %v470
  %v600 = vmul.f32 %v130, %v474
  %v601 = vmul.f32 %v131, %v478
  %v602 = vmul.f32 %v132, %v482
  %v603 = vmul.f32 %v133, %v486
  %v604 = vmul.f32 %v134, %v454
  %v605 = vmul.f32 %v135, %v458
  %v606 = vmul.f32 %v136, %v462
  %v607 = vmul.f32 %v137, %v466
  %v608 = vmul.f32 %v138, %v470
  %v609 = vmul.f32 %v139, %v474
  %v610 = vmul.f32 %v140, %v478
  %v611 = vmul.f32 %v141, %v482
  %v612 = vmul.f32 %v142, %v486
  %vm739 = vcmask 1046528
  %v740 = vrot.slane %v487, 1
  %v741 = vrot.slane %v496, 1
  %v742 = vsel %vm739, %v740, %v741
  %v743 = vrot.slane %v488, 1
  %v744 = vrot.slane %v497, 1
  %v745 = vsel %vm739, %v743, %v744
  %v746 = vrot.slane %v489, 1
  %v747 = vrot.slane %v498, 1
  %v748 = vsel %vm739, %v746, %v747
  %v749 = vrot.slane %v490, 1
  %v750 = vrot.slane %v499, 1
  %v751 = vsel %vm739, %v749, %v750
  %v752 = vrot.slane %v491, 1
  %v753 = vrot.slane %v500, 1
  %v754 = vsel %vm739, %v752, %v753
  %v755 = vrot.slane %v492, 1
  %v756 = vrot.slane %v501, 1
  %v757 = vsel %vm739, %v755, %v756
  %v758 = vrot.slane %v493, 1
  %v759 = vrot.slane %v502, 1
  %v760 = vsel %vm739, %v758, %v759
  %v761 = vrot.slane %v494, 1
  %v762 = vrot.slane %v503, 1
  %v763 = vsel %vm739, %v761, %v762
  %v764 = vrot.slane %v495, 1
  %v765 = vrot.slane %v504, 1
  %v766 = vsel %vm739, %v764, %v765
  %v767 = vrot.slane %v505, 1
  %v768 = vrot.slane %v514, 1
  %v769 = vsel %vm739, %v767, %v768
  %v770 = vrot.slane %v506, 1
  %v771 = vrot.slane %v515, 1
  %v772 = vsel %vm739, %v770, %v771
  %v773 = vrot.slane %v507, 1
  %v774 = vrot.slane %v516, 1
  %v775 = vsel %vm739, %v773, %v774
  %v776 = vrot.slane %v508, 1
  %v777 = vrot.slane %v517, 1
  %v778 = vsel %vm739, %v776, %v777
  %v779 = vrot.slane %v509, 1
  %v780 = vrot.slane %v518, 1
  %v781 = vsel %vm739, %v779, %v780
  %v782 = vrot.slane %v510, 1
  %v783 = vrot.slane %v519, 1
  %v784 = vsel %vm739, %v782, %v783
  %v785 = vrot.slane %v511, 1
  %v786 = vrot.slane %v520, 1
  %v787 = vsel %vm739, %v785, %v786
  %v788 = vrot.slane %v512, 1
  %v789 = vrot.slane %v521, 1
  %v790 = vsel %vm739, %v788, %v789
  %v791 = vrot.slane %v513, 1
  %v792 = vrot.slane %v522, 1
  %v793 = vsel %vm739, %v791, %v792
  %v794 = vrot.slane %v523, 1
  %v795 = vrot.slane %v532, 1
  %v796 = vsel %vm739, %v794, %v795
  %v797 = vrot.slane %v524, 1
  %v798 = vrot.slane %v533, 1
  %v799 = vsel %vm739, %v797, %v798
  %v800 = vrot.slane %v525, 1
  %v801 = vrot.slane %v534, 1
  %v802 = vsel %vm739, %v800, %v801
  %v803 = vrot.slane %v526, 1
  %v804 = vrot.slane %v535, 1
  %v805 = vsel %vm739, %v803, %v804
  %v806 = vrot.slane %v527, 1
  %v807 = vrot.slane %v536, 1
  %v808 = vsel %vm739, %v806, %v807
  %v809 = vrot.slane %v528, 1
  %v810 = vrot.slane %v537, 1
  %v811 = vsel %vm739, %v809, %v810
  %v812 = vrot.slane %v529, 1
  %v813 = vrot.slane %v538, 1
  %v814 = vsel %vm739, %v812, %v813
  %v815 = vrot.slane %v530, 1
  %v816 = vrot.slane %v539, 1
  %v817 = vsel %vm739, %v815, %v816
  %v818 = vrot.slane %v531, 1
  %v819 = vrot.slane %v540, 1
  %v820 = vsel %vm739, %v818, %v819
  %v821 = vrot.slane %v541, 1
  %v822 = vrot.slane %v550, 1
  %v823 = vsel %vm739, %v821, %v822
  %v824 = vrot.slane %v542, 1
  %v825 = vrot.slane %v551, 1
  %v826 = vsel %vm739, %v824, %v825
  %v827 = vrot.slane %v543, 1
  %v828 = vrot.slane %v552, 1
  %v829 = vsel %vm739, %v827, %v828
  %v830 = vrot.slane %v544, 1
  %v831 = vrot.slane %v553, 1
  %v832 = vsel %vm739, %v830, %v831
  %v833 = vrot.slane %v545, 1
  %v834 = vrot.slane %v554, 1
  %v835 = vsel %vm739, %v833, %v834
  %v836 = vrot.slane %v546, 1
  %v837 = vrot.slane %v555, 1
  %v838 = vsel %vm739, %v836, %v837
  %v839 = vrot.slane %v547, 1
  %v840 = vrot.slane %v556, 1
  %v841 = vsel %vm739, %v839, %v840
  %v842 = vrot.slane %v548, 1
  %v843 = vrot.slane %v557, 1
  %v844 = vsel %vm739, %v842, %v843
  %v845 = vrot.slane %v549, 1
  %v846 = vrot.slane %v558, 1
  %v847 = vsel %vm739, %v845, %v846
  %v848 = vrot.slane %v559, 1
  %v849 = vrot.slane %v568, 1
  %v850 = vsel %vm739, %v848, %v849
  %v851 = vrot.slane %v560, 1
  %v852 = vrot.slane %v569, 1
  %v853 = vsel %vm739, %v851, %v852
  %v854 = vrot.slane %v561, 1
  %v855 = vrot.slane %v570, 1
  %v856 = vsel %vm739, %v854, %v855
  %v857 = vrot.slane %v562, 1
  %v858 = vrot.slane %v571, 1
  %v859 = vsel %vm739, %v857, %v858
  %v860 = vrot.slane %v563, 1
  %v861 = vrot.slane %v572, 1
  %v862 = vsel %vm739, %v860, %v861
  %v863 = vrot.slane %v564, 1
  %v864 = vrot.slane %v573, 1
  %v865 = vsel %vm739, %v863, %v864
  %v866 = vrot.slane %v565, 1
  %v867 = vrot.slane %v574, 1
  %v868 = vsel %vm739, %v866, %v867
  %v869 = vrot.slane %v566, 1
  %v870 = vrot.slane %v575, 1
  %v871 = vsel %vm739, %v869, %v870
  %v872 = vrot.slane %v567, 1
  %v873 = vrot.slane %v576, 1
  %v874 = vsel %vm739, %v872, %v873
  %v875 = vrot.slane %v577, 1
  %v876 = vrot.slane %v586, 1
  %v877 = vsel %vm739, %v875, %v876
  %v878 = vrot.slane %v578, 1
  %v879 = vrot.slane %v587, 1
  %v880 = vsel %vm739, %v878, %v879
  %v881 = vrot.slane %v579, 1
  %v882 = vrot.slane %v588, 1
  %v883 = vsel %vm739, %v881, %v882
  %v884 = vrot.slane %v580, 1
  %v885 = vrot.slane %v589, 1
  %v886 = vsel %vm739, %v884, %v885
  %v887 = vrot.slane %v581, 1
  %v888 = vrot.slane %v590, 1
  %v889 = vsel %vm739, %v887, %v888
  %v890 = vrot.slane %v582, 1
  %v891 = vrot.slane %v591, 1
  %v892 = vsel %vm739, %v890, %v891
  %v893 = vrot.slane %v583, 1
  %v894 = vrot.slane %v592, 1
  %v895 = vsel %vm739, %v893, %v894
  %v896 = vrot.slane %v584, 1
  %v897 = vrot.slane %v593, 1
  %v898 = vsel %vm739, %v896, %v897
  %v899 = vrot.slane %v585, 1
  %v900 = vrot.slane %v594, 1
  %v901 = vsel %vm739, %v899, %v900
  %v902 = vrot.slane %v595, 1
  %v903 = vrot.slane %v604, 1
  %v904 = vsel %vm739, %v902, %v903
  %v905 = vrot.slane %v596, 1
  %v906 = vrot.slane %v605, 1
  %v907 = vsel %vm739, %v905, %v906
  %v908 = vrot.slane %v597, 1
  %v909 = vrot.slane %v606, 1
  %v910 = vsel %vm739, %v908, %v909
  %v911 = vrot.slane %v598, 1
  %v912 = vrot.slane %v607, 1
  %v913 = vsel %vm739, %v911, %v912
  %v914 = vrot.slane %v599, 1
  %v915 = vrot.slane %v608, 1
  %v916 = vsel %vm739, %v914, %v915
  %v917 = vrot.slane %v600, 1
  %v918 = vrot.slane %v609, 1
  %v919 = vsel %vm739, %v917, %v918
  %v920 = vrot.slane %v601, 1
  %v921 = vrot.slane %v610, 1
  %v922 = vsel %vm739, %v920, %v921
  %v923 = vrot.slane %v602, 1
  %v924 = vrot.slane %v611, 1
  %v925 = vsel %vm739, %v923, %v924
  %v926 = vrot.slane %v603, 1
  %v927 = vrot.slane %v612, 1
  %v928 = vsel %vm739, %v926, %v927
  %v992 = vadd.f32 %v343, %v742
  %v993 = vadd.f32 %v344, %v745
  %v994 = vadd.f32 %v345, %v748
  %v995 = vadd.f32 %v346, %v751
  %v996 = vadd.f32 %v347, %v754
  %v997 = vadd.f32 %v348, %v757
  %v998 = vadd.f32 %v349, %v760
  %v999 = vadd.f32 %v350, %v763
  %v1000 = vadd.f32 %v351, %v766
  %v1001 = vadd.f32 %v352, %v769
  %v1002 = vadd.f32 %v353, %v772
  %v1003 = vadd.f32 %v354, %v775
  %v1004 = vadd.f32 %v355, %v778
  %v1005 = vadd.f32 %v356, %v781
  %v1006 = vadd.f32 %v357, %v784
  %v1007 = vadd.f32 %v358, %v787
  %v1008 = vadd.f32 %v359, %v790
  %v1009 = vadd.f32 %v360, %v793
  %v1010 = vadd.f32 %v361, %v796
  %v1011 = vadd.f32 %v362, %v799
  %v1012 = vadd.f32 %v363, %v802
  %v1013 = vadd.f32 %v364, %v805
  %v1014 = vadd.f32 %v365, %v808
  %v1015 = vadd.f32 %v366, %v811
  %v1016 = vadd.f32 %v367, %v814
  %v1017 = vadd.f32 %v368, %v817
  %v1018 = vadd.f32 %v369, %v820
  %v1019 = vadd.f32 %v370, %v823
  %v1020 = vadd.f32 %v371, %v826
  %v1021 = vadd.f32 %v372, %v829
  %v1022 = vadd.f32 %v373, %v832
  %v1023 = vadd.f32 %v374, %v835
  %v1024 = vadd.f32 %v375, %v838
  %v1025 = vadd.f32 %v376, %v841
  %v1026 = vadd.f32 %v377, %v844
  %v1027 = vadd.f32 %v378, %v847
  %v1028 = vadd.f32 %v379, %v850
  %v1029 = vadd.f32 %v380, %v853
  %v1030 = vadd.f32 %v381, %v856
  %v1031 = vadd.f32 %v382, %v859
  %v1032 = vadd.f32 %v383, %v862
  %v1033 = vadd.f32 %v384, %v865
  %v1034 = vadd.f32 %v385, %v868
  %v1035 = vadd.f32 %v386, %v871
  %v1036 = vadd.f32 %v387, %v874
  %v1037 = vadd.f32 %v388, %v877
  %v1038 = vadd.f32 %v389, %v880
  %v1039 = vadd.f32 %v390, %v883
  %v1040 = vadd.f32 %v391, %v886
  %v1041 = vadd.f32 %v392, %v889
  %v1042 = vadd.f32 %v393, %v892
  %v1043 = vadd.f32 %v394, %v895
  %v1044 = vadd.f32 %v395, %v898
  %v1045 = vadd.f32 %v396, %v901
  %v1046 = vadd.f32 %v397, %v904
  %v1047 = vadd.f32 %v398, %v907
  %v1048 = vadd.f32 %v399, %v910
  %v1049 = vadd.f32 %v400, %v913
  %v1050 = vadd.f32 %v401, %v916
  %v1051 = vadd.f32 %v402, %v919
  %v1052 = vadd.f32 %v403, %v922
  %v1053 = vadd.f32 %v404, %v925
  %v1054 = vadd.f32 %v405, %v928
  %v1055 = vlaneseq
  %v1056 = vshrl.u32 %v1055, 7
  %v1057 = vsub.s32 2, %v1056
  %v1058 = vrot.slane %v179, %v1057
  %v1059 = vlaneseq
  %v1060 = vshrl.u32 %v1059, 7
  %v1061 = vsub.s32 6, %v1060
  %v1062 = vrot.slane %v179, %v1061
  %v1063 = vlaneseq
  %v1064 = vshrl.u32 %v1063, 7
  %v1065 = vsub.s32 2, %v1064
  %v1066 = vrot.slane %v180, %v1065
  %v1067 = vlaneseq
  %v1068 = vshrl.u32 %v1067, 7
  %v1069 = vsub.s32 6, %v1068
  %v1070 = vrot.slane %v180, %v1069
  %v1071 = vlaneseq
  %v1072 = vshrl.u32 %v1071, 7
  %v1073 = vsub.s32 2, %v1072
  %v1074 = vrot.slane %v181, %v1073
  %v1075 = vlaneseq
  %v1076 = vshrl.u32 %v1075, 7
  %v1077 = vsub.s32 6, %v1076
  %v1078 = vrot.slane %v181, %v1077
  %v1079 = vlaneseq
  %v1080 = vshrl.u32 %v1079, 7
  %v1081 = vsub.s32 2, %v1080
  %v1082 = vrot.slane %v182, %v1081
  %v1083 = vlaneseq
  %v1084 = vshrl.u32 %v1083, 7
  %v1085 = vsub.s32 6, %v1084
  %v1086 = vrot.slane %v182, %v1085
  %v1087 = vlaneseq
  %v1088 = vshrl.u32 %v1087, 7
  %v1089 = vsub.s32 2, %v1088
  %v1090 = vrot.slane %v183, %v1089
  %v1100 = vlaneseq
  %v1101 = vshrl.u32 %v1100, 7
  %v1102 = vsub.s32 2, %v1101
  %v1103 = vrot.slane %v1058, %v1102
  %v1104 = vlaneseq
  %v1105 = vshrl.u32 %v1104, 7
  %v1106 = vsub.s32 2, %v1105
  %v1107 = vrot.slane %v1062, %v1106
  %v1108 = vlaneseq
  %v1109 = vshrl.u32 %v1108, 7
  %v1110 = vsub.s32 2, %v1109
  %v1111 = vrot.slane %v1066, %v1110
  %v1112 = vlaneseq
  %v1113 = vshrl.u32 %v1112, 7
  %v1114 = vsub.s32 2, %v1113
  %v1115 = vrot.slane %v1070, %v1114
  %v1116 = vlaneseq
  %v1117 = vshrl.u32 %v1116, 7
  %v1118 = vsub.s32 2, %v1117
  %v1119 = vrot.slane %v1074, %v1118
  %v1120 = vlaneseq
  %v1121 = vshrl.u32 %v1120, 7
  %v1122 = vsub.s32 2, %v1121
  %v1123 = vrot.slane %v1078, %v1122
  %v1124 = vlaneseq
  %v1125 = vshrl.u32 %v1124, 7
  %v1126 = vsub.s32 2, %v1125
  %v1127 = vrot.slane %v1082, %v1126
  %v1128 = vlaneseq
  %v1129 = vshrl.u32 %v1128, 7
  %v1130 = vsub.s32 2, %v1129
  %v1131 = vrot.slane %v1086, %v1130
  %v1132 = vlaneseq
  %v1133 = vshrl.u32 %v1132, 7
  %v1134 = vsub.s32 2, %v1133
  %v1135 = vrot.slane %v1090, %v1134
  %v1136 = vmul.f32 %v17, %v1103
  %v1137 = vmul.f32 %v18, %v1107
  %v1138 = vmul.f32 %v19, %v1111
  %v1139 = vmul.f32 %v20, %v1115
  %v1140 = vmul.f32 %v21, %v1119
  %v1141 = vmul.f32 %v22, %v1123
  %v1142 = vmul.f32 %v23, %v1127
  %v1143 = vmul.f32 %v24, %v1131
  %v1144 = vmul.f32 %v25, %v1135
  %v1145 = vmul.f32 %v26, %v1103
  %v1146 = vmul.f32 %v27, %v1107
  %v1147 = vmul.f32 %v28, %v1111
  %v1148 = vmul.f32 %v29, %v1115
  %v1149 = vmul.f32 %v30, %v1119
  %v1150 = vmul.f32 %v31, %v1123
  %v1151 = vmul.f32 %v32, %v1127
  %v1152 = vmul.f32 %v33, %v1131
  %v1153 = vmul.f32 %v34, %v1135
  %v1154 = vmul.f32 %v35, %v1103
  %v1155 = vmul.f32 %v36, %v1107
  %v1156 = vmul.f32 %v37, %v1111
  %v1157 = vmul.f32 %v38, %v1115
  %v1158 = vmul.f32 %v39, %v1119
  %v1159 = vmul.f32 %v40, %v1123
  %v1160 = vmul.f32 %v41, %v1127
  %v1161 = vmul.f32 %v42, %v1131
  %v1162 = vmul.f32 %v43, %v1135
  %v1163 = vmul.f32 %v44, %v1103
  %v1164 = vmul.f32 %v45, %v1107
  %v1165 = vmul.f32 %v46, %v1111
  %v1166 = vmul.f32 %v47, %v1115
  %v1167 = vmul.f32 %v48, %v1119
  %v1168 = vmul.f32 %v49, %v1123
  %v1169 = vmul.f32 %v50, %v1127
  %v1170 = vmul.f32 %v51, %v1131
  %v1171 = vmul.f32 %v52, %v1135
  %v1172 = vmul.f32 %v53, %v1103
  %v1173 = vmul.f32 %v54, %v1107
  %v1174 = vmul.f32 %v55, %v1111
  %v1175 = vmul.f32 %v56, %v1115
  %v1176 = vmul.f32 %v57, %v1119
  %v1177 = vmul.f32 %v58, %v1123
  %v1178 = vmul.f32 %v59, %v1127
  %v1179 = vmul.f32 %v60, %v1131
  %v1180 = vmul.f32 %v61, %v1135
  %v1181 = vmul.f32 %v62, %v1103
  %v1182 = vmul.f32 %v63, %v1107
  %v1183 = vmul.f32 %v64, %v1111
  %v1184 = vmul.f32 %v65, %v1115
  %v1185 = vmul.f32 %v66, %v1119
  %v1186 = vmul.f32 %v67, %v1123
  %v1187 = vmul.f32 %v68, %v1127
  %v1188 = vmul.f32 %v69, %v1131
  %v1189 = vmul.f32 %v70, %v1135
  %v1190 = vmul.f32 %v71, %v1103
  %v1191 = vmul.f32 %v72, %v1107
  %v1192 = vmul.f32 %v73, %v1111
  %v1193 = vmul.f32 %v74, %v1115
  %v1194 = vmul.f32 %v75, %v1119
  %v1195 = vmul.f32 %v76, %v1123
  %v1196 = vmul.f32 %v77, %v1127
  %v1197 = vmul.f32 %v78, %v1131
  %v1198 = vmul.f32 %v79, %v1135
  %v1199 = vmul.f32 %v80, %v1103
  %v1200 = vmul.f32 %v81, %v1107
  %v1201 = vmul.f32 %v82, %v1111
  %v1202 = vmul.f32 %v83, %v1115
  %v1203 = vmul.f32 %v84, %v1119
  %v1204 = vmul.f32 %v85, %v1123
  %v1205 = vmul.f32 %v86, %v1127
  %v1206 = vmul.f32 %v87, %v1131
  %v1207 = vmul.f32 %v88, %v1135
  %v1208 = vmul.f32 %v89, %v1103
  %v1209 = vmul.f32 %v90, %v1107
  %v1210 = vmul.f32 %v91, %v1111
  %v1211 = vmul.f32 %v92, %v1115
  %v1212 = vmul.f32 %v93, %v1119
  %v1213 = vmul.f32 %v94, %v1123
  %v1214 = vmul.f32 %v95, %v1127
  %v1215 = vmul.f32 %v96, %v1131
  %v1216 = vmul.f32 %v97, %v1135
  %v1217 = vmul.f32 %v98, %v1103
  %v1218 = vmul.f32 %v99, %v1107
  %v1219 = vmul.f32 %v100, %v1111
  %v1220 = vmul.f32 %v101, %v1115
  %v1221 = vmul.f32 %v102, %v1119
  %v1222 = vmul.f32 %v103, %v1123
  %v1223 = vmul.f32 %v104, %v1127
  %v1224 = vmul.f32 %v105, %v1131
  %v1225 = vmul.f32 %v106, %v1135
  %v1226 = vmul.f32 %v107, %v1103
  %v1227 = vmul.f32 %v108, %v1107
  %v1228 = vmul.f32 %v109, %v1111
  %v1229 = vmul.f32 %v110, %v1115
  %v1230 = vmul.f32 %v111, %v1119
  %v1231 = vmul.f32 %v112, %v1123
  %v1232 = vmul.f32 %v113, %v1127
  %v1233 = vmul.f32 %v114, %v1131
  %v1234 = vmul.f32 %v115, %v1135
  %v1235 = vmul.f32 %v116, %v1103
  %v1236 = vmul.f32 %v117, %v1107
  %v1237 = vmul.f32 %v118, %v1111
  %v1238 = vmul.f32 %v119, %v1115
  %v1239 = vmul.f32 %v120, %v1119
  %v1240 = vmul.f32 %v121, %v1123
  %v1241 = vmul.f32 %v122, %v1127
  %v1242 = vmul.f32 %v123, %v1131
  %v1243 = vmul.f32 %v124, %v1135
  %v1244 = vmul.f32 %v125, %v1103
  %v1245 = vmul.f32 %v126, %v1107
  %v1246 = vmul.f32 %v127, %v1111
  %v1247 = vmul.f32 %v128, %v1115
  %v1248 = vmul.f32 %v129, %v1119
  %v1249 = vmul.f32 %v130, %v1123
  %v1250 = vmul.f32 %v131, %v1127
  %v1251 = vmul.f32 %v132, %v1131
  %v1252 = vmul.f32 %v133, %v1135
  %v1253 = vmul.f32 %v134, %v1103
  %v1254 = vmul.f32 %v135, %v1107
  %v1255 = vmul.f32 %v136, %v1111
  %v1256 = vmul.f32 %v137, %v1115
  %v1257 = vmul.f32 %v138, %v1119
  %v1258 = vmul.f32 %v139, %v1123
  %v1259 = vmul.f32 %v140, %v1127
  %v1260 = vmul.f32 %v141, %v1131
  %v1261 = vmul.f32 %v142, %v1135
  %vm1388 = vcmask 1045504
  %v1389 = vrot.slane %v1136, 2
  %v1390 = vrot.slane %v1145, 2
  %v1391 = vsel %vm1388, %v1389, %v1390
  %v1392 = vrot.slane %v1137, 2
  %v1393 = vrot.slane %v1146, 2
  %v1394 = vsel %vm1388, %v1392, %v1393
  %v1395 = vrot.slane %v1138, 2
  %v1396 = vrot.slane %v1147, 2
  %v1397 = vsel %vm1388, %v1395, %v1396
  %v1398 = vrot.slane %v1139, 2
  %v1399 = vrot.slane %v1148, 2
  %v1400 = vsel %vm1388, %v1398, %v1399
  %v1401 = vrot.slane %v1140, 2
  %v1402 = vrot.slane %v1149, 2
  %v1403 = vsel %vm1388, %v1401, %v1402
  %v1404 = vrot.slane %v1141, 2
  %v1405 = vrot.slane %v1150, 2
  %v1406 = vsel %vm1388, %v1404, %v1405
  %v1407 = vrot.slane %v1142, 2
  %v1408 = vrot.slane %v1151, 2
  %v1409 = vsel %vm1388, %v1407, %v1408
  %v1410 = vrot.slane %v1143, 2
  %v1411 = vrot.slane %v1152, 2
  %v1412 = vsel %vm1388, %v1410, %v1411
  %v1413 = vrot.slane %v1144, 2
  %v1414 = vrot.slane %v1153, 2
  %v1415 = vsel %vm1388, %v1413, %v1414
  %v1416 = vrot.slane %v1154, 2
  %v1417 = vrot.slane %v1163, 2
  %v1418 = vsel %vm1388, %v1416, %v1417
  %v1419 = vrot.slane %v1155, 2
  %v1420 = vrot.slane %v1164, 2
  %v1421 = vsel %vm1388, %v1419, %v1420
  %v1422 = vrot.slane %v1156, 2
  %v1423 = vrot.slane %v1165, 2
  %v1424 = vsel %vm1388, %v1422, %v1423
  %v1425 = vrot.slane %v1157, 2
  %v1426 = vrot.slane %v1166, 2
  %v1427 = vsel %vm1388, %v1425, %v1426
  %v1428 = vrot.slane %v1158, 2
  %v1429 = vrot.slane %v1167, 2
  %v1430 = vsel %vm1388, %v1428, %v1429
  %v1431 = vrot.slane %v1159, 2
  %v1432 = vrot.slane %v1168, 2
  %v1433 = vsel %vm1388, %v1431, %v1432
  %v1434 = vrot.slane %v1160, 2
  %v1435 = vrot.slane %v1169, 2
  %v1436 = vsel %vm1388, %v1434, %v1435
  %v1437 = vrot.slane %v1161, 2
  %v1438 = vrot.slane %v1170, 2
  %v1439 = vsel %vm1388, %v1437, %v1438
  %v1440 = vrot.slane %v1162, 2
  %v1441 = vrot.slane %v1171, 2
  %v1442 = vsel %vm1388, %v1440, %v1441
  %v1443 = vrot.slane %v1172, 2
  %v1444 = vrot.slane %v1181, 2
  %v1445 = vsel %vm1388, %v1443, %v1444
  %v1446 = vrot.slane %v1173, 2
  %v1447 = vrot.slane %v1182, 2
  %v1448 = vsel %vm1388, %v1446, %v1447
  %v1449 = vrot.slane %v1174, 2
  %v1450 = vrot.slane %v1183, 2
  %v1451 = vsel %vm1388, %v1449, %v1450
  %v1452 = vrot.slane %v1175, 2
  %v1453 = vrot.slane %v1184, 2
  %v1454 = vsel %vm1388, %v1452, %v1453
  %v1455 = vrot.slane %v1176, 2
  %v1456 = vrot.slane %v1185, 2
  %v1457 = vsel %vm1388, %v1455, %v1456
  %v1458 = vrot.slane %v1177, 2
  %v1459 = vrot.slane %v1186, 2
  %v1460 = vsel %vm1388, %v1458, %v1459
  %v1461 = vrot.slane %v1178, 2
  %v1462 = vrot.slane %v1187, 2
  %v1463 = vsel %vm1388, %v1461, %v1462
  %v1464 = vrot.slane %v1179, 2
  %v1465 = vrot.slane %v1188, 2
  %v1466 = vsel %vm1388, %v1464, %v1465
  %v1467 = vrot.slane %v1180, 2
  %v1468 = vrot.slane %v1189, 2
  %v1469 = vsel %vm1388, %v1467, %v1468
  %v1470 = vrot.slane %v1190, 2
  %v1471 = vrot.slane %v1199, 2
  %v1472 = vsel %vm1388, %v1470, %v1471
  %v1473 = vrot.slane %v1191, 2
  %v1474 = vrot.slane %v1200, 2
  %v1475 = vsel %vm1388, %v1473, %v1474
  %v1476 = vrot.slane %v1192, 2
  %v1477 = vrot.slane %v1201, 2
  %v1478 = vsel %vm1388, %v1476, %v1477
  %v1479 = vrot.slane %v1193, 2
  %v1480 = vrot.slane %v1202, 2
  %v1481 = vsel %vm1388, %v1479, %v1480
  %v1482 = vrot.slane %v1194, 2
  %v1483 = vrot.slane %v1203, 2
  %v1484 = vsel %vm1388, %v1482, %v1483
  %v1485 = vrot.slane %v1195, 2
  %v1486 = vrot.slane %v1204, 2
  %v1487 = vsel %vm1388, %v1485, %v1486
  %v1488 = vrot.slane %v1196, 2
  %v1489 = vrot.slane %v1205, 2
  %v1490 = vsel %vm1388, %v1488, %v1489
  %v1491 = vrot.slane %v1197, 2
  %v1492 = vrot.slane %v1206, 2
  %v1493 = vsel %vm1388, %v1491, %v1492
  %v1494 = vrot.slane %v1198, 2
  %v1495 = vrot.slane %v1207, 2
  %v1496 = vsel %vm1388, %v1494, %v1495
  %v1497 = vrot.slane %v1208, 2
  %v1498 = vrot.slane %v1217, 2
  %v1499 = vsel %vm1388, %v1497, %v1498
  %v1500 = vrot.slane %v1209, 2
  %v1501 = vrot.slane %v1218, 2
  %v1502 = vsel %vm1388, %v1500, %v1501
  %v1503 = vrot.slane %v1210, 2
  %v1504 = vrot.slane %v1219, 2
  %v1505 = vsel %vm1388, %v1503, %v1504
  %v1506 = vrot.slane %v1211, 2
  %v1507 = vrot.slane %v1220, 2
  %v1508 = vsel %vm1388, %v1506, %v1507
  %v1509 = vrot.slane %v1212, 2
  %v1510 = vrot.slane %v1221, 2
  %v1511 = vsel %vm1388, %v1509, %v1510
  %v1512 = vrot.slane %v1213, 2
  %v1513 = vrot.slane %v1222, 2
  %v1514 = vsel %vm1388, %v1512, %v1513
  %v1515 = vrot.slane %v1214, 2
  %v1516 = vrot.slane %v1223, 2
  %v1517 = vsel %vm1388, %v1515, %v1516
  %v1518 = vrot.slane %v1215, 2
  %v1519 = vrot.slane %v1224, 2
  %v1520 = vsel %vm1388, %v1518, %v1519
  %v1521 = vrot.slane %v1216, 2
  %v1522 = vrot.slane %v1225, 2
  %v1523 = vsel %vm1388, %v1521, %v1522
  %v1524 = vrot.slane %v1226, 2
  %v1525 = vrot.slane %v1235, 2
  %v1526 = vsel %vm1388, %v1524, %v1525
  %v1527 = vrot.slane %v1227, 2
  %v1528 = vrot.slane %v1236, 2
  %v1529 = vsel %vm1388, %v1527, %v1528
  %v1530 = vrot.slane %v1228, 2
  %v1531 = vrot.slane %v1237, 2
  %v1532 = vsel %vm1388, %v1530, %v1531
  %v1533 = vrot.slane %v1229, 2
  %v1534 = vrot.slane %v1238, 2
  %v1535 = vsel %vm1388, %v1533, %v1534
  %v1536 = vrot.slane %v1230, 2
  %v1537 = vrot.slane %v1239, 2
  %v1538 = vsel %vm1388, %v1536, %v1537
  %v1539 = vrot.slane %v1231, 2
  %v1540 = vrot.slane %v1240, 2
  %v1541 = vsel %vm1388, %v1539, %v1540
  %v1542 = vrot.slane %v1232, 2
  %v1543 = vrot.slane %v1241, 2
  %v1544 = vsel %vm1388, %v1542, %v1543
  %v1545 = vrot.slane %v1233, 2
  %v1546 = vrot.slane %v1242, 2
  %v1547 = vsel %vm1388, %v1545, %v1546
  %v1548 = vrot.slane %v1234, 2
  %v1549 = vrot.slane %v1243, 2
  %v1550 = vsel %vm1388, %v1548, %v1549
  %v1551 = vrot.slane %v1244, 2
  %v1552 = vrot.slane %v1253, 2
  %v1553 = vsel %vm1388, %v1551, %v1552
  %v1554 = vrot.slane %v1245, 2
  %v1555 = vrot.slane %v1254, 2
  %v1556 = vsel %vm1388, %v1554, %v1555
  %v1557 = vrot.slane %v1246, 2
  %v1558 = vrot.slane %v1255, 2
  %v1559 = vsel %vm1388, %v1557, %v1558
  %v1560 = vrot.slane %v1247, 2
  %v1561 = vrot.slane %v1256, 2
  %v1562 = vsel %vm1388, %v1560, %v1561
  %v1563 = vrot.slane %v1248, 2
  %v1564 = vrot.slane %v1257, 2
  %v1565 = vsel %vm1388, %v1563, %v1564
  %v1566 = vrot.slane %v1249, 2
  %v1567 = vrot.slane %v1258, 2
  %v1568 = vsel %vm1388, %v1566, %v1567
  %v1569 = vrot.slane %v1250, 2
  %v1570 = vrot.slane %v1259, 2
  %v1571 = vsel %vm1388, %v1569, %v1570
  %v1572 = vrot.slane %v1251, 2
  %v1573 = vrot.slane %v1260, 2
  %v1574 = vsel %vm1388, %v1572, %v1573
  %v1575 = vrot.slane %v1252, 2
  %v1576 = vrot.slane %v1261, 2
  %v1577 = vsel %vm1388, %v1575, %v1576
  %v1641 = vadd.f32 %v992, %v1391
  %v1642 = vadd.f32 %v993, %v1394
  %v1643 = vadd.f32 %v994, %v1397
  %v1644 = vadd.f32 %v995, %v1400
  %v1645 = vadd.f32 %v996, %v1403
  %v1646 = vadd.f32 %v997, %v1406
  %v1647 = vadd.f32 %v998, %v1409
  %v1648 = vadd.f32 %v999, %v1412
  %v1649 = vadd.f32 %v1000, %v1415
  %v1650 = vadd.f32 %v1001, %v1418
  %v1651 = vadd.f32 %v1002, %v1421
  %v1652 = vadd.f32 %v1003, %v1424
  %v1653 = vadd.f32 %v1004, %v1427
  %v1654 = vadd.f32 %v1005, %v1430
  %v1655 = vadd.f32 %v1006, %v1433
  %v1656 = vadd.f32 %v1007, %v1436
  %v1657 = vadd.f32 %v1008, %v1439
  %v1658 = vadd.f32 %v1009, %v1442
  %v1659 = vadd.f32 %v1010, %v1445
  %v1660 = vadd.f32 %v1011, %v1448
  %v1661 = vadd.f32 %v1012, %v1451
  %v1662 = vadd.f32 %v1013, %v1454
  %v1663 = vadd.f32 %v1014, %v1457
  %v1664 = vadd.f32 %v1015, %v1460
  %v1665 = vadd.f32 %v1016, %v1463
  %v1666 = vadd.f32 %v1017, %v1466
  %v1667 = vadd.f32 %v1018, %v1469
  %v1668 = vadd.f32 %v1019, %v1472
  %v1669 = vadd.f32 %v1020, %v1475
  %v1670 = vadd.f32 %v1021, %v1478
  %v1671 = vadd.f32 %v1022, %v1481
  %v1672 = vadd.f32 %v1023, %v1484
  %v1673 = vadd.f32 %v1024, %v1487
  %v1674 = vadd.f32 %v1025, %v1490
  %v1675 = vadd.f32 %v1026, %v1493
  %v1676 = vadd.f32 %v1027, %v1496
  %v1677 = vadd.f32 %v1028, %v1499
  %v1678 = vadd.f32 %v1029, %v1502
  %v1679 = vadd.f32 %v1030, %v1505
  %v1680 = vadd.f32 %v1031, %v1508
  %v1681 = vadd.f32 %v1032, %v1511
  %v1682 = vadd.f32 %v1033, %v1514
  %v1683 = vadd.f32 %v1034, %v1517
  %v1684 = vadd.f32 %v1035, %v1520
  %v1685 = vadd.f32 %v1036, %v1523
  %v1686 = vadd.f32 %v1037, %v1526
  %v1687 = vadd.f32 %v1038, %v1529
  %v1688 = vadd.f32 %v1039, %v1532
  %v1689 = vadd.f32 %v1040, %v1535
  %v1690 = vadd.f32 %v1041, %v1538
  %v1691 = vadd.f32 %v1042, %v1541
  %v1692 = vadd.f32 %v1043, %v1544
  %v1693 = vadd.f32 %v1044, %v1547
  %v1694 = vadd.f32 %v1045, %v1550
  %v1695 = vadd.f32 %v1046, %v1553
  %v1696 = vadd.f32 %v1047, %v1556
  %v1697 = vadd.f32 %v1048, %v1559
  %v1698 = vadd.f32 %v1049, %v1562
  %v1699 = vadd.f32 %v1050, %v1565
  %v1700 = vadd.f32 %v1051, %v1568
  %v1701 = vadd.f32 %v1052, %v1571
  %v1702 = vadd.f32 %v1053, %v1574
  %v1703 = vadd.f32 %v1054, %v1577
  %v1709 = vlaneseq
  %v1710 = vshrl.u32 %v1709, 7
  %v1711 = vsub.s32 0, %v1710
  %v1712 = vrot.slane %v184, %v1711
  %v1713 = vlaneseq
  %v1714 = vshrl.u32 %v1713, 7
  %v1715 = vsub.s32 4, %v1714
  %v1716 = vrot.slane %v184, %v1715
  %v1717 = vlaneseq
  %v1718 = vshrl.u32 %v1717, 7
  %v1719 = vsub.s32 0, %v1718
  %v1720 = vrot.slane %v185, %v1719
  %v1721 = vlaneseq
  %v1722 = vshrl.u32 %v1721, 7
  %v1723 = vsub.s32 4, %v1722
  %v1724 = vrot.slane %v185, %v1723
  %v1725 = vlaneseq
  %v1726 = vshrl.u32 %v1725, 7
  %v1727 = vsub.s32 0, %v1726
  %v1728 = vrot.slane %v186, %v1727
  %v1729 = vlaneseq
  %v1730 = vshrl.u32 %v1729, 7
  %v1731 = vsub.s32 4, %v1730
  %v1732 = vrot.slane %v186, %v1731
  %v1733 = vlaneseq
  %v1734 = vshrl.u32 %v1733, 7
  %v1735 = vsub.s32 0, %v1734
  %v1736 = vrot.slane %v187, %v1735
  %v1737 = vlaneseq
  %v1738 = vshrl.u32 %v1737, 7
  %v1739 = vsub.s32 4, %v1738
  %v1740 = vrot.slane %v187, %v1739
  %v1741 = vlaneseq
  %v1742 = vshrl.u32 %v1741, 7
  %v1743 = vsub.s32 0, %v1742
  %v1744 = vrot.slane %v188, %v1743
  %v1754 = vlaneseq
  %v1755 = vshrl.u32 %v1754, 7
  %v1756 = vsub.s32 0, %v1755
  %v1757 = vrot.slane %v1712, %v1756
  %v1758 = vlaneseq
  %v1759 = vshrl.u32 %v1758, 7
  %v1760 = vsub.s32 0, %v1759
  %v1761 = vrot.slane %v1716, %v1760
  %v1762 = vlaneseq
  %v1763 = vshrl.u32 %v1762, 7
  %v1764 = vsub.s32 0, %v1763
  %v1765 = vrot.slane %v1720, %v1764
  %v1766 = vlaneseq
  %v1767 = vshrl.u32 %v1766, 7
  %v1768 = vsub.s32 0, %v1767
  %v1769 = vrot.slane %v1724, %v1768
  %v1770 = vlaneseq
  %v1771 = vshrl.u32 %v1770, 7
  %v1772 = vsub.s32 0, %v1771
  %v1773 = vrot.slane %v1728, %v1772
  %v1774 = vlaneseq
  %v1775 = vshrl.u32 %v1774, 7
  %v1776 = vsub.s32 0, %v1775
  %v1777 = vrot.slane %v1732, %v1776
  %v1778 = vlaneseq
  %v1779 = vshrl.u32 %v1778, 7
  %v1780 = vsub.s32 0, %v1779
  %v1781 = vrot.slane %v1736, %v1780
  %v1782 = vlaneseq
  %v1783 = vshrl.u32 %v1782, 7
  %v1784 = vsub.s32 0, %v1783
  %v1785 = vrot.slane %v1740, %v1784
  %v1786 = vlaneseq
  %v1787 = vshrl.u32 %v1786, 7
  %v1788 = vsub.s32 0, %v1787
  %v1789 = vrot.slane %v1744, %v1788
  %v1790 = vmul.f32 %v35, %v1757
  %v1791 = vmul.f32 %v36, %v1761
  %v1792 = vmul.f32 %v37, %v1765
  %v1793 = vmul.f32 %v38, %v1769
  %v1794 = vmul.f32 %v39, %v1773
  %v1795 = vmul.f32 %v40, %v1777
  %v1796 = vmul.f32 %v41, %v1781
  %v1797 = vmul.f32 %v42, %v1785
  %v1798 = vmul.f32 %v43, %v1789
  %v1799 = vmul.f32 %v53, %v1757
  %v1800 = vmul.f32 %v54, %v1761
  %v1801 = vmul.f32 %v55, %v1765
  %v1802 = vmul.f32 %v56, %v1769
  %v1803 = vmul.f32 %v57, %v1773
  %v1804 = vmul.f32 %v58, %v1777
  %v1805 = vmul.f32 %v59, %v1781
  %v1806 = vmul.f32 %v60, %v1785
  %v1807 = vmul.f32 %v61, %v1789
  %v1808 = vmul.f32 %v71, %v1757
  %v1809 = vmul.f32 %v72, %v1761
  %v1810 = vmul.f32 %v73, %v1765
  %v1811 = vmul.f32 %v74, %v1769
  %v1812 = vmul.f32 %v75, %v1773
  %v1813 = vmul.f32 %v76, %v1777
  %v1814 = vmul.f32 %v77, %v1781
  %v1815 = vmul.f32 %v78, %v1785
  %v1816 = vmul.f32 %v79, %v1789
  %v1817 = vmul.f32 %v89, %v1757
  %v1818 = vmul.f32 %v90, %v1761
  %v1819 = vmul.f32 %v91, %v1765
  %v1820 = vmul.f32 %v92, %v1769
  %v1821 = vmul.f32 %v93, %v1773
  %v1822 = vmul.f32 %v94, %v1777
  %v1823 = vmul.f32 %v95, %v1781
  %v1824 = vmul.f32 %v96, %v1785
  %v1825 = vmul.f32 %v97, %v1789
  %v1826 = vmul.f32 %v107, %v1757
  %v1827 = vmul.f32 %v108, %v1761
  %v1828 = vmul.f32 %v109, %v1765
  %v1829 = vmul.f32 %v110, %v1769
  %v1830 = vmul.f32 %v111, %v1773
  %v1831 = vmul.f32 %v112, %v1777
  %v1832 = vmul.f32 %v113, %v1781
  %v1833 = vmul.f32 %v114, %v1785
  %v1834 = vmul.f32 %v115, %v1789
  %v1835 = vmul.f32 %v125, %v1757
  %v1836 = vmul.f32 %v126, %v1761
  %v1837 = vmul.f32 %v127, %v1765
  %v1838 = vmul.f32 %v128, %v1769
  %v1839 = vmul.f32 %v129, %v1773
  %v1840 = vmul.f32 %v130, %v1777
  %v1841 = vmul.f32 %v131, %v1781
  %v1842 = vmul.f32 %v132, %v1785
  %v1843 = vmul.f32 %v133, %v1789
  %v1844 = vmul.f32 %v143, %v1757
  %v1845 = vmul.f32 %v144, %v1761
  %v1846 = vmul.f32 %v145, %v1765
  %v1847 = vmul.f32 %v146, %v1769
  %v1848 = vmul.f32 %v147, %v1773
  %v1849 = vmul.f32 %v148, %v1777
  %v1850 = vmul.f32 %v149, %v1781
  %v1851 = vmul.f32 %v150, %v1785
  %v1852 = vmul.f32 %v151, %v1789
  %v1853 = vadd.f32 %v1641, %v1790
  %v1854 = vadd.f32 %v1642, %v1791
  %v1855 = vadd.f32 %v1643, %v1792
  %v1856 = vadd.f32 %v1644, %v1793
  %v1857 = vadd.f32 %v1645, %v1794
  %v1858 = vadd.f32 %v1646, %v1795
  %v1859 = vadd.f32 %v1647, %v1796
  %v1860 = vadd.f32 %v1648, %v1797
  %v1861 = vadd.f32 %v1649, %v1798
  %v1862 = vadd.f32 %v1650, %v1799
  %v1863 = vadd.f32 %v1651, %v1800
  %v1864 = vadd.f32 %v1652, %v1801
  %v1865 = vadd.f32 %v1653, %v1802
  %v1866 = vadd.f32 %v1654, %v1803
  %v1867 = vadd.f32 %v1655, %v1804
  %v1868 = vadd.f32 %v1656, %v1805
  %v1869 = vadd.f32 %v1657, %v1806
  %v1870 = vadd.f32 %v1658, %v1807
  %v1871 = vadd.f32 %v1659, %v1808
  %v1872 = vadd.f32 %v1660, %v1809
  %v1873 = vadd.f32 %v1661, %v1810
  %v1874 = vadd.f32 %v1662, %v1811
  %v1875 = vadd.f32 %v1663, %v1812
  %v1876 = vadd.f32 %v1664, %v1813
  %v1877 = vadd.f32 %v1665, %v1814
  %v1878 = vadd.f32 %v1666, %v1815
  %v1879 = vadd.f32 %v1667, %v1816
  %v1880 = vadd.f32 %v1668, %v1817
  %v1881 = vadd.f32 %v1669, %v1818
  %v1882 = vadd.f32 %v1670, %v1819
  %v1883 = vadd.f32 %v1671, %v1820
  %v1884 = vadd.f32 %v1672, %v1821
  %v1885 = vadd.f32 %v1673, %v1822
  %v1886 = vadd.f32 %v1674, %v1823
  %v1887 = vadd.f32 %v1675, %v1824
  %v1888 = vadd.f32 %v1676, %v1825
  %v1889 = vadd.f32 %v1677, %v1826
  %v1890 = vadd.f32 %v1678, %v1827
  %v1891 = vadd.f32 %v1679, %v1828
  %v1892 = vadd.f32 %v1680, %v1829
  %v1893 = vadd.f32 %v1681, %v1830
  %v1894 = vadd.f32 %v1682, %v1831
  %v1895 = vadd.f32 %v1683, %v1832
  %v1896 = vadd.f32 %v1684, %v1833
  %v1897 = vadd.f32 %v1685, %v1834
  %v1898 = vadd.f32 %v1686, %v1835
  %v1899 = vadd.f32 %v1687, %v1836
  %v1900 = vadd.f32 %v1688, %v1837
  %v1901 = vadd.f32 %v1689, %v1838
  %v1902 = vadd.f32 %v1690, %v1839
  %v1903 = vadd.f32 %v1691, %v1840
  %v1904 = vadd.f32 %v1692, %v1841
  %v1905 = vadd.f32 %v1693, %v1842
  %v1906 = vadd.f32 %v1694, %v1843
  %v1907 = vadd.f32 %v1695, %v1844
  %v1908 = vadd.f32 %v1696, %v1845
  %v1909 = vadd.f32 %v1697, %v1846
  %v1910 = vadd.f32 %v1698, %v1847
  %v1911 = vadd.f32 %v1699, %v1848
  %v1912 = vadd.f32 %v1700, %v1849
  %v1913 = vadd.f32 %v1701, %v1850
  %v1914 = vadd.f32 %v1702, %v1851
  %v1915 = vadd.f32 %v1703, %v1852
  %v1916 = vlaneseq
  %v1917 = vshrl.u32 %v1916, 7
  %v1918 = vsub.s32 1, %v1917
  %v1919 = vrot.slane %v184, %v1918
  %v1920 = vlaneseq
  %v1921 = vshrl.u32 %v1920, 7
  %v1922 = vsub.s32 5, %v1921
  %v1923 = vrot.slane %v184, %v1922
  %v1924 = vlaneseq
  %v1925 = vshrl.u32 %v1924, 7
  %v1926 = vsub.s32 1, %v1925
  %v1927 = vrot.slane %v185, %v1926
  %v1928 = vlaneseq
  %v1929 = vshrl.u32 %v1928, 7
  %v1930 = vsub.s32 5, %v1929
  %v1931 = vrot.slane %v185, %v1930
  %v1932 = vlaneseq
  %v1933 = vshrl.u32 %v1932, 7
  %v1934 = vsub.s32 1, %v1933
  %v1935 = vrot.slane %v186, %v1934
  %v1936 = vlaneseq
  %v1937 = vshrl.u32 %v1936, 7
  %v1938 = vsub.s32 5, %v1937
  %v1939 = vrot.slane %v186, %v1938
  %v1940 = vlaneseq
  %v1941 = vshrl.u32 %v1940, 7
  %v1942 = vsub.s32 1, %v1941
  %v1943 = vrot.slane %v187, %v1942
  %v1944 = vlaneseq
  %v1945 = vshrl.u32 %v1944, 7
  %v1946 = vsub.s32 5, %v1945
  %v1947 = vrot.slane %v187, %v1946
  %v1948 = vlaneseq
  %v1949 = vshrl.u32 %v1948, 7
  %v1950 = vsub.s32 1, %v1949
  %v1951 = vrot.slane %v188, %v1950
  %v1961 = vlaneseq
  %v1962 = vshrl.u32 %v1961, 7
  %v1963 = vsub.s32 1, %v1962
  %v1964 = vrot.slane %v1919, %v1963
  %v1965 = vlaneseq
  %v1966 = vshrl.u32 %v1965, 7
  %v1967 = vsub.s32 1, %v1966
  %v1968 = vrot.slane %v1923, %v1967
  %v1969 = vlaneseq
  %v1970 = vshrl.u32 %v1969, 7
  %v1971 = vsub.s32 1, %v1970
  %v1972 = vrot.slane %v1927, %v1971
  %v1973 = vlaneseq
  %v1974 = vshrl.u32 %v1973, 7
  %v1975 = vsub.s32 1, %v1974
  %v1976 = vrot.slane %v1931, %v1975
  %v1977 = vlaneseq
  %v1978 = vshrl.u32 %v1977, 7
  %v1979 = vsub.s32 1, %v1978
  %v1980 = vrot.slane %v1935, %v1979
  %v1981 = vlaneseq
  %v1982 = vshrl.u32 %v1981, 7
  %v1983 = vsub.s32 1, %v1982
  %v1984 = vrot.slane %v1939, %v1983
  %v1985 = vlaneseq
  %v1986 = vshrl.u32 %v1985, 7
  %v1987 = vsub.s32 1, %v1986
  %v1988 = vrot.slane %v1943, %v1987
  %v1989 = vlaneseq
  %v1990 = vshrl.u32 %v1989, 7
  %v1991 = vsub.s32 1, %v1990
  %v1992 = vrot.slane %v1947, %v1991
  %v1993 = vlaneseq
  %v1994 = vshrl.u32 %v1993, 7
  %v1995 = vsub.s32 1, %v1994
  %v1996 = vrot.slane %v1951, %v1995
  %v1997 = vmul.f32 %v35, %v1964
  %v1998 = vmul.f32 %v36, %v1968
  %v1999 = vmul.f32 %v37, %v1972
  %v2000 = vmul.f32 %v38, %v1976
  %v2001 = vmul.f32 %v39, %v1980
  %v2002 = vmul.f32 %v40, %v1984
  %v2003 = vmul.f32 %v41, %v1988
  %v2004 = vmul.f32 %v42, %v1992
  %v2005 = vmul.f32 %v43, %v1996
  %v2006 = vmul.f32 %v44, %v1964
  %v2007 = vmul.f32 %v45, %v1968
  %v2008 = vmul.f32 %v46, %v1972
  %v2009 = vmul.f32 %v47, %v1976
  %v2010 = vmul.f32 %v48, %v1980
  %v2011 = vmul.f32 %v49, %v1984
  %v2012 = vmul.f32 %v50, %v1988
  %v2013 = vmul.f32 %v51, %v1992
  %v2014 = vmul.f32 %v52, %v1996
  %v2015 = vmul.f32 %v53, %v1964
  %v2016 = vmul.f32 %v54, %v1968
  %v2017 = vmul.f32 %v55, %v1972
  %v2018 = vmul.f32 %v56, %v1976
  %v2019 = vmul.f32 %v57, %v1980
  %v2020 = vmul.f32 %v58, %v1984
  %v2021 = vmul.f32 %v59, %v1988
  %v2022 = vmul.f32 %v60, %v1992
  %v2023 = vmul.f32 %v61, %v1996
  %v2024 = vmul.f32 %v62, %v1964
  %v2025 = vmul.f32 %v63, %v1968
  %v2026 = vmul.f32 %v64, %v1972
  %v2027 = vmul.f32 %v65, %v1976
  %v2028 = vmul.f32 %v66, %v1980
  %v2029 = vmul.f32 %v67, %v1984
  %v2030 = vmul.f32 %v68, %v1988
  %v2031 = vmul.f32 %v69, %v1992
  %v2032 = vmul.f32 %v70, %v1996
  %v2033 = vmul.f32 %v71, %v1964
  %v2034 = vmul.f32 %v72, %v1968
  %v2035 = vmul.f32 %v73, %v1972
  %v2036 = vmul.f32 %v74, %v1976
  %v2037 = vmul.f32 %v75, %v1980
  %v2038 = vmul.f32 %v76, %v1984
  %v2039 = vmul.f32 %v77, %v1988
  %v2040 = vmul.f32 %v78, %v1992
  %v2041 = vmul.f32 %v79, %v1996
  %v2042 = vmul.f32 %v80, %v1964
  %v2043 = vmul.f32 %v81, %v1968
  %v2044 = vmul.f32 %v82, %v1972
  %v2045 = vmul.f32 %v83, %v1976
  %v2046 = vmul.f32 %v84, %v1980
  %v2047 = vmul.f32 %v85, %v1984
  %v2048 = vmul.f32 %v86, %v1988
  %v2049 = vmul.f32 %v87, %v1992
  %v2050 = vmul.f32 %v88, %v1996
  %v2051 = vmul.f32 %v89, %v1964
  %v2052 = vmul.f32 %v90, %v1968
  %v2053 = vmul.f32 %v91, %v1972
  %v2054 = vmul.f32 %v92, %v1976
  %v2055 = vmul.f32 %v93, %v1980
  %v2056 = vmul.f32 %v94, %v1984
  %v2057 = vmul.f32 %v95, %v1988
  %v2058 = vmul.f32 %v96, %v1992
  %v2059 = vmul.f32 %v97, %v1996
  %v2060 = vmul.f32 %v98, %v1964
  %v2061 = vmul.f32 %v99, %v1968
  %v2062 = vmul.f32 %v100, %v1972
  %v2063 = vmul.f32 %v101, %v1976
  %v2064 = vmul.f32 %v102, %v1980
  %v2065 = vmul.f32 %v103, %v1984
  %v2066 = vmul.f32 %v104, %v1988
  %v2067 = vmul.f32 %v105, %v1992
  %v2068 = vmul.f32 %v106, %v1996
  %v2069 = vmul.f32 %v107, %v1964
  %v2070 = vmul.f32 %v108, %v1968
  %v2071 = vmul.f32 %v109, %v1972
  %v2072 = vmul.f32 %v110, %v1976
  %v2073 = vmul.f32 %v111, %v1980
  %v2074 = vmul.f32 %v112, %v1984
  %v2075 = vmul.f32 %v113, %v1988
  %v2076 = vmul.f32 %v114, %v1992
  %v2077 = vmul.f32 %v115, %v1996
  %v2078 = vmul.f32 %v116, %v1964
  %v2079 = vmul.f32 %v117, %v1968
  %v2080 = vmul.f32 %v118, %v1972
  %v2081 = vmul.f32 %v119, %v1976
  %v2082 = vmul.f32 %v120, %v1980
  %v2083 = vmul.f32 %v121, %v1984
  %v2084 = vmul.f32 %v122, %v1988
  %v2085 = vmul.f32 %v123, %v1992
  %v2086 = vmul.f32 %v124, %v1996
  %v2087 = vmul.f32 %v125, %v1964
  %v2088 = vmul.f32 %v126, %v1968
  %v2089 = vmul.f32 %v127, %v1972
  %v2090 = vmul.f32 %v128, %v1976
  %v2091 = vmul.f32 %v129, %v1980
  %v2092 = vmul.f32 %v130, %v1984
  %v2093 = vmul.f32 %v131, %v1988
  %v2094 = vmul.f32 %v132, %v1992
  %v2095 = vmul.f32 %v133, %v1996
  %v2096 = vmul.f32 %v134, %v1964
  %v2097 = vmul.f32 %v135, %v1968
  %v2098 = vmul.f32 %v136, %v1972
  %v2099 = vmul.f32 %v137, %v1976
  %v2100 = vmul.f32 %v138, %v1980
  %v2101 = vmul.f32 %v139, %v1984
  %v2102 = vmul.f32 %v140, %v1988
  %v2103 = vmul.f32 %v141, %v1992
  %v2104 = vmul.f32 %v142, %v1996
  %v2105 = vmul.f32 %v143, %v1964
  %v2106 = vmul.f32 %v144, %v1968
  %v2107 = vmul.f32 %v145, %v1972
  %v2108 = vmul.f32 %v146, %v1976
  %v2109 = vmul.f32 %v147, %v1980
  %v2110 = vmul.f32 %v148, %v1984
  %v2111 = vmul.f32 %v149, %v1988
  %v2112 = vmul.f32 %v150, %v1992
  %v2113 = vmul.f32 %v151, %v1996
  %v2114 = vmul.f32 %v152, %v1964
  %v2115 = vmul.f32 %v153, %v1968
  %v2116 = vmul.f32 %v154, %v1972
  %v2117 = vmul.f32 %v155, %v1976
  %v2118 = vmul.f32 %v156, %v1980
  %v2119 = vmul.f32 %v157, %v1984
  %v2120 = vmul.f32 %v158, %v1988
  %v2121 = vmul.f32 %v159, %v1992
  %v2122 = vmul.f32 %v160, %v1996
  %v2249 = vrot.slane %v1997, 1
  %v2250 = vrot.slane %v2006, 1
  %v2251 = vsel %vm739, %v2249, %v2250
  %v2252 = vrot.slane %v1998, 1
  %v2253 = vrot.slane %v2007, 1
  %v2254 = vsel %vm739, %v2252, %v2253
  %v2255 = vrot.slane %v1999, 1
  %v2256 = vrot.slane %v2008, 1
  %v2257 = vsel %vm739, %v2255, %v2256
  %v2258 = vrot.slane %v2000, 1
  %v2259 = vrot.slane %v2009, 1
  %v2260 = vsel %vm739, %v2258, %v2259
  %v2261 = vrot.slane %v2001, 1
  %v2262 = vrot.slane %v2010, 1
  %v2263 = vsel %vm739, %v2261, %v2262
  %v2264 = vrot.slane %v2002, 1
  %v2265 = vrot.slane %v2011, 1
  %v2266 = vsel %vm739, %v2264, %v2265
  %v2267 = vrot.slane %v2003, 1
  %v2268 = vrot.slane %v2012, 1
  %v2269 = vsel %vm739, %v2267, %v2268
  %v2270 = vrot.slane %v2004, 1
  %v2271 = vrot.slane %v2013, 1
  %v2272 = vsel %vm739, %v2270, %v2271
  %v2273 = vrot.slane %v2005, 1
  %v2274 = vrot.slane %v2014, 1
  %v2275 = vsel %vm739, %v2273, %v2274
  %v2276 = vrot.slane %v2015, 1
  %v2277 = vrot.slane %v2024, 1
  %v2278 = vsel %vm739, %v2276, %v2277
  %v2279 = vrot.slane %v2016, 1
  %v2280 = vrot.slane %v2025, 1
  %v2281 = vsel %vm739, %v2279, %v2280
  %v2282 = vrot.slane %v2017, 1
  %v2283 = vrot.slane %v2026, 1
  %v2284 = vsel %vm739, %v2282, %v2283
  %v2285 = vrot.slane %v2018, 1
  %v2286 = vrot.slane %v2027, 1
  %v2287 = vsel %vm739, %v2285, %v2286
  %v2288 = vrot.slane %v2019, 1
  %v2289 = vrot.slane %v2028, 1
  %v2290 = vsel %vm739, %v2288, %v2289
  %v2291 = vrot.slane %v2020, 1
  %v2292 = vrot.slane %v2029, 1
  %v2293 = vsel %vm739, %v2291, %v2292
  %v2294 = vrot.slane %v2021, 1
  %v2295 = vrot.slane %v2030, 1
  %v2296 = vsel %vm739, %v2294, %v2295
  %v2297 = vrot.slane %v2022, 1
  %v2298 = vrot.slane %v2031, 1
  %v2299 = vsel %vm739, %v2297, %v2298
  %v2300 = vrot.slane %v2023, 1
  %v2301 = vrot.slane %v2032, 1
  %v2302 = vsel %vm739, %v2300, %v2301
  %v2303 = vrot.slane %v2033, 1
  %v2304 = vrot.slane %v2042, 1
  %v2305 = vsel %vm739, %v2303, %v2304
  %v2306 = vrot.slane %v2034, 1
  %v2307 = vrot.slane %v2043, 1
  %v2308 = vsel %vm739, %v2306, %v2307
  %v2309 = vrot.slane %v2035, 1
  %v2310 = vrot.slane %v2044, 1
  %v2311 = vsel %vm739, %v2309, %v2310
  %v2312 = vrot.slane %v2036, 1
  %v2313 = vrot.slane %v2045, 1
  %v2314 = vsel %vm739, %v2312, %v2313
  %v2315 = vrot.slane %v2037, 1
  %v2316 = vrot.slane %v2046, 1
  %v2317 = vsel %vm739, %v2315, %v2316
  %v2318 = vrot.slane %v2038, 1
  %v2319 = vrot.slane %v2047, 1
  %v2320 = vsel %vm739, %v2318, %v2319
  %v2321 = vrot.slane %v2039, 1
  %v2322 = vrot.slane %v2048, 1
  %v2323 = vsel %vm739, %v2321, %v2322
  %v2324 = vrot.slane %v2040, 1
  %v2325 = vrot.slane %v2049, 1
  %v2326 = vsel %vm739, %v2324, %v2325
  %v2327 = vrot.slane %v2041, 1
  %v2328 = vrot.slane %v2050, 1
  %v2329 = vsel %vm739, %v2327, %v2328
  %v2330 = vrot.slane %v2051, 1
  %v2331 = vrot.slane %v2060, 1
  %v2332 = vsel %vm739, %v2330, %v2331
  %v2333 = vrot.slane %v2052, 1
  %v2334 = vrot.slane %v2061, 1
  %v2335 = vsel %vm739, %v2333, %v2334
  %v2336 = vrot.slane %v2053, 1
  %v2337 = vrot.slane %v2062, 1
  %v2338 = vsel %vm739, %v2336, %v2337
  %v2339 = vrot.slane %v2054, 1
  %v2340 = vrot.slane %v2063, 1
  %v2341 = vsel %vm739, %v2339, %v2340
  %v2342 = vrot.slane %v2055, 1
  %v2343 = vrot.slane %v2064, 1
  %v2344 = vsel %vm739, %v2342, %v2343
  %v2345 = vrot.slane %v2056, 1
  %v2346 = vrot.slane %v2065, 1
  %v2347 = vsel %vm739, %v2345, %v2346
  %v2348 = vrot.slane %v2057, 1
  %v2349 = vrot.slane %v2066, 1
  %v2350 = vsel %vm739, %v2348, %v2349
  %v2351 = vrot.slane %v2058, 1
  %v2352 = vrot.slane %v2067, 1
  %v2353 = vsel %vm739, %v2351, %v2352
  %v2354 = vrot.slane %v2059, 1
  %v2355 = vrot.slane %v2068, 1
  %v2356 = vsel %vm739, %v2354, %v2355
  %v2357 = vrot.slane %v2069, 1
  %v2358 = vrot.slane %v2078, 1
  %v2359 = vsel %vm739, %v2357, %v2358
  %v2360 = vrot.slane %v2070, 1
  %v2361 = vrot.slane %v2079, 1
  %v2362 = vsel %vm739, %v2360, %v2361
  %v2363 = vrot.slane %v2071, 1
  %v2364 = vrot.slane %v2080, 1
  %v2365 = vsel %vm739, %v2363, %v2364
  %v2366 = vrot.slane %v2072, 1
  %v2367 = vrot.slane %v2081, 1
  %v2368 = vsel %vm739, %v2366, %v2367
  %v2369 = vrot.slane %v2073, 1
  %v2370 = vrot.slane %v2082, 1
  %v2371 = vsel %vm739, %v2369, %v2370
  %v2372 = vrot.slane %v2074, 1
  %v2373 = vrot.slane %v2083, 1
  %v2374 = vsel %vm739, %v2372, %v2373
  %v2375 = vrot.slane %v2075, 1
  %v2376 = vrot.slane %v2084, 1
  %v2377 = vsel %vm739, %v2375, %v2376
  %v2378 = vrot.slane %v2076, 1
  %v2379 = vrot.slane %v2085, 1
  %v2380 = vsel %vm739, %v2378, %v2379
  %v2381 = vrot.slane %v2077, 1
  %v2382 = vrot.slane %v2086, 1
  %v2383 = vsel %vm739, %v2381, %v2382
  %v2384 = vrot.slane %v2087, 1
  %v2385 = vrot.slane %v2096, 1
  %v2386 = vsel %vm739, %v2384, %v2385
  %v2387 = vrot.slane %v2088, 1
  %v2388 = vrot.slane %v2097, 1
  %v2389 = vsel %vm739, %v2387, %v2388
  %v2390 = vrot.slane %v2089, 1
  %v2391 = vrot.slane %v2098, 1
  %v2392 = vsel %vm739, %v2390, %v2391
  %v2393 = vrot.slane %v2090, 1
  %v2394 = vrot.slane %v2099, 1
  %v2395 = vsel %vm739, %v2393, %v2394
  %v2396 = vrot.slane %v2091, 1
  %v2397 = vrot.slane %v2100, 1
  %v2398 = vsel %vm739, %v2396, %v2397
  %v2399 = vrot.slane %v2092, 1
  %v2400 = vrot.slane %v2101, 1
  %v2401 = vsel %vm739, %v2399, %v2400
  %v2402 = vrot.slane %v2093, 1
  %v2403 = vrot.slane %v2102, 1
  %v2404 = vsel %vm739, %v2402, %v2403
  %v2405 = vrot.slane %v2094, 1
  %v2406 = vrot.slane %v2103, 1
  %v2407 = vsel %vm739, %v2405, %v2406
  %v2408 = vrot.slane %v2095, 1
  %v2409 = vrot.slane %v2104, 1
  %v2410 = vsel %vm739, %v2408, %v2409
  %v2411 = vrot.slane %v2105, 1
  %v2412 = vrot.slane %v2114, 1
  %v2413 = vsel %vm739, %v2411, %v2412
  %v2414 = vrot.slane %v2106, 1
  %v2415 = vrot.slane %v2115, 1
  %v2416 = vsel %vm739, %v2414, %v2415
  %v2417 = vrot.slane %v2107, 1
  %v2418 = vrot.slane %v2116, 1
  %v2419 = vsel %vm739, %v2417, %v2418
  %v2420 = vrot.slane %v2108, 1
  %v2421 = vrot.slane %v2117, 1
  %v2422 = vsel %vm739, %v2420, %v2421
  %v2423 = vrot.slane %v2109, 1
  %v2424 = vrot.slane %v2118, 1
  %v2425 = vsel %vm739, %v2423, %v2424
  %v2426 = vrot.slane %v2110, 1
  %v2427 = vrot.slane %v2119, 1
  %v2428 = vsel %vm739, %v2426, %v2427
  %v2429 = vrot.slane %v2111, 1
  %v2430 = vrot.slane %v2120, 1
  %v2431 = vsel %vm739, %v2429, %v2430
  %v2432 = vrot.slane %v2112, 1
  %v2433 = vrot.slane %v2121, 1
  %v2434 = vsel %vm739, %v2432, %v2433
  %v2435 = vrot.slane %v2113, 1
  %v2436 = vrot.slane %v2122, 1
  %v2437 = vsel %vm739, %v2435, %v2436
  %v2501 = vadd.f32 %v1853, %v2251
  %v2502 = vadd.f32 %v1854, %v2254
  %v2503 = vadd.f32 %v1855, %v2257
  %v2504 = vadd.f32 %v1856, %v2260
  %v2505 = vadd.f32 %v1857, %v2263
  %v2506 = vadd.f32 %v1858, %v2266
  %v2507 = vadd.f32 %v1859, %v2269
  %v2508 = vadd.f32 %v1860, %v2272
  %v2509 = vadd.f32 %v1861, %v2275
  %v2510 = vadd.f32 %v1862, %v2278
  %v2511 = vadd.f32 %v1863, %v2281
  %v2512 = vadd.f32 %v1864, %v2284
  %v2513 = vadd.f32 %v1865, %v2287
  %v2514 = vadd.f32 %v1866, %v2290
  %v2515 = vadd.f32 %v1867, %v2293
  %v2516 = vadd.f32 %v1868, %v2296
  %v2517 = vadd.f32 %v1869, %v2299
  %v2518 = vadd.f32 %v1870, %v2302
  %v2519 = vadd.f32 %v1871, %v2305
  %v2520 = vadd.f32 %v1872, %v2308
  %v2521 = vadd.f32 %v1873, %v2311
  %v2522 = vadd.f32 %v1874, %v2314
  %v2523 = vadd.f32 %v1875, %v2317
  %v2524 = vadd.f32 %v1876, %v2320
  %v2525 = vadd.f32 %v1877, %v2323
  %v2526 = vadd.f32 %v1878, %v2326
  %v2527 = vadd.f32 %v1879, %v2329
  %v2528 = vadd.f32 %v1880, %v2332
  %v2529 = vadd.f32 %v1881, %v2335
  %v2530 = vadd.f32 %v1882, %v2338
  %v2531 = vadd.f32 %v1883, %v2341
  %v2532 = vadd.f32 %v1884, %v2344
  %v2533 = vadd.f32 %v1885, %v2347
  %v2534 = vadd.f32 %v1886, %v2350
  %v2535 = vadd.f32 %v1887, %v2353
  %v2536 = vadd.f32 %v1888, %v2356
  %v2537 = vadd.f32 %v1889, %v2359
  %v2538 = vadd.f32 %v1890, %v2362
  %v2539 = vadd.f32 %v1891, %v2365
  %v2540 = vadd.f32 %v1892, %v2368
  %v2541 = vadd.f32 %v1893, %v2371
  %v2542 = vadd.f32 %v1894, %v2374
  %v2543 = vadd.f32 %v1895, %v2377
  %v2544 = vadd.f32 %v1896, %v2380
  %v2545 = vadd.f32 %v1897, %v2383
  %v2546 = vadd.f32 %v1898, %v2386
  %v2547 = vadd.f32 %v1899, %v2389
  %v2548 = vadd.f32 %v1900, %v2392
  %v2549 = vadd.f32 %v1901, %v2395
  %v2550 = vadd.f32 %v1902, %v2398
  %v2551 = vadd.f32 %v1903, %v2401
  %v2552 = vadd.f32 %v1904, %v2404
  %v2553 = vadd.f32 %v1905, %v2407
  %v2554 = vadd.f32 %v1906, %v2410
  %v2555 = vadd.f32 %v1907, %v2413
  %v2556 = vadd.f32 %v1908, %v2416
  %v2557 = vadd.f32 %v1909, %v2419
  %v2558 = vadd.f32 %v1910, %v2422
  %v2559 = vadd.f32 %v1911, %v2425
  %v2560 = vadd.f32 %v1912, %v2428
  %v2561 = vadd.f32 %v1913, %v2431
  %v2562 = vadd.f32 %v1914, %v2434
  %v2563 = vadd.f32 %v1915, %v2437
  %v2564 = vlaneseq
  %v2565 = vshrl.u32 %v2564, 7
  %v2566 = vsub.s32 2, %v2565
  %v2567 = vrot.slane %v184, %v2566
  %v2568 = vlaneseq
  %v2569 = vshrl.u32 %v2568, 7
  %v2570 = vsub.s32 6, %v2569
  %v2571 = vrot.slane %v184, %v2570
  %v2572 = vlaneseq
  %v2573 = vshrl.u32 %v2572, 7
  %v2574 = vsub.s32 2, %v2573
  %v2575 = vrot.slane %v185, %v2574
  %v2576 = vlaneseq
  %v2577 = vshrl.u32 %v2576, 7
  %v2578 = vsub.s32 6, %v2577
  %v2579 = vrot.slane %v185, %v2578
  %v2580 = vlaneseq
  %v2581 = vshrl.u32 %v2580, 7
  %v2582 = vsub.s32 2, %v2581
  %v2583 = vrot.slane %v186, %v2582
  %v2584 = vlaneseq
  %v2585 = vshrl.u32 %v2584, 7
  %v2586 = vsub.s32 6, %v2585
  %v2587 = vrot.slane %v186, %v2586
  %v2588 = vlaneseq
  %v2589 = vshrl.u32 %v2588, 7
  %v2590 = vsub.s32 2, %v2589
  %v2591 = vrot.slane %v187, %v2590
  %v2592 = vlaneseq
  %v2593 = vshrl.u32 %v2592, 7
  %v2594 = vsub.s32 6, %v2593
  %v2595 = vrot.slane %v187, %v2594
  %v2596 = vlaneseq
  %v2597 = vshrl.u32 %v2596, 7
  %v2598 = vsub.s32 2, %v2597
  %v2599 = vrot.slane %v188, %v2598
  %v2609 = vlaneseq
  %v2610 = vshrl.u32 %v2609, 7
  %v2611 = vsub.s32 2, %v2610
  %v2612 = vrot.slane %v2567, %v2611
  %v2613 = vlaneseq
  %v2614 = vshrl.u32 %v2613, 7
  %v2615 = vsub.s32 2, %v2614
  %v2616 = vrot.slane %v2571, %v2615
  %v2617 = vlaneseq
  %v2618 = vshrl.u32 %v2617, 7
  %v2619 = vsub.s32 2, %v2618
  %v2620 = vrot.slane %v2575, %v2619
  %v2621 = vlaneseq
  %v2622 = vshrl.u32 %v2621, 7
  %v2623 = vsub.s32 2, %v2622
  %v2624 = vrot.slane %v2579, %v2623
  %v2625 = vlaneseq
  %v2626 = vshrl.u32 %v2625, 7
  %v2627 = vsub.s32 2, %v2626
  %v2628 = vrot.slane %v2583, %v2627
  %v2629 = vlaneseq
  %v2630 = vshrl.u32 %v2629, 7
  %v2631 = vsub.s32 2, %v2630
  %v2632 = vrot.slane %v2587, %v2631
  %v2633 = vlaneseq
  %v2634 = vshrl.u32 %v2633, 7
  %v2635 = vsub.s32 2, %v2634
  %v2636 = vrot.slane %v2591, %v2635
  %v2637 = vlaneseq
  %v2638 = vshrl.u32 %v2637, 7
  %v2639 = vsub.s32 2, %v2638
  %v2640 = vrot.slane %v2595, %v2639
  %v2641 = vlaneseq
  %v2642 = vshrl.u32 %v2641, 7
  %v2643 = vsub.s32 2, %v2642
  %v2644 = vrot.slane %v2599, %v2643
  %v2645 = vmul.f32 %v35, %v2612
  %v2646 = vmul.f32 %v36, %v2616
  %v2647 = vmul.f32 %v37, %v2620
  %v2648 = vmul.f32 %v38, %v2624
  %v2649 = vmul.f32 %v39, %v2628
  %v2650 = vmul.f32 %v40, %v2632
  %v2651 = vmul.f32 %v41, %v2636
  %v2652 = vmul.f32 %v42, %v2640
  %v2653 = vmul.f32 %v43, %v2644
  %v2654 = vmul.f32 %v44, %v2612
  %v2655 = vmul.f32 %v45, %v2616
  %v2656 = vmul.f32 %v46, %v2620
  %v2657 = vmul.f32 %v47, %v2624
  %v2658 = vmul.f32 %v48, %v2628
  %v2659 = vmul.f32 %v49, %v2632
  %v2660 = vmul.f32 %v50, %v2636
  %v2661 = vmul.f32 %v51, %v2640
  %v2662 = vmul.f32 %v52, %v2644
  %v2663 = vmul.f32 %v53, %v2612
  %v2664 = vmul.f32 %v54, %v2616
  %v2665 = vmul.f32 %v55, %v2620
  %v2666 = vmul.f32 %v56, %v2624
  %v2667 = vmul.f32 %v57, %v2628
  %v2668 = vmul.f32 %v58, %v2632
  %v2669 = vmul.f32 %v59, %v2636
  %v2670 = vmul.f32 %v60, %v2640
  %v2671 = vmul.f32 %v61, %v2644
  %v2672 = vmul.f32 %v62, %v2612
  %v2673 = vmul.f32 %v63, %v2616
  %v2674 = vmul.f32 %v64, %v2620
  %v2675 = vmul.f32 %v65, %v2624
  %v2676 = vmul.f32 %v66, %v2628
  %v2677 = vmul.f32 %v67, %v2632
  %v2678 = vmul.f32 %v68, %v2636
  %v2679 = vmul.f32 %v69, %v2640
  %v2680 = vmul.f32 %v70, %v2644
  %v2681 = vmul.f32 %v71, %v2612
  %v2682 = vmul.f32 %v72, %v2616
  %v2683 = vmul.f32 %v73, %v2620
  %v2684 = vmul.f32 %v74, %v2624
  %v2685 = vmul.f32 %v75, %v2628
  %v2686 = vmul.f32 %v76, %v2632
  %v2687 = vmul.f32 %v77, %v2636
  %v2688 = vmul.f32 %v78, %v2640
  %v2689 = vmul.f32 %v79, %v2644
  %v2690 = vmul.f32 %v80, %v2612
  %v2691 = vmul.f32 %v81, %v2616
  %v2692 = vmul.f32 %v82, %v2620
  %v2693 = vmul.f32 %v83, %v2624
  %v2694 = vmul.f32 %v84, %v2628
  %v2695 = vmul.f32 %v85, %v2632
  %v2696 = vmul.f32 %v86, %v2636
  %v2697 = vmul.f32 %v87, %v2640
  %v2698 = vmul.f32 %v88, %v2644
  %v2699 = vmul.f32 %v89, %v2612
  %v2700 = vmul.f32 %v90, %v2616
  %v2701 = vmul.f32 %v91, %v2620
  %v2702 = vmul.f32 %v92, %v2624
  %v2703 = vmul.f32 %v93, %v2628
  %v2704 = vmul.f32 %v94, %v2632
  %v2705 = vmul.f32 %v95, %v2636
  %v2706 = vmul.f32 %v96, %v2640
  %v2707 = vmul.f32 %v97, %v2644
  %v2708 = vmul.f32 %v98, %v2612
  %v2709 = vmul.f32 %v99, %v2616
  %v2710 = vmul.f32 %v100, %v2620
  %v2711 = vmul.f32 %v101, %v2624
  %v2712 = vmul.f32 %v102, %v2628
  %v2713 = vmul.f32 %v103, %v2632
  %v2714 = vmul.f32 %v104, %v2636
  %v2715 = vmul.f32 %v105, %v2640
  %v2716 = vmul.f32 %v106, %v2644
  %v2717 = vmul.f32 %v107, %v2612
  %v2718 = vmul.f32 %v108, %v2616
  %v2719 = vmul.f32 %v109, %v2620
  %v2720 = vmul.f32 %v110, %v2624
  %v2721 = vmul.f32 %v111, %v2628
  %v2722 = vmul.f32 %v112, %v2632
  %v2723 = vmul.f32 %v113, %v2636
  %v2724 = vmul.f32 %v114, %v2640
  %v2725 = vmul.f32 %v115, %v2644
  %v2726 = vmul.f32 %v116, %v2612
  %v2727 = vmul.f32 %v117, %v2616
  %v2728 = vmul.f32 %v118, %v2620
  %v2729 = vmul.f32 %v119, %v2624
  %v2730 = vmul.f32 %v120, %v2628
  %v2731 = vmul.f32 %v121, %v2632
  %v2732 = vmul.f32 %v122, %v2636
  %v2733 = vmul.f32 %v123, %v2640
  %v2734 = vmul.f32 %v124, %v2644
  %v2735 = vmul.f32 %v125, %v2612
  %v2736 = vmul.f32 %v126, %v2616
  %v2737 = vmul.f32 %v127, %v2620
  %v2738 = vmul.f32 %v128, %v2624
  %v2739 = vmul.f32 %v129, %v2628
  %v2740 = vmul.f32 %v130, %v2632
  %v2741 = vmul.f32 %v131, %v2636
  %v2742 = vmul.f32 %v132, %v2640
  %v2743 = vmul.f32 %v133, %v2644
  %v2744 = vmul.f32 %v134, %v2612
  %v2745 = vmul.f32 %v135, %v2616
  %v2746 = vmul.f32 %v136, %v2620
  %v2747 = vmul.f32 %v137, %v2624
  %v2748 = vmul.f32 %v138, %v2628
  %v2749 = vmul.f32 %v139, %v2632
  %v2750 = vmul.f32 %v140, %v2636
  %v2751 = vmul.f32 %v141, %v2640
  %v2752 = vmul.f32 %v142, %v2644
  %v2753 = vmul.f32 %v143, %v2612
  %v2754 = vmul.f32 %v144, %v2616
  %v2755 = vmul.f32 %v145, %v2620
  %v2756 = vmul.f32 %v146, %v2624
  %v2757 = vmul.f32 %v147, %v2628
  %v2758 = vmul.f32 %v148, %v2632
  %v2759 = vmul.f32 %v149, %v2636
  %v2760 = vmul.f32 %v150, %v2640
  %v2761 = vmul.f32 %v151, %v2644
  %v2762 = vmul.f32 %v152, %v2612
  %v2763 = vmul.f32 %v153, %v2616
  %v2764 = vmul.f32 %v154, %v2620
  %v2765 = vmul.f32 %v155, %v2624
  %v2766 = vmul.f32 %v156, %v2628
  %v2767 = vmul.f32 %v157, %v2632
  %v2768 = vmul.f32 %v158, %v2636
  %v2769 = vmul.f32 %v159, %v2640
  %v2770 = vmul.f32 %v160, %v2644
  %v2897 = vrot.slane %v2645, 2
  %v2898 = vrot.slane %v2654, 2
  %v2899 = vsel %vm1388, %v2897, %v2898
  %v2900 = vrot.slane %v2646, 2
  %v2901 = vrot.slane %v2655, 2
  %v2902 = vsel %vm1388, %v2900, %v2901
  %v2903 = vrot.slane %v2647, 2
  %v2904 = vrot.slane %v2656, 2
  %v2905 = vsel %vm1388, %v2903, %v2904
  %v2906 = vrot.slane %v2648, 2
  %v2907 = vrot.slane %v2657, 2
  %v2908 = vsel %vm1388, %v2906, %v2907
  %v2909 = vrot.slane %v2649, 2
  %v2910 = vrot.slane %v2658, 2
  %v2911 = vsel %vm1388, %v2909, %v2910
  %v2912 = vrot.slane %v2650, 2
  %v2913 = vrot.slane %v2659, 2
  %v2914 = vsel %vm1388, %v2912, %v2913
  %v2915 = vrot.slane %v2651, 2
  %v2916 = vrot.slane %v2660, 2
  %v2917 = vsel %vm1388, %v2915, %v2916
  %v2918 = vrot.slane %v2652, 2
  %v2919 = vrot.slane %v2661, 2
  %v2920 = vsel %vm1388, %v2918, %v2919
  %v2921 = vrot.slane %v2653, 2
  %v2922 = vrot.slane %v2662, 2
  %v2923 = vsel %vm1388, %v2921, %v2922
  %v2924 = vrot.slane %v2663, 2
  %v2925 = vrot.slane %v2672, 2
  %v2926 = vsel %vm1388, %v2924, %v2925
  %v2927 = vrot.slane %v2664, 2
  %v2928 = vrot.slane %v2673, 2
  %v2929 = vsel %vm1388, %v2927, %v2928
  %v2930 = vrot.slane %v2665, 2
  %v2931 = vrot.slane %v2674, 2
  %v2932 = vsel %vm1388, %v2930, %v2931
  %v2933 = vrot.slane %v2666, 2
  %v2934 = vrot.slane %v2675, 2
  %v2935 = vsel %vm1388, %v2933, %v2934
  %v2936 = vrot.slane %v2667, 2
  %v2937 = vrot.slane %v2676, 2
  %v2938 = vsel %vm1388, %v2936, %v2937
  %v2939 = vrot.slane %v2668, 2
  %v2940 = vrot.slane %v2677, 2
  %v2941 = vsel %vm1388, %v2939, %v2940
  %v2942 = vrot.slane %v2669, 2
  %v2943 = vrot.slane %v2678, 2
  %v2944 = vsel %vm1388, %v2942, %v2943
  %v2945 = vrot.slane %v2670, 2
  %v2946 = vrot.slane %v2679, 2
  %v2947 = vsel %vm1388, %v2945, %v2946
  %v2948 = vrot.slane %v2671, 2
  %v2949 = vrot.slane %v2680, 2
  %v2950 = vsel %vm1388, %v2948, %v2949
  %v2951 = vrot.slane %v2681, 2
  %v2952 = vrot.slane %v2690, 2
  %v2953 = vsel %vm1388, %v2951, %v2952
  %v2954 = vrot.slane %v2682, 2
  %v2955 = vrot.slane %v2691, 2
  %v2956 = vsel %vm1388, %v2954, %v2955
  %v2957 = vrot.slane %v2683, 2
  %v2958 = vrot.slane %v2692, 2
  %v2959 = vsel %vm1388, %v2957, %v2958
  %v2960 = vrot.slane %v2684, 2
  %v2961 = vrot.slane %v2693, 2
  %v2962 = vsel %vm1388, %v2960, %v2961
  %v2963 = vrot.slane %v2685, 2
  %v2964 = vrot.slane %v2694, 2
  %v2965 = vsel %vm1388, %v2963, %v2964
  %v2966 = vrot.slane %v2686, 2
  %v2967 = vrot.slane %v2695, 2
  %v2968 = vsel %vm1388, %v2966, %v2967
  %v2969 = vrot.slane %v2687, 2
  %v2970 = vrot.slane %v2696, 2
  %v2971 = vsel %vm1388, %v2969, %v2970
  %v2972 = vrot.slane %v2688, 2
  %v2973 = vrot.slane %v2697, 2
  %v2974 = vsel %vm1388, %v2972, %v2973
  %v2975 = vrot.slane %v2689, 2
  %v2976 = vrot.slane %v2698, 2
  %v2977 = vsel %vm1388, %v2975, %v2976
  %v2978 = vrot.slane %v2699, 2
  %v2979 = vrot.slane %v2708, 2
  %v2980 = vsel %vm1388, %v2978, %v2979
  %v2981 = vrot.slane %v2700, 2
  %v2982 = vrot.slane %v2709, 2
  %v2983 = vsel %vm1388, %v2981, %v2982
  %v2984 = vrot.slane %v2701, 2
  %v2985 = vrot.slane %v2710, 2
  %v2986 = vsel %vm1388, %v2984, %v2985
  %v2987 = vrot.slane %v2702, 2
  %v2988 = vrot.slane %v2711, 2
  %v2989 = vsel %vm1388, %v2987, %v2988
  %v2990 = vrot.slane %v2703, 2
  %v2991 = vrot.slane %v2712, 2
  %v2992 = vsel %vm1388, %v2990, %v2991
  %v2993 = vrot.slane %v2704, 2
  %v2994 = vrot.slane %v2713, 2
  %v2995 = vsel %vm1388, %v2993, %v2994
  %v2996 = vrot.slane %v2705, 2
  %v2997 = vrot.slane %v2714, 2
  %v2998 = vsel %vm1388, %v2996, %v2997
  %v2999 = vrot.slane %v2706, 2
  %v3000 = vrot.slane %v2715, 2
  %v3001 = vsel %vm1388, %v2999, %v3000
  %v3002 = vrot.slane %v2707, 2
  %v3003 = vrot.slane %v2716, 2
  %v3004 = vsel %vm1388, %v3002, %v3003
  %v3005 = vrot.slane %v2717, 2
  %v3006 = vrot.slane %v2726, 2
  %v3007 = vsel %vm1388, %v3005, %v3006
  %v3008 = vrot.slane %v2718, 2
  %v3009 = vrot.slane %v2727, 2
  %v3010 = vsel %vm1388, %v3008, %v3009
  %v3011 = vrot.slane %v2719, 2
  %v3012 = vrot.slane %v2728, 2
  %v3013 = vsel %vm1388, %v3011, %v3012
  %v3014 = vrot.slane %v2720, 2
  %v3015 = vrot.slane %v2729, 2
  %v3016 = vsel %vm1388, %v3014, %v3015
  %v3017 = vrot.slane %v2721, 2
  %v3018 = vrot.slane %v2730, 2
  %v3019 = vsel %vm1388, %v3017, %v3018
  %v3020 = vrot.slane %v2722, 2
  %v3021 = vrot.slane %v2731, 2
  %v3022 = vsel %vm1388, %v3020, %v3021
  %v3023 = vrot.slane %v2723, 2
  %v3024 = vrot.slane %v2732, 2
  %v3025 = vsel %vm1388, %v3023, %v3024
  %v3026 = vrot.slane %v2724, 2
  %v3027 = vrot.slane %v2733, 2
  %v3028 = vsel %vm1388, %v3026, %v3027
  %v3029 = vrot.slane %v2725, 2
  %v3030 = vrot.slane %v2734, 2
  %v3031 = vsel %vm1388, %v3029, %v3030
  %v3032 = vrot.slane %v2735, 2
  %v3033 = vrot.slane %v2744, 2
  %v3034 = vsel %vm1388, %v3032, %v3033
  %v3035 = vrot.slane %v2736, 2
  %v3036 = vrot.slane %v2745, 2
  %v3037 = vsel %vm1388, %v3035, %v3036
  %v3038 = vrot.slane %v2737, 2
  %v3039 = vrot.slane %v2746, 2
  %v3040 = vsel %vm1388, %v3038, %v3039
  %v3041 = vrot.slane %v2738, 2
  %v3042 = vrot.slane %v2747, 2
  %v3043 = vsel %vm1388, %v3041, %v3042
  %v3044 = vrot.slane %v2739, 2
  %v3045 = vrot.slane %v2748, 2
  %v3046 = vsel %vm1388, %v3044, %v3045
  %v3047 = vrot.slane %v2740, 2
  %v3048 = vrot.slane %v2749, 2
  %v3049 = vsel %vm1388, %v3047, %v3048
  %v3050 = vrot.slane %v2741, 2
  %v3051 = vrot.slane %v2750, 2
  %v3052 = vsel %vm1388, %v3050, %v3051
  %v3053 = vrot.slane %v2742, 2
  %v3054 = vrot.slane %v2751, 2
  %v3055 = vsel %vm1388, %v3053, %v3054
  %v3056 = vrot.slane %v2743, 2
  %v3057 = vrot.slane %v2752, 2
  %v3058 = vsel %vm1388, %v3056, %v3057
  %v3059 = vrot.slane %v2753, 2
  %v3060 = vrot.slane %v2762, 2
  %v3061 = vsel %vm1388, %v3059, %v3060
  %v3062 = vrot.slane %v2754, 2
  %v3063 = vrot.slane %v2763, 2
  %v3064 = vsel %vm1388, %v3062, %v3063
  %v3065 = vrot.slane %v2755, 2
  %v3066 = vrot.slane %v2764, 2
  %v3067 = vsel %vm1388, %v3065, %v3066
  %v3068 = vrot.slane %v2756, 2
  %v3069 = vrot.slane %v2765, 2
  %v3070 = vsel %vm1388, %v3068, %v3069
  %v3071 = vrot.slane %v2757, 2
  %v3072 = vrot.slane %v2766, 2
  %v3073 = vsel %vm1388, %v3071, %v3072
  %v3074 = vrot.slane %v2758, 2
  %v3075 = vrot.slane %v2767, 2
  %v3076 = vsel %vm1388, %v3074, %v3075
  %v3077 = vrot.slane %v2759, 2
  %v3078 = vrot.slane %v2768, 2
  %v3079 = vsel %vm1388, %v3077, %v3078
  %v3080 = vrot.slane %v2760, 2
  %v3081 = vrot.slane %v2769, 2
  %v3082 = vsel %vm1388, %v3080, %v3081
  %v3083 = vrot.slane %v2761, 2
  %v3084 = vrot.slane %v2770, 2
  %v3085 = vsel %vm1388, %v3083, %v3084
  %v3149 = vadd.f32 %v2501, %v2899
  %v3150 = vadd.f32 %v2502, %v2902
  %v3151 = vadd.f32 %v2503, %v2905
  %v3152 = vadd.f32 %v2504, %v2908
  %v3153 = vadd.f32 %v2505, %v2911
  %v3154 = vadd.f32 %v2506, %v2914
  %v3155 = vadd.f32 %v2507, %v2917
  %v3156 = vadd.f32 %v2508, %v2920
  %v3157 = vadd.f32 %v2509, %v2923
  %v3158 = vadd.f32 %v2510, %v2926
  %v3159 = vadd.f32 %v2511, %v2929
  %v3160 = vadd.f32 %v2512, %v2932
  %v3161 = vadd.f32 %v2513, %v2935
  %v3162 = vadd.f32 %v2514, %v2938
  %v3163 = vadd.f32 %v2515, %v2941
  %v3164 = vadd.f32 %v2516, %v2944
  %v3165 = vadd.f32 %v2517, %v2947
  %v3166 = vadd.f32 %v2518, %v2950
  %v3167 = vadd.f32 %v2519, %v2953
  %v3168 = vadd.f32 %v2520, %v2956
  %v3169 = vadd.f32 %v2521, %v2959
  %v3170 = vadd.f32 %v2522, %v2962
  %v3171 = vadd.f32 %v2523, %v2965
  %v3172 = vadd.f32 %v2524, %v2968
  %v3173 = vadd.f32 %v2525, %v2971
  %v3174 = vadd.f32 %v2526, %v2974
  %v3175 = vadd.f32 %v2527, %v2977
  %v3176 = vadd.f32 %v2528, %v2980
  %v3177 = vadd.f32 %v2529, %v2983
  %v3178 = vadd.f32 %v2530, %v2986
  %v3179 = vadd.f32 %v2531, %v2989
  %v3180 = vadd.f32 %v2532, %v2992
  %v3181 = vadd.f32 %v2533, %v2995
  %v3182 = vadd.f32 %v2534, %v2998
  %v3183 = vadd.f32 %v2535, %v3001
  %v3184 = vadd.f32 %v2536, %v3004
  %v3185 = vadd.f32 %v2537, %v3007
  %v3186 = vadd.f32 %v2538, %v3010
  %v3187 = vadd.f32 %v2539, %v3013
  %v3188 = vadd.f32 %v2540, %v3016
  %v3189 = vadd.f32 %v2541, %v3019
  %v3190 = vadd.f32 %v2542, %v3022
  %v3191 = vadd.f32 %v2543, %v3025
  %v3192 = vadd.f32 %v2544, %v3028
  %v3193 = vadd.f32 %v2545, %v3031
  %v3194 = vadd.f32 %v2546, %v3034
  %v3195 = vadd.f32 %v2547, %v3037
  %v3196 = vadd.f32 %v2548, %v3040
  %v3197 = vadd.f32 %v2549, %v3043
  %v3198 = vadd.f32 %v2550, %v3046
  %v3199 = vadd.f32 %v2551, %v3049
  %v3200 = vadd.f32 %v2552, %v3052
  %v3201 = vadd.f32 %v2553, %v3055
  %v3202 = vadd.f32 %v2554, %v3058
  %v3203 = vadd.f32 %v2555, %v3061
  %v3204 = vadd.f32 %v2556, %v3064
  %v3205 = vadd.f32 %v2557, %v3067
  %v3206 = vadd.f32 %v2558, %v3070
  %v3207 = vadd.f32 %v2559, %v3073
  %v3208 = vadd.f32 %v2560, %v3076
  %v3209 = vadd.f32 %v2561, %v3079
  %v3210 = vadd.f32 %v2562, %v3082
  %v3211 = vadd.f32 %v2563, %v3085
  %v3217 = vlaneseq
  %v3218 = vshrl.u32 %v3217, 7
  %v3219 = vsub.s32 0, %v3218
  %v3220 = vrot.slane %v189, %v3219
  %v3221 = vlaneseq
  %v3222 = vshrl.u32 %v3221, 7
  %v3223 = vsub.s32 4, %v3222
  %v3224 = vrot.slane %v189, %v3223
  %v3225 = vlaneseq
  %v3226 = vshrl.u32 %v3225, 7
  %v3227 = vsub.s32 0, %v3226
  %v3228 = vrot.slane %v190, %v3227
  %v3229 = vlaneseq
  %v3230 = vshrl.u32 %v3229, 7
  %v3231 = vsub.s32 4, %v3230
  %v3232 = vrot.slane %v190, %v3231
  %v3233 = vlaneseq
  %v3234 = vshrl.u32 %v3233, 7
  %v3235 = vsub.s32 0, %v3234
  %v3236 = vrot.slane %v191, %v3235
  %v3237 = vlaneseq
  %v3238 = vshrl.u32 %v3237, 7
  %v3239 = vsub.s32 4, %v3238
  %v3240 = vrot.slane %v191, %v3239
  %v3241 = vlaneseq
  %v3242 = vshrl.u32 %v3241, 7
  %v3243 = vsub.s32 0, %v3242
  %v3244 = vrot.slane %v192, %v3243
  %v3245 = vlaneseq
  %v3246 = vshrl.u32 %v3245, 7
  %v3247 = vsub.s32 4, %v3246
  %v3248 = vrot.slane %v192, %v3247
  %v3249 = vlaneseq
  %v3250 = vshrl.u32 %v3249, 7
  %v3251 = vsub.s32 0, %v3250
  %v3252 = vrot.slane %v193, %v3251
  %v3262 = vlaneseq
  %v3263 = vshrl.u32 %v3262, 7
  %v3264 = vsub.s32 0, %v3263
  %v3265 = vrot.slane %v3220, %v3264
  %v3266 = vlaneseq
  %v3267 = vshrl.u32 %v3266, 7
  %v3268 = vsub.s32 0, %v3267
  %v3269 = vrot.slane %v3224, %v3268
  %v3270 = vlaneseq
  %v3271 = vshrl.u32 %v3270, 7
  %v3272 = vsub.s32 0, %v3271
  %v3273 = vrot.slane %v3228, %v3272
  %v3274 = vlaneseq
  %v3275 = vshrl.u32 %v3274, 7
  %v3276 = vsub.s32 0, %v3275
  %v3277 = vrot.slane %v3232, %v3276
  %v3278 = vlaneseq
  %v3279 = vshrl.u32 %v3278, 7
  %v3280 = vsub.s32 0, %v3279
  %v3281 = vrot.slane %v3236, %v3280
  %v3282 = vlaneseq
  %v3283 = vshrl.u32 %v3282, 7
  %v3284 = vsub.s32 0, %v3283
  %v3285 = vrot.slane %v3240, %v3284
  %v3286 = vlaneseq
  %v3287 = vshrl.u32 %v3286, 7
  %v3288 = vsub.s32 0, %v3287
  %v3289 = vrot.slane %v3244, %v3288
  %v3290 = vlaneseq
  %v3291 = vshrl.u32 %v3290, 7
  %v3292 = vsub.s32 0, %v3291
  %v3293 = vrot.slane %v3248, %v3292
  %v3294 = vlaneseq
  %v3295 = vshrl.u32 %v3294, 7
  %v3296 = vsub.s32 0, %v3295
  %v3297 = vrot.slane %v3252, %v3296
  %v3298 = vmul.f32 %v53, %v3265
  %v3299 = vmul.f32 %v54, %v3269
  %v3300 = vmul.f32 %v55, %v3273
  %v3301 = vmul.f32 %v56, %v3277
  %v3302 = vmul.f32 %v57, %v3281
  %v3303 = vmul.f32 %v58, %v3285
  %v3304 = vmul.f32 %v59, %v3289
  %v3305 = vmul.f32 %v60, %v3293
  %v3306 = vmul.f32 %v61, %v3297
  %v3307 = vmul.f32 %v71, %v3265
  %v3308 = vmul.f32 %v72, %v3269
  %v3309 = vmul.f32 %v73, %v3273
  %v3310 = vmul.f32 %v74, %v3277
  %v3311 = vmul.f32 %v75, %v3281
  %v3312 = vmul.f32 %v76, %v3285
  %v3313 = vmul.f32 %v77, %v3289
  %v3314 = vmul.f32 %v78, %v3293
  %v3315 = vmul.f32 %v79, %v3297
  %v3316 = vmul.f32 %v89, %v3265
  %v3317 = vmul.f32 %v90, %v3269
  %v3318 = vmul.f32 %v91, %v3273
  %v3319 = vmul.f32 %v92, %v3277
  %v3320 = vmul.f32 %v93, %v3281
  %v3321 = vmul.f32 %v94, %v3285
  %v3322 = vmul.f32 %v95, %v3289
  %v3323 = vmul.f32 %v96, %v3293
  %v3324 = vmul.f32 %v97, %v3297
  %v3325 = vmul.f32 %v107, %v3265
  %v3326 = vmul.f32 %v108, %v3269
  %v3327 = vmul.f32 %v109, %v3273
  %v3328 = vmul.f32 %v110, %v3277
  %v3329 = vmul.f32 %v111, %v3281
  %v3330 = vmul.f32 %v112, %v3285
  %v3331 = vmul.f32 %v113, %v3289
  %v3332 = vmul.f32 %v114, %v3293
  %v3333 = vmul.f32 %v115, %v3297
  %v3334 = vmul.f32 %v125, %v3265
  %v3335 = vmul.f32 %v126, %v3269
  %v3336 = vmul.f32 %v127, %v3273
  %v3337 = vmul.f32 %v128, %v3277
  %v3338 = vmul.f32 %v129, %v3281
  %v3339 = vmul.f32 %v130, %v3285
  %v3340 = vmul.f32 %v131, %v3289
  %v3341 = vmul.f32 %v132, %v3293
  %v3342 = vmul.f32 %v133, %v3297
  %v3343 = vmul.f32 %v143, %v3265
  %v3344 = vmul.f32 %v144, %v3269
  %v3345 = vmul.f32 %v145, %v3273
  %v3346 = vmul.f32 %v146, %v3277
  %v3347 = vmul.f32 %v147, %v3281
  %v3348 = vmul.f32 %v148, %v3285
  %v3349 = vmul.f32 %v149, %v3289
  %v3350 = vmul.f32 %v150, %v3293
  %v3351 = vmul.f32 %v151, %v3297
  %v3352 = vmul.f32 %v161, %v3265
  %v3353 = vmul.f32 %v162, %v3269
  %v3354 = vmul.f32 %v163, %v3273
  %v3355 = vmul.f32 %v164, %v3277
  %v3356 = vmul.f32 %v165, %v3281
  %v3357 = vmul.f32 %v166, %v3285
  %v3358 = vmul.f32 %v167, %v3289
  %v3359 = vmul.f32 %v168, %v3293
  %v3360 = vmul.f32 %v169, %v3297
  %v3361 = vadd.f32 %v3149, %v3298
  %v3362 = vadd.f32 %v3150, %v3299
  %v3363 = vadd.f32 %v3151, %v3300
  %v3364 = vadd.f32 %v3152, %v3301
  %v3365 = vadd.f32 %v3153, %v3302
  %v3366 = vadd.f32 %v3154, %v3303
  %v3367 = vadd.f32 %v3155, %v3304
  %v3368 = vadd.f32 %v3156, %v3305
  %v3369 = vadd.f32 %v3157, %v3306
  %v3370 = vadd.f32 %v3158, %v3307
  %v3371 = vadd.f32 %v3159, %v3308
  %v3372 = vadd.f32 %v3160, %v3309
  %v3373 = vadd.f32 %v3161, %v3310
  %v3374 = vadd.f32 %v3162, %v3311
  %v3375 = vadd.f32 %v3163, %v3312
  %v3376 = vadd.f32 %v3164, %v3313
  %v3377 = vadd.f32 %v3165, %v3314
  %v3378 = vadd.f32 %v3166, %v3315
  %v3379 = vadd.f32 %v3167, %v3316
  %v3380 = vadd.f32 %v3168, %v3317
  %v3381 = vadd.f32 %v3169, %v3318
  %v3382 = vadd.f32 %v3170, %v3319
  %v3383 = vadd.f32 %v3171, %v3320
  %v3384 = vadd.f32 %v3172, %v3321
  %v3385 = vadd.f32 %v3173, %v3322
  %v3386 = vadd.f32 %v3174, %v3323
  %v3387 = vadd.f32 %v3175, %v3324
  %v3388 = vadd.f32 %v3176, %v3325
  %v3389 = vadd.f32 %v3177, %v3326
  %v3390 = vadd.f32 %v3178, %v3327
  %v3391 = vadd.f32 %v3179, %v3328
  %v3392 = vadd.f32 %v3180, %v3329
  %v3393 = vadd.f32 %v3181, %v3330
  %v3394 = vadd.f32 %v3182, %v3331
  %v3395 = vadd.f32 %v3183, %v3332
  %v3396 = vadd.f32 %v3184, %v3333
  %v3397 = vadd.f32 %v3185, %v3334
  %v3398 = vadd.f32 %v3186, %v3335
  %v3399 = vadd.f32 %v3187, %v3336
  %v3400 = vadd.f32 %v3188, %v3337
  %v3401 = vadd.f32 %v3189, %v3338
  %v3402 = vadd.f32 %v3190, %v3339
  %v3403 = vadd.f32 %v3191, %v3340
  %v3404 = vadd.f32 %v3192, %v3341
  %v3405 = vadd.f32 %v3193, %v3342
  %v3406 = vadd.f32 %v3194, %v3343
  %v3407 = vadd.f32 %v3195, %v3344
  %v3408 = vadd.f32 %v3196, %v3345
  %v3409 = vadd.f32 %v3197, %v3346
  %v3410 = vadd.f32 %v3198, %v3347
  %v3411 = vadd.f32 %v3199, %v3348
  %v3412 = vadd.f32 %v3200, %v3349
  %v3413 = vadd.f32 %v3201, %v3350
  %v3414 = vadd.f32 %v3202, %v3351
  %v3415 = vadd.f32 %v3203, %v3352
  %v3416 = vadd.f32 %v3204, %v3353
  %v3417 = vadd.f32 %v3205, %v3354
  %v3418 = vadd.f32 %v3206, %v3355
  %v3419 = vadd.f32 %v3207, %v3356
  %v3420 = vadd.f32 %v3208, %v3357
  %v3421 = vadd.f32 %v3209, %v3358
  %v3422 = vadd.f32 %v3210, %v3359
  %v3423 = vadd.f32 %v3211, %v3360
  %v3424 = vlaneseq
  %v3425 = vshrl.u32 %v3424, 7
  %v3426 = vsub.s32 1, %v3425
  %v3427 = vrot.slane %v189, %v3426
  %v3428 = vlaneseq
  %v3429 = vshrl.u32 %v3428, 7
  %v3430 = vsub.s32 5, %v3429
  %v3431 = vrot.slane %v189, %v3430
  %v3432 = vlaneseq
  %v3433 = vshrl.u32 %v3432, 7
  %v3434 = vsub.s32 1, %v3433
  %v3435 = vrot.slane %v190, %v3434
  %v3436 = vlaneseq
  %v3437 = vshrl.u32 %v3436, 7
  %v3438 = vsub.s32 5, %v3437
  %v3439 = vrot.slane %v190, %v3438
  %v3440 = vlaneseq
  %v3441 = vshrl.u32 %v3440, 7
  %v3442 = vsub.s32 1, %v3441
  %v3443 = vrot.slane %v191, %v3442
  %v3444 = vlaneseq
  %v3445 = vshrl.u32 %v3444, 7
  %v3446 = vsub.s32 5, %v3445
  %v3447 = vrot.slane %v191, %v3446
  %v3448 = vlaneseq
  %v3449 = vshrl.u32 %v3448, 7
  %v3450 = vsub.s32 1, %v3449
  %v3451 = vrot.slane %v192, %v3450
  %v3452 = vlaneseq
  %v3453 = vshrl.u32 %v3452, 7
  %v3454 = vsub.s32 5, %v3453
  %v3455 = vrot.slane %v192, %v3454
  %v3456 = vlaneseq
  %v3457 = vshrl.u32 %v3456, 7
  %v3458 = vsub.s32 1, %v3457
  %v3459 = vrot.slane %v193, %v3458
  %v3469 = vlaneseq
  %v3470 = vshrl.u32 %v3469, 7
  %v3471 = vsub.s32 1, %v3470
  %v3472 = vrot.slane %v3427, %v3471
  %v3473 = vlaneseq
  %v3474 = vshrl.u32 %v3473, 7
  %v3475 = vsub.s32 1, %v3474
  %v3476 = vrot.slane %v3431, %v3475
  %v3477 = vlaneseq
  %v3478 = vshrl.u32 %v3477, 7
  %v3479 = vsub.s32 1, %v3478
  %v3480 = vrot.slane %v3435, %v3479
  %v3481 = vlaneseq
  %v3482 = vshrl.u32 %v3481, 7
  %v3483 = vsub.s32 1, %v3482
  %v3484 = vrot.slane %v3439, %v3483
  %v3485 = vlaneseq
  %v3486 = vshrl.u32 %v3485, 7
  %v3487 = vsub.s32 1, %v3486
  %v3488 = vrot.slane %v3443, %v3487
  %v3489 = vlaneseq
  %v3490 = vshrl.u32 %v3489, 7
  %v3491 = vsub.s32 1, %v3490
  %v3492 = vrot.slane %v3447, %v3491
  %v3493 = vlaneseq
  %v3494 = vshrl.u32 %v3493, 7
  %v3495 = vsub.s32 1, %v3494
  %v3496 = vrot.slane %v3451, %v3495
  %v3497 = vlaneseq
  %v3498 = vshrl.u32 %v3497, 7
  %v3499 = vsub.s32 1, %v3498
  %v3500 = vrot.slane %v3455, %v3499
  %v3501 = vlaneseq
  %v3502 = vshrl.u32 %v3501, 7
  %v3503 = vsub.s32 1, %v3502
  %v3504 = vrot.slane %v3459, %v3503
  %v3505 = vmul.f32 %v53, %v3472
  %v3506 = vmul.f32 %v54, %v3476
  %v3507 = vmul.f32 %v55, %v3480
  %v3508 = vmul.f32 %v56, %v3484
  %v3509 = vmul.f32 %v57, %v3488
  %v3510 = vmul.f32 %v58, %v3492
  %v3511 = vmul.f32 %v59, %v3496
  %v3512 = vmul.f32 %v60, %v3500
  %v3513 = vmul.f32 %v61, %v3504
  %v3514 = vmul.f32 %v62, %v3472
  %v3515 = vmul.f32 %v63, %v3476
  %v3516 = vmul.f32 %v64, %v3480
  %v3517 = vmul.f32 %v65, %v3484
  %v3518 = vmul.f32 %v66, %v3488
  %v3519 = vmul.f32 %v67, %v3492
  %v3520 = vmul.f32 %v68, %v3496
  %v3521 = vmul.f32 %v69, %v3500
  %v3522 = vmul.f32 %v70, %v3504
  %v3523 = vmul.f32 %v71, %v3472
  %v3524 = vmul.f32 %v72, %v3476
  %v3525 = vmul.f32 %v73, %v3480
  %v3526 = vmul.f32 %v74, %v3484
  %v3527 = vmul.f32 %v75, %v3488
  %v3528 = vmul.f32 %v76, %v3492
  %v3529 = vmul.f32 %v77, %v3496
  %v3530 = vmul.f32 %v78, %v3500
  %v3531 = vmul.f32 %v79, %v3504
  %v3532 = vmul.f32 %v80, %v3472
  %v3533 = vmul.f32 %v81, %v3476
  %v3534 = vmul.f32 %v82, %v3480
  %v3535 = vmul.f32 %v83, %v3484
  %v3536 = vmul.f32 %v84, %v3488
  %v3537 = vmul.f32 %v85, %v3492
  %v3538 = vmul.f32 %v86, %v3496
  %v3539 = vmul.f32 %v87, %v3500
  %v3540 = vmul.f32 %v88, %v3504
  %v3541 = vmul.f32 %v89, %v3472
  %v3542 = vmul.f32 %v90, %v3476
  %v3543 = vmul.f32 %v91, %v3480
  %v3544 = vmul.f32 %v92, %v3484
  %v3545 = vmul.f32 %v93, %v3488
  %v3546 = vmul.f32 %v94, %v3492
  %v3547 = vmul.f32 %v95, %v3496
  %v3548 = vmul.f32 %v96, %v3500
  %v3549 = vmul.f32 %v97, %v3504
  %v3550 = vmul.f32 %v98, %v3472
  %v3551 = vmul.f32 %v99, %v3476
  %v3552 = vmul.f32 %v100, %v3480
  %v3553 = vmul.f32 %v101, %v3484
  %v3554 = vmul.f32 %v102, %v3488
  %v3555 = vmul.f32 %v103, %v3492
  %v3556 = vmul.f32 %v104, %v3496
  %v3557 = vmul.f32 %v105, %v3500
  %v3558 = vmul.f32 %v106, %v3504
  %v3559 = vmul.f32 %v107, %v3472
  %v3560 = vmul.f32 %v108, %v3476
  %v3561 = vmul.f32 %v109, %v3480
  %v3562 = vmul.f32 %v110, %v3484
  %v3563 = vmul.f32 %v111, %v3488
  %v3564 = vmul.f32 %v112, %v3492
  %v3565 = vmul.f32 %v113, %v3496
  %v3566 = vmul.f32 %v114, %v3500
  %v3567 = vmul.f32 %v115, %v3504
  %v3568 = vmul.f32 %v116, %v3472
  %v3569 = vmul.f32 %v117, %v3476
  %v3570 = vmul.f32 %v118, %v3480
  %v3571 = vmul.f32 %v119, %v3484
  %v3572 = vmul.f32 %v120, %v3488
  %v3573 = vmul.f32 %v121, %v3492
  %v3574 = vmul.f32 %v122, %v3496
  %v3575 = vmul.f32 %v123, %v3500
  %v3576 = vmul.f32 %v124, %v3504
  %v3577 = vmul.f32 %v125, %v3472
  %v3578 = vmul.f32 %v126, %v3476
  %v3579 = vmul.f32 %v127, %v3480
  %v3580 = vmul.f32 %v128, %v3484
  %v3581 = vmul.f32 %v129, %v3488
  %v3582 = vmul.f32 %v130, %v3492
  %v3583 = vmul.f32 %v131, %v3496
  %v3584 = vmul.f32 %v132, %v3500
  %v3585 = vmul.f32 %v133, %v3504
  %v3586 = vmul.f32 %v134, %v3472
  %v3587 = vmul.f32 %v135, %v3476
  %v3588 = vmul.f32 %v136, %v3480
  %v3589 = vmul.f32 %v137, %v3484
  %v3590 = vmul.f32 %v138, %v3488
  %v3591 = vmul.f32 %v139, %v3492
  %v3592 = vmul.f32 %v140, %v3496
  %v3593 = vmul.f32 %v141, %v3500
  %v3594 = vmul.f32 %v142, %v3504
  %v3595 = vmul.f32 %v143, %v3472
  %v3596 = vmul.f32 %v144, %v3476
  %v3597 = vmul.f32 %v145, %v3480
  %v3598 = vmul.f32 %v146, %v3484
  %v3599 = vmul.f32 %v147, %v3488
  %v3600 = vmul.f32 %v148, %v3492
  %v3601 = vmul.f32 %v149, %v3496
  %v3602 = vmul.f32 %v150, %v3500
  %v3603 = vmul.f32 %v151, %v3504
  %v3604 = vmul.f32 %v152, %v3472
  %v3605 = vmul.f32 %v153, %v3476
  %v3606 = vmul.f32 %v154, %v3480
  %v3607 = vmul.f32 %v155, %v3484
  %v3608 = vmul.f32 %v156, %v3488
  %v3609 = vmul.f32 %v157, %v3492
  %v3610 = vmul.f32 %v158, %v3496
  %v3611 = vmul.f32 %v159, %v3500
  %v3612 = vmul.f32 %v160, %v3504
  %v3613 = vmul.f32 %v161, %v3472
  %v3614 = vmul.f32 %v162, %v3476
  %v3615 = vmul.f32 %v163, %v3480
  %v3616 = vmul.f32 %v164, %v3484
  %v3617 = vmul.f32 %v165, %v3488
  %v3618 = vmul.f32 %v166, %v3492
  %v3619 = vmul.f32 %v167, %v3496
  %v3620 = vmul.f32 %v168, %v3500
  %v3621 = vmul.f32 %v169, %v3504
  %v3622 = vmul.f32 %v170, %v3472
  %v3623 = vmul.f32 %v171, %v3476
  %v3624 = vmul.f32 %v172, %v3480
  %v3625 = vmul.f32 %v173, %v3484
  %v3626 = vmul.f32 %v174, %v3488
  %v3627 = vmul.f32 %v175, %v3492
  %v3628 = vmul.f32 %v176, %v3496
  %v3629 = vmul.f32 %v177, %v3500
  %v3630 = vmul.f32 %v178, %v3504
  %v3757 = vrot.slane %v3505, 1
  %v3758 = vrot.slane %v3514, 1
  %v3759 = vsel %vm739, %v3757, %v3758
  %v3760 = vrot.slane %v3506, 1
  %v3761 = vrot.slane %v3515, 1
  %v3762 = vsel %vm739, %v3760, %v3761
  %v3763 = vrot.slane %v3507, 1
  %v3764 = vrot.slane %v3516, 1
  %v3765 = vsel %vm739, %v3763, %v3764
  %v3766 = vrot.slane %v3508, 1
  %v3767 = vrot.slane %v3517, 1
  %v3768 = vsel %vm739, %v3766, %v3767
  %v3769 = vrot.slane %v3509, 1
  %v3770 = vrot.slane %v3518, 1
  %v3771 = vsel %vm739, %v3769, %v3770
  %v3772 = vrot.slane %v3510, 1
  %v3773 = vrot.slane %v3519, 1
  %v3774 = vsel %vm739, %v3772, %v3773
  %v3775 = vrot.slane %v3511, 1
  %v3776 = vrot.slane %v3520, 1
  %v3777 = vsel %vm739, %v3775, %v3776
  %v3778 = vrot.slane %v3512, 1
  %v3779 = vrot.slane %v3521, 1
  %v3780 = vsel %vm739, %v3778, %v3779
  %v3781 = vrot.slane %v3513, 1
  %v3782 = vrot.slane %v3522, 1
  %v3783 = vsel %vm739, %v3781, %v3782
  %v3784 = vrot.slane %v3523, 1
  %v3785 = vrot.slane %v3532, 1
  %v3786 = vsel %vm739, %v3784, %v3785
  %v3787 = vrot.slane %v3524, 1
  %v3788 = vrot.slane %v3533, 1
  %v3789 = vsel %vm739, %v3787, %v3788
  %v3790 = vrot.slane %v3525, 1
  %v3791 = vrot.slane %v3534, 1
  %v3792 = vsel %vm739, %v3790, %v3791
  %v3793 = vrot.slane %v3526, 1
  %v3794 = vrot.slane %v3535, 1
  %v3795 = vsel %vm739, %v3793, %v3794
  %v3796 = vrot.slane %v3527, 1
  %v3797 = vrot.slane %v3536, 1
  %v3798 = vsel %vm739, %v3796, %v3797
  %v3799 = vrot.slane %v3528, 1
  %v3800 = vrot.slane %v3537, 1
  %v3801 = vsel %vm739, %v3799, %v3800
  %v3802 = vrot.slane %v3529, 1
  %v3803 = vrot.slane %v3538, 1
  %v3804 = vsel %vm739, %v3802, %v3803
  %v3805 = vrot.slane %v3530, 1
  %v3806 = vrot.slane %v3539, 1
  %v3807 = vsel %vm739, %v3805, %v3806
  %v3808 = vrot.slane %v3531, 1
  %v3809 = vrot.slane %v3540, 1
  %v3810 = vsel %vm739, %v3808, %v3809
  %v3811 = vrot.slane %v3541, 1
  %v3812 = vrot.slane %v3550, 1
  %v3813 = vsel %vm739, %v3811, %v3812
  %v3814 = vrot.slane %v3542, 1
  %v3815 = vrot.slane %v3551, 1
  %v3816 = vsel %vm739, %v3814, %v3815
  %v3817 = vrot.slane %v3543, 1
  %v3818 = vrot.slane %v3552, 1
  %v3819 = vsel %vm739, %v3817, %v3818
  %v3820 = vrot.slane %v3544, 1
  %v3821 = vrot.slane %v3553, 1
  %v3822 = vsel %vm739, %v3820, %v3821
  %v3823 = vrot.slane %v3545, 1
  %v3824 = vrot.slane %v3554, 1
  %v3825 = vsel %vm739, %v3823, %v3824
  %v3826 = vrot.slane %v3546, 1
  %v3827 = vrot.slane %v3555, 1
  %v3828 = vsel %vm739, %v3826, %v3827
  %v3829 = vrot.slane %v3547, 1
  %v3830 = vrot.slane %v3556, 1
  %v3831 = vsel %vm739, %v3829, %v3830
  %v3832 = vrot.slane %v3548, 1
  %v3833 = vrot.slane %v3557, 1
  %v3834 = vsel %vm739, %v3832, %v3833
  %v3835 = vrot.slane %v3549, 1
  %v3836 = vrot.slane %v3558, 1
  %v3837 = vsel %vm739, %v3835, %v3836
  %v3838 = vrot.slane %v3559, 1
  %v3839 = vrot.slane %v3568, 1
  %v3840 = vsel %vm739, %v3838, %v3839
  %v3841 = vrot.slane %v3560, 1
  %v3842 = vrot.slane %v3569, 1
  %v3843 = vsel %vm739, %v3841, %v3842
  %v3844 = vrot.slane %v3561, 1
  %v3845 = vrot.slane %v3570, 1
  %v3846 = vsel %vm739, %v3844, %v3845
  %v3847 = vrot.slane %v3562, 1
  %v3848 = vrot.slane %v3571, 1
  %v3849 = vsel %vm739, %v3847, %v3848
  %v3850 = vrot.slane %v3563, 1
  %v3851 = vrot.slane %v3572, 1
  %v3852 = vsel %vm739, %v3850, %v3851
  %v3853 = vrot.slane %v3564, 1
  %v3854 = vrot.slane %v3573, 1
  %v3855 = vsel %vm739, %v3853, %v3854
  %v3856 = vrot.slane %v3565, 1
  %v3857 = vrot.slane %v3574, 1
  %v3858 = vsel %vm739, %v3856, %v3857
  %v3859 = vrot.slane %v3566, 1
  %v3860 = vrot.slane %v3575, 1
  %v3861 = vsel %vm739, %v3859, %v3860
  %v3862 = vrot.slane %v3567, 1
  %v3863 = vrot.slane %v3576, 1
  %v3864 = vsel %vm739, %v3862, %v3863
  %v3865 = vrot.slane %v3577, 1
  %v3866 = vrot.slane %v3586, 1
  %v3867 = vsel %vm739, %v3865, %v3866
  %v3868 = vrot.slane %v3578, 1
  %v3869 = vrot.slane %v3587, 1
  %v3870 = vsel %vm739, %v3868, %v3869
  %v3871 = vrot.slane %v3579, 1
  %v3872 = vrot.slane %v3588, 1
  %v3873 = vsel %vm739, %v3871, %v3872
  %v3874 = vrot.slane %v3580, 1
  %v3875 = vrot.slane %v3589, 1
  %v3876 = vsel %vm739, %v3874, %v3875
  %v3877 = vrot.slane %v3581, 1
  %v3878 = vrot.slane %v3590, 1
  %v3879 = vsel %vm739, %v3877, %v3878
  %v3880 = vrot.slane %v3582, 1
  %v3881 = vrot.slane %v3591, 1
  %v3882 = vsel %vm739, %v3880, %v3881
  %v3883 = vrot.slane %v3583, 1
  %v3884 = vrot.slane %v3592, 1
  %v3885 = vsel %vm739, %v3883, %v3884
  %v3886 = vrot.slane %v3584, 1
  %v3887 = vrot.slane %v3593, 1
  %v3888 = vsel %vm739, %v3886, %v3887
  %v3889 = vrot.slane %v3585, 1
  %v3890 = vrot.slane %v3594, 1
  %v3891 = vsel %vm739, %v3889, %v3890
  %v3892 = vrot.slane %v3595, 1
  %v3893 = vrot.slane %v3604, 1
  %v3894 = vsel %vm739, %v3892, %v3893
  %v3895 = vrot.slane %v3596, 1
  %v3896 = vrot.slane %v3605, 1
  %v3897 = vsel %vm739, %v3895, %v3896
  %v3898 = vrot.slane %v3597, 1
  %v3899 = vrot.slane %v3606, 1
  %v3900 = vsel %vm739, %v3898, %v3899
  %v3901 = vrot.slane %v3598, 1
  %v3902 = vrot.slane %v3607, 1
  %v3903 = vsel %vm739, %v3901, %v3902
  %v3904 = vrot.slane %v3599, 1
  %v3905 = vrot.slane %v3608, 1
  %v3906 = vsel %vm739, %v3904, %v3905
  %v3907 = vrot.slane %v3600, 1
  %v3908 = vrot.slane %v3609, 1
  %v3909 = vsel %vm739, %v3907, %v3908
  %v3910 = vrot.slane %v3601, 1
  %v3911 = vrot.slane %v3610, 1
  %v3912 = vsel %vm739, %v3910, %v3911
  %v3913 = vrot.slane %v3602, 1
  %v3914 = vrot.slane %v3611, 1
  %v3915 = vsel %vm739, %v3913, %v3914
  %v3916 = vrot.slane %v3603, 1
  %v3917 = vrot.slane %v3612, 1
  %v3918 = vsel %vm739, %v3916, %v3917
  %v3919 = vrot.slane %v3613, 1
  %v3920 = vrot.slane %v3622, 1
  %v3921 = vsel %vm739, %v3919, %v3920
  %v3922 = vrot.slane %v3614, 1
  %v3923 = vrot.slane %v3623, 1
  %v3924 = vsel %vm739, %v3922, %v3923
  %v3925 = vrot.slane %v3615, 1
  %v3926 = vrot.slane %v3624, 1
  %v3927 = vsel %vm739, %v3925, %v3926
  %v3928 = vrot.slane %v3616, 1
  %v3929 = vrot.slane %v3625, 1
  %v3930 = vsel %vm739, %v3928, %v3929
  %v3931 = vrot.slane %v3617, 1
  %v3932 = vrot.slane %v3626, 1
  %v3933 = vsel %vm739, %v3931, %v3932
  %v3934 = vrot.slane %v3618, 1
  %v3935 = vrot.slane %v3627, 1
  %v3936 = vsel %vm739, %v3934, %v3935
  %v3937 = vrot.slane %v3619, 1
  %v3938 = vrot.slane %v3628, 1
  %v3939 = vsel %vm739, %v3937, %v3938
  %v3940 = vrot.slane %v3620, 1
  %v3941 = vrot.slane %v3629, 1
  %v3942 = vsel %vm739, %v3940, %v3941
  %v3943 = vrot.slane %v3621, 1
  %v3944 = vrot.slane %v3630, 1
  %v3945 = vsel %vm739, %v3943, %v3944
  %v4009 = vadd.f32 %v3361, %v3759
  %v4010 = vadd.f32 %v3362, %v3762
  %v4011 = vadd.f32 %v3363, %v3765
  %v4012 = vadd.f32 %v3364, %v3768
  %v4013 = vadd.f32 %v3365, %v3771
  %v4014 = vadd.f32 %v3366, %v3774
  %v4015 = vadd.f32 %v3367, %v3777
  %v4016 = vadd.f32 %v3368, %v3780
  %v4017 = vadd.f32 %v3369, %v3783
  %v4018 = vadd.f32 %v3370, %v3786
  %v4019 = vadd.f32 %v3371, %v3789
  %v4020 = vadd.f32 %v3372, %v3792
  %v4021 = vadd.f32 %v3373, %v3795
  %v4022 = vadd.f32 %v3374, %v3798
  %v4023 = vadd.f32 %v3375, %v3801
  %v4024 = vadd.f32 %v3376, %v3804
  %v4025 = vadd.f32 %v3377, %v3807
  %v4026 = vadd.f32 %v3378, %v3810
  %v4027 = vadd.f32 %v3379, %v3813
  %v4028 = vadd.f32 %v3380, %v3816
  %v4029 = vadd.f32 %v3381, %v3819
  %v4030 = vadd.f32 %v3382, %v3822
  %v4031 = vadd.f32 %v3383, %v3825
  %v4032 = vadd.f32 %v3384, %v3828
  %v4033 = vadd.f32 %v3385, %v3831
  %v4034 = vadd.f32 %v3386, %v3834
  %v4035 = vadd.f32 %v3387, %v3837
  %v4036 = vadd.f32 %v3388, %v3840
  %v4037 = vadd.f32 %v3389, %v3843
  %v4038 = vadd.f32 %v3390, %v3846
  %v4039 = vadd.f32 %v3391, %v3849
  %v4040 = vadd.f32 %v3392, %v3852
  %v4041 = vadd.f32 %v3393, %v3855
  %v4042 = vadd.f32 %v3394, %v3858
  %v4043 = vadd.f32 %v3395, %v3861
  %v4044 = vadd.f32 %v3396, %v3864
  %v4045 = vadd.f32 %v3397, %v3867
  %v4046 = vadd.f32 %v3398, %v3870
  %v4047 = vadd.f32 %v3399, %v3873
  %v4048 = vadd.f32 %v3400, %v3876
  %v4049 = vadd.f32 %v3401, %v3879
  %v4050 = vadd.f32 %v3402, %v3882
  %v4051 = vadd.f32 %v3403, %v3885
  %v4052 = vadd.f32 %v3404, %v3888
  %v4053 = vadd.f32 %v3405, %v3891
  %v4054 = vadd.f32 %v3406, %v3894
  %v4055 = vadd.f32 %v3407, %v3897
  %v4056 = vadd.f32 %v3408, %v3900
  %v4057 = vadd.f32 %v3409, %v3903
  %v4058 = vadd.f32 %v3410, %v3906
  %v4059 = vadd.f32 %v3411, %v3909
  %v4060 = vadd.f32 %v3412, %v3912
  %v4061 = vadd.f32 %v3413, %v3915
  %v4062 = vadd.f32 %v3414, %v3918
  %v4063 = vadd.f32 %v3415, %v3921
  %v4064 = vadd.f32 %v3416, %v3924
  %v4065 = vadd.f32 %v3417, %v3927
  %v4066 = vadd.f32 %v3418, %v3930
  %v4067 = vadd.f32 %v3419, %v3933
  %v4068 = vadd.f32 %v3420, %v3936
  %v4069 = vadd.f32 %v3421, %v3939
  %v4070 = vadd.f32 %v3422, %v3942
  %v4071 = vadd.f32 %v3423, %v3945
  %v4072 = vlaneseq
  %v4073 = vshrl.u32 %v4072, 7
  %v4074 = vsub.s32 2, %v4073
  %v4075 = vrot.slane %v189, %v4074
  %v4076 = vlaneseq
  %v4077 = vshrl.u32 %v4076, 7
  %v4078 = vsub.s32 6, %v4077
  %v4079 = vrot.slane %v189, %v4078
  %v4080 = vlaneseq
  %v4081 = vshrl.u32 %v4080, 7
  %v4082 = vsub.s32 2, %v4081
  %v4083 = vrot.slane %v190, %v4082
  %v4084 = vlaneseq
  %v4085 = vshrl.u32 %v4084, 7
  %v4086 = vsub.s32 6, %v4085
  %v4087 = vrot.slane %v190, %v4086
  %v4088 = vlaneseq
  %v4089 = vshrl.u32 %v4088, 7
  %v4090 = vsub.s32 2, %v4089
  %v4091 = vrot.slane %v191, %v4090
  %v4092 = vlaneseq
  %v4093 = vshrl.u32 %v4092, 7
  %v4094 = vsub.s32 6, %v4093
  %v4095 = vrot.slane %v191, %v4094
  %v4096 = vlaneseq
  %v4097 = vshrl.u32 %v4096, 7
  %v4098 = vsub.s32 2, %v4097
  %v4099 = vrot.slane %v192, %v4098
  %v4100 = vlaneseq
  %v4101 = vshrl.u32 %v4100, 7
  %v4102 = vsub.s32 6, %v4101
  %v4103 = vrot.slane %v192, %v4102
  %v4104 = vlaneseq
  %v4105 = vshrl.u32 %v4104, 7
  %v4106 = vsub.s32 2, %v4105
  %v4107 = vrot.slane %v193, %v4106
  %v4117 = vlaneseq
  %v4118 = vshrl.u32 %v4117, 7
  %v4119 = vsub.s32 2, %v4118
  %v4120 = vrot.slane %v4075, %v4119
  %v4121 = vlaneseq
  %v4122 = vshrl.u32 %v4121, 7
  %v4123 = vsub.s32 2, %v4122
  %v4124 = vrot.slane %v4079, %v4123
  %v4125 = vlaneseq
  %v4126 = vshrl.u32 %v4125, 7
  %v4127 = vsub.s32 2, %v4126
  %v4128 = vrot.slane %v4083, %v4127
  %v4129 = vlaneseq
  %v4130 = vshrl.u32 %v4129, 7
  %v4131 = vsub.s32 2, %v4130
  %v4132 = vrot.slane %v4087, %v4131
  %v4133 = vlaneseq
  %v4134 = vshrl.u32 %v4133, 7
  %v4135 = vsub.s32 2, %v4134
  %v4136 = vrot.slane %v4091, %v4135
  %v4137 = vlaneseq
  %v4138 = vshrl.u32 %v4137, 7
  %v4139 = vsub.s32 2, %v4138
  %v4140 = vrot.slane %v4095, %v4139
  %v4141 = vlaneseq
  %v4142 = vshrl.u32 %v4141, 7
  %v4143 = vsub.s32 2, %v4142
  %v4144 = vrot.slane %v4099, %v4143
  %v4145 = vlaneseq
  %v4146 = vshrl.u32 %v4145, 7
  %v4147 = vsub.s32 2, %v4146
  %v4148 = vrot.slane %v4103, %v4147
  %v4149 = vlaneseq
  %v4150 = vshrl.u32 %v4149, 7
  %v4151 = vsub.s32 2, %v4150
  %v4152 = vrot.slane %v4107, %v4151
  %v4153 = vmul.f32 %v53, %v4120
  %v4154 = vmul.f32 %v54, %v4124
  %v4155 = vmul.f32 %v55, %v4128
  %v4156 = vmul.f32 %v56, %v4132
  %v4157 = vmul.f32 %v57, %v4136
  %v4158 = vmul.f32 %v58, %v4140
  %v4159 = vmul.f32 %v59, %v4144
  %v4160 = vmul.f32 %v60, %v4148
  %v4161 = vmul.f32 %v61, %v4152
  %v4162 = vmul.f32 %v62, %v4120
  %v4163 = vmul.f32 %v63, %v4124
  %v4164 = vmul.f32 %v64, %v4128
  %v4165 = vmul.f32 %v65, %v4132
  %v4166 = vmul.f32 %v66, %v4136
  %v4167 = vmul.f32 %v67, %v4140
  %v4168 = vmul.f32 %v68, %v4144
  %v4169 = vmul.f32 %v69, %v4148
  %v4170 = vmul.f32 %v70, %v4152
  %v4171 = vmul.f32 %v71, %v4120
  %v4172 = vmul.f32 %v72, %v4124
  %v4173 = vmul.f32 %v73, %v4128
  %v4174 = vmul.f32 %v74, %v4132
  %v4175 = vmul.f32 %v75, %v4136
  %v4176 = vmul.f32 %v76, %v4140
  %v4177 = vmul.f32 %v77, %v4144
  %v4178 = vmul.f32 %v78, %v4148
  %v4179 = vmul.f32 %v79, %v4152
  %v4180 = vmul.f32 %v80, %v4120
  %v4181 = vmul.f32 %v81, %v4124
  %v4182 = vmul.f32 %v82, %v4128
  %v4183 = vmul.f32 %v83, %v4132
  %v4184 = vmul.f32 %v84, %v4136
  %v4185 = vmul.f32 %v85, %v4140
  %v4186 = vmul.f32 %v86, %v4144
  %v4187 = vmul.f32 %v87, %v4148
  %v4188 = vmul.f32 %v88, %v4152
  %v4189 = vmul.f32 %v89, %v4120
  %v4190 = vmul.f32 %v90, %v4124
  %v4191 = vmul.f32 %v91, %v4128
  %v4192 = vmul.f32 %v92, %v4132
  %v4193 = vmul.f32 %v93, %v4136
  %v4194 = vmul.f32 %v94, %v4140
  %v4195 = vmul.f32 %v95, %v4144
  %v4196 = vmul.f32 %v96, %v4148
  %v4197 = vmul.f32 %v97, %v4152
  %v4198 = vmul.f32 %v98, %v4120
  %v4199 = vmul.f32 %v99, %v4124
  %v4200 = vmul.f32 %v100, %v4128
  %v4201 = vmul.f32 %v101, %v4132
  %v4202 = vmul.f32 %v102, %v4136
  %v4203 = vmul.f32 %v103, %v4140
  %v4204 = vmul.f32 %v104, %v4144
  %v4205 = vmul.f32 %v105, %v4148
  %v4206 = vmul.f32 %v106, %v4152
  %v4207 = vmul.f32 %v107, %v4120
  %v4208 = vmul.f32 %v108, %v4124
  %v4209 = vmul.f32 %v109, %v4128
  %v4210 = vmul.f32 %v110, %v4132
  %v4211 = vmul.f32 %v111, %v4136
  %v4212 = vmul.f32 %v112, %v4140
  %v4213 = vmul.f32 %v113, %v4144
  %v4214 = vmul.f32 %v114, %v4148
  %v4215 = vmul.f32 %v115, %v4152
  %v4216 = vmul.f32 %v116, %v4120
  %v4217 = vmul.f32 %v117, %v4124
  %v4218 = vmul.f32 %v118, %v4128
  %v4219 = vmul.f32 %v119, %v4132
  %v4220 = vmul.f32 %v120, %v4136
  %v4221 = vmul.f32 %v121, %v4140
  %v4222 = vmul.f32 %v122, %v4144
  %v4223 = vmul.f32 %v123, %v4148
  %v4224 = vmul.f32 %v124, %v4152
  %v4225 = vmul.f32 %v125, %v4120
  %v4226 = vmul.f32 %v126, %v4124
  %v4227 = vmul.f32 %v127, %v4128
  %v4228 = vmul.f32 %v128, %v4132
  %v4229 = vmul.f32 %v129, %v4136
  %v4230 = vmul.f32 %v130, %v4140
  %v4231 = vmul.f32 %v131, %v4144
  %v4232 = vmul.f32 %v132, %v4148
  %v4233 = vmul.f32 %v133, %v4152
  %v4234 = vmul.f32 %v134, %v4120
  %v4235 = vmul.f32 %v135, %v4124
  %v4236 = vmul.f32 %v136, %v4128
  %v4237 = vmul.f32 %v137, %v4132
  %v4238 = vmul.f32 %v138, %v4136
  %v4239 = vmul.f32 %v139, %v4140
  %v4240 = vmul.f32 %v140, %v4144
  %v4241 = vmul.f32 %v141, %v4148
  %v4242 = vmul.f32 %v142, %v4152
  %v4243 = vmul.f32 %v143, %v4120
  %v4244 = vmul.f32 %v144, %v4124
  %v4245 = vmul.f32 %v145, %v4128
  %v4246 = vmul.f32 %v146, %v4132
  %v4247 = vmul.f32 %v147, %v4136
  %v4248 = vmul.f32 %v148, %v4140
  %v4249 = vmul.f32 %v149, %v4144
  %v4250 = vmul.f32 %v150, %v4148
  %v4251 = vmul.f32 %v151, %v4152
  %v4252 = vmul.f32 %v152, %v4120
  %v4253 = vmul.f32 %v153, %v4124
  %v4254 = vmul.f32 %v154, %v4128
  %v4255 = vmul.f32 %v155, %v4132
  %v4256 = vmul.f32 %v156, %v4136
  %v4257 = vmul.f32 %v157, %v4140
  %v4258 = vmul.f32 %v158, %v4144
  %v4259 = vmul.f32 %v159, %v4148
  %v4260 = vmul.f32 %v160, %v4152
  %v4261 = vmul.f32 %v161, %v4120
  %v4262 = vmul.f32 %v162, %v4124
  %v4263 = vmul.f32 %v163, %v4128
  %v4264 = vmul.f32 %v164, %v4132
  %v4265 = vmul.f32 %v165, %v4136
  %v4266 = vmul.f32 %v166, %v4140
  %v4267 = vmul.f32 %v167, %v4144
  %v4268 = vmul.f32 %v168, %v4148
  %v4269 = vmul.f32 %v169, %v4152
  %v4270 = vmul.f32 %v170, %v4120
  %v4271 = vmul.f32 %v171, %v4124
  %v4272 = vmul.f32 %v172, %v4128
  %v4273 = vmul.f32 %v173, %v4132
  %v4274 = vmul.f32 %v174, %v4136
  %v4275 = vmul.f32 %v175, %v4140
  %v4276 = vmul.f32 %v176, %v4144
  %v4277 = vmul.f32 %v177, %v4148
  %v4278 = vmul.f32 %v178, %v4152
  %v4405 = vrot.slane %v4153, 2
  %v4406 = vrot.slane %v4162, 2
  %v4407 = vsel %vm1388, %v4405, %v4406
  %v4408 = vrot.slane %v4154, 2
  %v4409 = vrot.slane %v4163, 2
  %v4410 = vsel %vm1388, %v4408, %v4409
  %v4411 = vrot.slane %v4155, 2
  %v4412 = vrot.slane %v4164, 2
  %v4413 = vsel %vm1388, %v4411, %v4412
  %v4414 = vrot.slane %v4156, 2
  %v4415 = vrot.slane %v4165, 2
  %v4416 = vsel %vm1388, %v4414, %v4415
  %v4417 = vrot.slane %v4157, 2
  %v4418 = vrot.slane %v4166, 2
  %v4419 = vsel %vm1388, %v4417, %v4418
  %v4420 = vrot.slane %v4158, 2
  %v4421 = vrot.slane %v4167, 2
  %v4422 = vsel %vm1388, %v4420, %v4421
  %v4423 = vrot.slane %v4159, 2
  %v4424 = vrot.slane %v4168, 2
  %v4425 = vsel %vm1388, %v4423, %v4424
  %v4426 = vrot.slane %v4160, 2
  %v4427 = vrot.slane %v4169, 2
  %v4428 = vsel %vm1388, %v4426, %v4427
  %v4429 = vrot.slane %v4161, 2
  %v4430 = vrot.slane %v4170, 2
  %v4431 = vsel %vm1388, %v4429, %v4430
  %v4432 = vrot.slane %v4171, 2
  %v4433 = vrot.slane %v4180, 2
  %v4434 = vsel %vm1388, %v4432, %v4433
  %v4435 = vrot.slane %v4172, 2
  %v4436 = vrot.slane %v4181, 2
  %v4437 = vsel %vm1388, %v4435, %v4436
  %v4438 = vrot.slane %v4173, 2
  %v4439 = vrot.slane %v4182, 2
  %v4440 = vsel %vm1388, %v4438, %v4439
  %v4441 = vrot.slane %v4174, 2
  %v4442 = vrot.slane %v4183, 2
  %v4443 = vsel %vm1388, %v4441, %v4442
  %v4444 = vrot.slane %v4175, 2
  %v4445 = vrot.slane %v4184, 2
  %v4446 = vsel %vm1388, %v4444, %v4445
  %v4447 = vrot.slane %v4176, 2
  %v4448 = vrot.slane %v4185, 2
  %v4449 = vsel %vm1388, %v4447, %v4448
  %v4450 = vrot.slane %v4177, 2
  %v4451 = vrot.slane %v4186, 2
  %v4452 = vsel %vm1388, %v4450, %v4451
  %v4453 = vrot.slane %v4178, 2
  %v4454 = vrot.slane %v4187, 2
  %v4455 = vsel %vm1388, %v4453, %v4454
  %v4456 = vrot.slane %v4179, 2
  %v4457 = vrot.slane %v4188, 2
  %v4458 = vsel %vm1388, %v4456, %v4457
  %v4459 = vrot.slane %v4189, 2
  %v4460 = vrot.slane %v4198, 2
  %v4461 = vsel %vm1388, %v4459, %v4460
  %v4462 = vrot.slane %v4190, 2
  %v4463 = vrot.slane %v4199, 2
  %v4464 = vsel %vm1388, %v4462, %v4463
  %v4465 = vrot.slane %v4191, 2
  %v4466 = vrot.slane %v4200, 2
  %v4467 = vsel %vm1388, %v4465, %v4466
  %v4468 = vrot.slane %v4192, 2
  %v4469 = vrot.slane %v4201, 2
  %v4470 = vsel %vm1388, %v4468, %v4469
  %v4471 = vrot.slane %v4193, 2
  %v4472 = vrot.slane %v4202, 2
  %v4473 = vsel %vm1388, %v4471, %v4472
  %v4474 = vrot.slane %v4194, 2
  %v4475 = vrot.slane %v4203, 2
  %v4476 = vsel %vm1388, %v4474, %v4475
  %v4477 = vrot.slane %v4195, 2
  %v4478 = vrot.slane %v4204, 2
  %v4479 = vsel %vm1388, %v4477, %v4478
  %v4480 = vrot.slane %v4196, 2
  %v4481 = vrot.slane %v4205, 2
  %v4482 = vsel %vm1388, %v4480, %v4481
  %v4483 = vrot.slane %v4197, 2
  %v4484 = vrot.slane %v4206, 2
  %v4485 = vsel %vm1388, %v4483, %v4484
  %v4486 = vrot.slane %v4207, 2
  %v4487 = vrot.slane %v4216, 2
  %v4488 = vsel %vm1388, %v4486, %v4487
  %v4489 = vrot.slane %v4208, 2
  %v4490 = vrot.slane %v4217, 2
  %v4491 = vsel %vm1388, %v4489, %v4490
  %v4492 = vrot.slane %v4209, 2
  %v4493 = vrot.slane %v4218, 2
  %v4494 = vsel %vm1388, %v4492, %v4493
  %v4495 = vrot.slane %v4210, 2
  %v4496 = vrot.slane %v4219, 2
  %v4497 = vsel %vm1388, %v4495, %v4496
  %v4498 = vrot.slane %v4211, 2
  %v4499 = vrot.slane %v4220, 2
  %v4500 = vsel %vm1388, %v4498, %v4499
  %v4501 = vrot.slane %v4212, 2
  %v4502 = vrot.slane %v4221, 2
  %v4503 = vsel %vm1388, %v4501, %v4502
  %v4504 = vrot.slane %v4213, 2
  %v4505 = vrot.slane %v4222, 2
  %v4506 = vsel %vm1388, %v4504, %v4505
  %v4507 = vrot.slane %v4214, 2
  %v4508 = vrot.slane %v4223, 2
  %v4509 = vsel %vm1388, %v4507, %v4508
  %v4510 = vrot.slane %v4215, 2
  %v4511 = vrot.slane %v4224, 2
  %v4512 = vsel %vm1388, %v4510, %v4511
  %v4513 = vrot.slane %v4225, 2
  %v4514 = vrot.slane %v4234, 2
  %v4515 = vsel %vm1388, %v4513, %v4514
  %v4516 = vrot.slane %v4226, 2
  %v4517 = vrot.slane %v4235, 2
  %v4518 = vsel %vm1388, %v4516, %v4517
  %v4519 = vrot.slane %v4227, 2
  %v4520 = vrot.slane %v4236, 2
  %v4521 = vsel %vm1388, %v4519, %v4520
  %v4522 = vrot.slane %v4228, 2
  %v4523 = vrot.slane %v4237, 2
  %v4524 = vsel %vm1388, %v4522, %v4523
  %v4525 = vrot.slane %v4229, 2
  %v4526 = vrot.slane %v4238, 2
  %v4527 = vsel %vm1388, %v4525, %v4526
  %v4528 = vrot.slane %v4230, 2
  %v4529 = vrot.slane %v4239, 2
  %v4530 = vsel %vm1388, %v4528, %v4529
  %v4531 = vrot.slane %v4231, 2
  %v4532 = vrot.slane %v4240, 2
  %v4533 = vsel %vm1388, %v4531, %v4532
  %v4534 = vrot.slane %v4232, 2
  %v4535 = vrot.slane %v4241, 2
  %v4536 = vsel %vm1388, %v4534, %v4535
  %v4537 = vrot.slane %v4233, 2
  %v4538 = vrot.slane %v4242, 2
  %v4539 = vsel %vm1388, %v4537, %v4538
  %v4540 = vrot.slane %v4243, 2
  %v4541 = vrot.slane %v4252, 2
  %v4542 = vsel %vm1388, %v4540, %v4541
  %v4543 = vrot.slane %v4244, 2
  %v4544 = vrot.slane %v4253, 2
  %v4545 = vsel %vm1388, %v4543, %v4544
  %v4546 = vrot.slane %v4245, 2
  %v4547 = vrot.slane %v4254, 2
  %v4548 = vsel %vm1388, %v4546, %v4547
  %v4549 = vrot.slane %v4246, 2
  %v4550 = vrot.slane %v4255, 2
  %v4551 = vsel %vm1388, %v4549, %v4550
  %v4552 = vrot.slane %v4247, 2
  %v4553 = vrot.slane %v4256, 2
  %v4554 = vsel %vm1388, %v4552, %v4553
  %v4555 = vrot.slane %v4248, 2
  %v4556 = vrot.slane %v4257, 2
  %v4557 = vsel %vm1388, %v4555, %v4556
  %v4558 = vrot.slane %v4249, 2
  %v4559 = vrot.slane %v4258, 2
  %v4560 = vsel %vm1388, %v4558, %v4559
  %v4561 = vrot.slane %v4250, 2
  %v4562 = vrot.slane %v4259, 2
  %v4563 = vsel %vm1388, %v4561, %v4562
  %v4564 = vrot.slane %v4251, 2
  %v4565 = vrot.slane %v4260, 2
  %v4566 = vsel %vm1388, %v4564, %v4565
  %v4567 = vrot.slane %v4261, 2
  %v4568 = vrot.slane %v4270, 2
  %v4569 = vsel %vm1388, %v4567, %v4568
  %v4570 = vrot.slane %v4262, 2
  %v4571 = vrot.slane %v4271, 2
  %v4572 = vsel %vm1388, %v4570, %v4571
  %v4573 = vrot.slane %v4263, 2
  %v4574 = vrot.slane %v4272, 2
  %v4575 = vsel %vm1388, %v4573, %v4574
  %v4576 = vrot.slane %v4264, 2
  %v4577 = vrot.slane %v4273, 2
  %v4578 = vsel %vm1388, %v4576, %v4577
  %v4579 = vrot.slane %v4265, 2
  %v4580 = vrot.slane %v4274, 2
  %v4581 = vsel %vm1388, %v4579, %v4580
  %v4582 = vrot.slane %v4266, 2
  %v4583 = vrot.slane %v4275, 2
  %v4584 = vsel %vm1388, %v4582, %v4583
  %v4585 = vrot.slane %v4267, 2
  %v4586 = vrot.slane %v4276, 2
  %v4587 = vsel %vm1388, %v4585, %v4586
  %v4588 = vrot.slane %v4268, 2
  %v4589 = vrot.slane %v4277, 2
  %v4590 = vsel %vm1388, %v4588, %v4589
  %v4591 = vrot.slane %v4269, 2
  %v4592 = vrot.slane %v4278, 2
  %v4593 = vsel %vm1388, %v4591, %v4592
  %v4657 = vadd.f32 %v4009, %v4407
  %v4658 = vadd.f32 %v4010, %v4410
  %v4659 = vadd.f32 %v4011, %v4413
  %v4660 = vadd.f32 %v4012, %v4416
  %v4661 = vadd.f32 %v4013, %v4419
  %v4662 = vadd.f32 %v4014, %v4422
  %v4663 = vadd.f32 %v4015, %v4425
  %v4664 = vadd.f32 %v4016, %v4428
  %v4665 = vadd.f32 %v4017, %v4431
  %v4666 = vadd.f32 %v4018, %v4434
  %v4667 = vadd.f32 %v4019, %v4437
  %v4668 = vadd.f32 %v4020, %v4440
  %v4669 = vadd.f32 %v4021, %v4443
  %v4670 = vadd.f32 %v4022, %v4446
  %v4671 = vadd.f32 %v4023, %v4449
  %v4672 = vadd.f32 %v4024, %v4452
  %v4673 = vadd.f32 %v4025, %v4455
  %v4674 = vadd.f32 %v4026, %v4458
  %v4675 = vadd.f32 %v4027, %v4461
  %v4676 = vadd.f32 %v4028, %v4464
  %v4677 = vadd.f32 %v4029, %v4467
  %v4678 = vadd.f32 %v4030, %v4470
  %v4679 = vadd.f32 %v4031, %v4473
  %v4680 = vadd.f32 %v4032, %v4476
  %v4681 = vadd.f32 %v4033, %v4479
  %v4682 = vadd.f32 %v4034, %v4482
  %v4683 = vadd.f32 %v4035, %v4485
  %v4684 = vadd.f32 %v4036, %v4488
  %v4685 = vadd.f32 %v4037, %v4491
  %v4686 = vadd.f32 %v4038, %v4494
  %v4687 = vadd.f32 %v4039, %v4497
  %v4688 = vadd.f32 %v4040, %v4500
  %v4689 = vadd.f32 %v4041, %v4503
  %v4690 = vadd.f32 %v4042, %v4506
  %v4691 = vadd.f32 %v4043, %v4509
  %v4692 = vadd.f32 %v4044, %v4512
  %v4693 = vadd.f32 %v4045, %v4515
  %v4694 = vadd.f32 %v4046, %v4518
  %v4695 = vadd.f32 %v4047, %v4521
  %v4696 = vadd.f32 %v4048, %v4524
  %v4697 = vadd.f32 %v4049, %v4527
  %v4698 = vadd.f32 %v4050, %v4530
  %v4699 = vadd.f32 %v4051, %v4533
  %v4700 = vadd.f32 %v4052, %v4536
  %v4701 = vadd.f32 %v4053, %v4539
  %v4702 = vadd.f32 %v4054, %v4542
  %v4703 = vadd.f32 %v4055, %v4545
  %v4704 = vadd.f32 %v4056, %v4548
  %v4705 = vadd.f32 %v4057, %v4551
  %v4706 = vadd.f32 %v4058, %v4554
  %v4707 = vadd.f32 %v4059, %v4557
  %v4708 = vadd.f32 %v4060, %v4560
  %v4709 = vadd.f32 %v4061, %v4563
  %v4710 = vadd.f32 %v4062, %v4566
  %v4711 = vadd.f32 %v4063, %v4569
  %v4712 = vadd.f32 %v4064, %v4572
  %v4713 = vadd.f32 %v4065, %v4575
  %v4714 = vadd.f32 %v4066, %v4578
  %v4715 = vadd.f32 %v4067, %v4581
  %v4716 = vadd.f32 %v4068, %v4584
  %v4717 = vadd.f32 %v4069, %v4587
  %v4718 = vadd.f32 %v4070, %v4590
  %v4719 = vadd.f32 %v4071, %v4593
  %v4720 = vlaneseq
  %v4721 = vshrl.u32 %v4720, 7
  %vm4722 = vcmp.lt.s32.totalorder %v4721, 7
  %v4723 = vsel %vm4722, 1, 0
  %vm4724 = vcmp.eq.s32.totalorder %v4723, 1
  %v4725 = vsel %vm4724, %v4657, 0.0
  %v4726 = vsel %vm4724, %v4658, 0.0
  %v4727 = vsel %vm4724, %v4659, 0.0
  %v4728 = vsel %vm4724, %v4660, 0.0
  %v4729 = vsel %vm4724, %v4661, 0.0
  %v4730 = vsel %vm4724, %v4662, 0.0
  %v4731 = vsel %vm4724, %v4663, 0.0
  %v4732 = vsel %vm4724, %v4664, 0.0
  %v4733 = vsel %vm4724, %v4665, 0.0
  %v4734 = vsel %vm4724, %v4666, 0.0
  %v4735 = vsel %vm4724, %v4667, 0.0
  %v4736 = vsel %vm4724, %v4668, 0.0
  %v4737 = vsel %vm4724, %v4669, 0.0
  %v4738 = vsel %vm4724, %v4670, 0.0
  %v4739 = vsel %vm4724, %v4671, 0.0
  %v4740 = vsel %vm4724, %v4672, 0.0
  %v4741 = vsel %vm4724, %v4673, 0.0
  %v4742 = vsel %vm4724, %v4674, 0.0
  %v4743 = vsel %vm4724, %v4675, 0.0
  %v4744 = vsel %vm4724, %v4676, 0.0
  %v4745 = vsel %vm4724, %v4677, 0.0
  %v4746 = vsel %vm4724, %v4678, 0.0
  %v4747 = vsel %vm4724, %v4679, 0.0
  %v4748 = vsel %vm4724, %v4680, 0.0
  %v4749 = vsel %vm4724, %v4681, 0.0
  %v4750 = vsel %vm4724, %v4682, 0.0
  %v4751 = vsel %vm4724, %v4683, 0.0
  %v4752 = vsel %vm4724, %v4684, 0.0
  %v4753 = vsel %vm4724, %v4685, 0.0
  %v4754 = vsel %vm4724, %v4686, 0.0
  %v4755 = vsel %vm4724, %v4687, 0.0
  %v4756 = vsel %vm4724, %v4688, 0.0
  %v4757 = vsel %vm4724, %v4689, 0.0
  %v4758 = vsel %vm4724, %v4690, 0.0
  %v4759 = vsel %vm4724, %v4691, 0.0
  %v4760 = vsel %vm4724, %v4692, 0.0
  %v4761 = vsel %vm4724, %v4693, 0.0
  %v4762 = vsel %vm4724, %v4694, 0.0
  %v4763 = vsel %vm4724, %v4695, 0.0
  %v4764 = vsel %vm4724, %v4696, 0.0
  %v4765 = vsel %vm4724, %v4697, 0.0
  %v4766 = vsel %vm4724, %v4698, 0.0
  %v4767 = vsel %vm4724, %v4699, 0.0
  %v4768 = vsel %vm4724, %v4700, 0.0
  %v4769 = vsel %vm4724, %v4701, 0.0
  %v4770 = vsel %vm4724, %v4702, 0.0
  %v4771 = vsel %vm4724, %v4703, 0.0
  %v4772 = vsel %vm4724, %v4704, 0.0
  %v4773 = vsel %vm4724, %v4705, 0.0
  %v4774 = vsel %vm4724, %v4706, 0.0
  %v4775 = vsel %vm4724, %v4707, 0.0
  %v4776 = vsel %vm4724, %v4708, 0.0
  %v4777 = vsel %vm4724, %v4709, 0.0
  %v4778 = vsel %vm4724, %v4710, 0.0
  %v4779 = vsel %vm4724, %v4711, 0.0
  %v4780 = vsel %vm4724, %v4712, 0.0
  %v4781 = vsel %vm4724, %v4713, 0.0
  %v4782 = vsel %vm4724, %v4714, 0.0
  %v4783 = vsel %vm4724, %v4715, 0.0
  %v4784 = vsel %vm4724, %v4716, 0.0
  %v4785 = vsel %vm4724, %v4717, 0.0
  %v4786 = vsel %vm4724, %v4718, 0.0
  %v4787 = vsel %vm4724, %v4719, 0.0
  %v4788 = vadd.f32 %v4725, %v4734
  %v4789 = vadd.f32 %v4788, %v4743
  %v4790 = vadd.f32 %v4789, %v4752
  %v4791 = vadd.f32 %v4790, %v4761
  %v4792 = vadd.f32 %v4791, %v4770
  %v4793 = vadd.f32 %v4792, %v4779
  %v4794 = vrot.slane %v4793, 4
  %v4795 = vadd.f32 %v4793, %v4794
  %v4796 = vrot.slane %v4795, 2
  %v4797 = vadd.f32 %v4795, %v4796
  %v4798 = vrot.slane %v4797, 1
  %v4799 = vadd.f32 %v4797, %v4798
  %v4800 = vadd.f32 %v4726, %v4735
  %v4801 = vadd.f32 %v4800, %v4744
  %v4802 = vadd.f32 %v4801, %v4753
  %v4803 = vadd.f32 %v4802, %v4762
  %v4804 = vadd.f32 %v4803, %v4771
  %v4805 = vadd.f32 %v4804, %v4780
  %v4806 = vrot.slane %v4805, 4
  %v4807 = vadd.f32 %v4805, %v4806
  %v4808 = vrot.slane %v4807, 2
  %v4809 = vadd.f32 %v4807, %v4808
  %v4810 = vrot.slane %v4809, 1
  %v4811 = vadd.f32 %v4809, %v4810
  %v4812 = vadd.f32 %v4727, %v4736
  %v4813 = vadd.f32 %v4812, %v4745
  %v4814 = vadd.f32 %v4813, %v4754
  %v4815 = vadd.f32 %v4814, %v4763
  %v4816 = vadd.f32 %v4815, %v4772
  %v4817 = vadd.f32 %v4816, %v4781
  %v4818 = vrot.slane %v4817, 4
  %v4819 = vadd.f32 %v4817, %v4818
  %v4820 = vrot.slane %v4819, 2
  %v4821 = vadd.f32 %v4819, %v4820
  %v4822 = vrot.slane %v4821, 1
  %v4823 = vadd.f32 %v4821, %v4822
  %v4824 = vadd.f32 %v4728, %v4737
  %v4825 = vadd.f32 %v4824, %v4746
  %v4826 = vadd.f32 %v4825, %v4755
  %v4827 = vadd.f32 %v4826, %v4764
  %v4828 = vadd.f32 %v4827, %v4773
  %v4829 = vadd.f32 %v4828, %v4782
  %v4830 = vrot.slane %v4829, 4
  %v4831 = vadd.f32 %v4829, %v4830
  %v4832 = vrot.slane %v4831, 2
  %v4833 = vadd.f32 %v4831, %v4832
  %v4834 = vrot.slane %v4833, 1
  %v4835 = vadd.f32 %v4833, %v4834
  %v4836 = vadd.f32 %v4729, %v4738
  %v4837 = vadd.f32 %v4836, %v4747
  %v4838 = vadd.f32 %v4837, %v4756
  %v4839 = vadd.f32 %v4838, %v4765
  %v4840 = vadd.f32 %v4839, %v4774
  %v4841 = vadd.f32 %v4840, %v4783
  %v4842 = vrot.slane %v4841, 4
  %v4843 = vadd.f32 %v4841, %v4842
  %v4844 = vrot.slane %v4843, 2
  %v4845 = vadd.f32 %v4843, %v4844
  %v4846 = vrot.slane %v4845, 1
  %v4847 = vadd.f32 %v4845, %v4846
  %v4848 = vadd.f32 %v4730, %v4739
  %v4849 = vadd.f32 %v4848, %v4748
  %v4850 = vadd.f32 %v4849, %v4757
  %v4851 = vadd.f32 %v4850, %v4766
  %v4852 = vadd.f32 %v4851, %v4775
  %v4853 = vadd.f32 %v4852, %v4784
  %v4854 = vrot.slane %v4853, 4
  %v4855 = vadd.f32 %v4853, %v4854
  %v4856 = vrot.slane %v4855, 2
  %v4857 = vadd.f32 %v4855, %v4856
  %v4858 = vrot.slane %v4857, 1
  %v4859 = vadd.f32 %v4857, %v4858
  %v4860 = vadd.f32 %v4731, %v4740
  %v4861 = vadd.f32 %v4860, %v4749
  %v4862 = vadd.f32 %v4861, %v4758
  %v4863 = vadd.f32 %v4862, %v4767
  %v4864 = vadd.f32 %v4863, %v4776
  %v4865 = vadd.f32 %v4864, %v4785
  %v4866 = vrot.slane %v4865, 4
  %v4867 = vadd.f32 %v4865, %v4866
  %v4868 = vrot.slane %v4867, 2
  %v4869 = vadd.f32 %v4867, %v4868
  %v4870 = vrot.slane %v4869, 1
  %v4871 = vadd.f32 %v4869, %v4870
  %v4872 = vadd.f32 %v4732, %v4741
  %v4873 = vadd.f32 %v4872, %v4750
  %v4874 = vadd.f32 %v4873, %v4759
  %v4875 = vadd.f32 %v4874, %v4768
  %v4876 = vadd.f32 %v4875, %v4777
  %v4877 = vadd.f32 %v4876, %v4786
  %v4878 = vrot.slane %v4877, 4
  %v4879 = vadd.f32 %v4877, %v4878
  %v4880 = vrot.slane %v4879, 2
  %v4881 = vadd.f32 %v4879, %v4880
  %v4882 = vrot.slane %v4881, 1
  %v4883 = vadd.f32 %v4881, %v4882
  %v4884 = vadd.f32 %v4733, %v4742
  %v4885 = vadd.f32 %v4884, %v4751
  %v4886 = vadd.f32 %v4885, %v4760
  %v4887 = vadd.f32 %v4886, %v4769
  %v4888 = vadd.f32 %v4887, %v4778
  %v4889 = vadd.f32 %v4888, %v4787
  %v4890 = vrot.slane %v4889, 4
  %v4891 = vadd.f32 %v4889, %v4890
  %v4892 = vrot.slane %v4891, 2
  %v4893 = vadd.f32 %v4891, %v4892
  %v4894 = vrot.slane %v4893, 1
  %v4895 = vadd.f32 %v4893, %v4894
  %v4896 = vrcp.pop 49.0
  %v4897 = vmul.f32 %v4799, %v4896
  %v4898 = vmul.f32 %v4811, %v4896
  %v4899 = vmul.f32 %v4823, %v4896
  %v4900 = vmul.f32 %v4835, %v4896
  %v4901 = vmul.f32 %v4847, %v4896
  %v4902 = vmul.f32 %v4859, %v4896
  %v4903 = vmul.f32 %v4871, %v4896
  %v4904 = vmul.f32 %v4883, %v4896
  %v4905 = vmul.f32 %v4895, %v4896
  %v4906 = vmul.f32 %v4725, %v4725
  %v4907 = vmul.f32 %v4726, %v4726
  %v4908 = vmul.f32 %v4727, %v4727
  %v4909 = vmul.f32 %v4728, %v4728
  %v4910 = vmul.f32 %v4729, %v4729
  %v4911 = vmul.f32 %v4730, %v4730
  %v4912 = vmul.f32 %v4731, %v4731
  %v4913 = vmul.f32 %v4732, %v4732
  %v4914 = vmul.f32 %v4733, %v4733
  %v4915 = vmul.f32 %v4734, %v4734
  %v4916 = vmul.f32 %v4735, %v4735
  %v4917 = vmul.f32 %v4736, %v4736
  %v4918 = vmul.f32 %v4737, %v4737
  %v4919 = vmul.f32 %v4738, %v4738
  %v4920 = vmul.f32 %v4739, %v4739
  %v4921 = vmul.f32 %v4740, %v4740
  %v4922 = vmul.f32 %v4741, %v4741
  %v4923 = vmul.f32 %v4742, %v4742
  %v4924 = vmul.f32 %v4743, %v4743
  %v4925 = vmul.f32 %v4744, %v4744
  %v4926 = vmul.f32 %v4745, %v4745
  %v4927 = vmul.f32 %v4746, %v4746
  %v4928 = vmul.f32 %v4747, %v4747
  %v4929 = vmul.f32 %v4748, %v4748
  %v4930 = vmul.f32 %v4749, %v4749
  %v4931 = vmul.f32 %v4750, %v4750
  %v4932 = vmul.f32 %v4751, %v4751
  %v4933 = vmul.f32 %v4752, %v4752
  %v4934 = vmul.f32 %v4753, %v4753
  %v4935 = vmul.f32 %v4754, %v4754
  %v4936 = vmul.f32 %v4755, %v4755
  %v4937 = vmul.f32 %v4756, %v4756
  %v4938 = vmul.f32 %v4757, %v4757
  %v4939 = vmul.f32 %v4758, %v4758
  %v4940 = vmul.f32 %v4759, %v4759
  %v4941 = vmul.f32 %v4760, %v4760
  %v4942 = vmul.f32 %v4761, %v4761
  %v4943 = vmul.f32 %v4762, %v4762
  %v4944 = vmul.f32 %v4763, %v4763
  %v4945 = vmul.f32 %v4764, %v4764
  %v4946 = vmul.f32 %v4765, %v4765
  %v4947 = vmul.f32 %v4766, %v4766
  %v4948 = vmul.f32 %v4767, %v4767
  %v4949 = vmul.f32 %v4768, %v4768
  %v4950 = vmul.f32 %v4769, %v4769
  %v4951 = vmul.f32 %v4770, %v4770
  %v4952 = vmul.f32 %v4771, %v4771
  %v4953 = vmul.f32 %v4772, %v4772
  %v4954 = vmul.f32 %v4773, %v4773
  %v4955 = vmul.f32 %v4774, %v4774
  %v4956 = vmul.f32 %v4775, %v4775
  %v4957 = vmul.f32 %v4776, %v4776
  %v4958 = vmul.f32 %v4777, %v4777
  %v4959 = vmul.f32 %v4778, %v4778
  %v4960 = vmul.f32 %v4779, %v4779
  %v4961 = vmul.f32 %v4780, %v4780
  %v4962 = vmul.f32 %v4781, %v4781
  %v4963 = vmul.f32 %v4782, %v4782
  %v4964 = vmul.f32 %v4783, %v4783
  %v4965 = vmul.f32 %v4784, %v4784
  %v4966 = vmul.f32 %v4785, %v4785
  %v4967 = vmul.f32 %v4786, %v4786
  %v4968 = vmul.f32 %v4787, %v4787
  %v4969 = vadd.f32 %v4906, %v4915
  %v4970 = vadd.f32 %v4969, %v4924
  %v4971 = vadd.f32 %v4970, %v4933
  %v4972 = vadd.f32 %v4971, %v4942
  %v4973 = vadd.f32 %v4972, %v4951
  %v4974 = vadd.f32 %v4973, %v4960
  %v4975 = vrot.slane %v4974, 4
  %v4976 = vadd.f32 %v4974, %v4975
  %v4977 = vrot.slane %v4976, 2
  %v4978 = vadd.f32 %v4976, %v4977
  %v4979 = vrot.slane %v4978, 1
  %v4980 = vadd.f32 %v4978, %v4979
  %v4981 = vadd.f32 %v4907, %v4916
  %v4982 = vadd.f32 %v4981, %v4925
  %v4983 = vadd.f32 %v4982, %v4934
  %v4984 = vadd.f32 %v4983, %v4943
  %v4985 = vadd.f32 %v4984, %v4952
  %v4986 = vadd.f32 %v4985, %v4961
  %v4987 = vrot.slane %v4986, 4
  %v4988 = vadd.f32 %v4986, %v4987
  %v4989 = vrot.slane %v4988, 2
  %v4990 = vadd.f32 %v4988, %v4989
  %v4991 = vrot.slane %v4990, 1
  %v4992 = vadd.f32 %v4990, %v4991
  %v4993 = vadd.f32 %v4908, %v4917
  %v4994 = vadd.f32 %v4993, %v4926
  %v4995 = vadd.f32 %v4994, %v4935
  %v4996 = vadd.f32 %v4995, %v4944
  %v4997 = vadd.f32 %v4996, %v4953
  %v4998 = vadd.f32 %v4997, %v4962
  %v4999 = vrot.slane %v4998, 4
  %v5000 = vadd.f32 %v4998, %v4999
  %v5001 = vrot.slane %v5000, 2
  %v5002 = vadd.f32 %v5000, %v5001
  %v5003 = vrot.slane %v5002, 1
  %v5004 = vadd.f32 %v5002, %v5003
  %v5005 = vadd.f32 %v4909, %v4918
  %v5006 = vadd.f32 %v5005, %v4927
  %v5007 = vadd.f32 %v5006, %v4936
  %v5008 = vadd.f32 %v5007, %v4945
  %v5009 = vadd.f32 %v5008, %v4954
  %v5010 = vadd.f32 %v5009, %v4963
  %v5011 = vrot.slane %v5010, 4
  %v5012 = vadd.f32 %v5010, %v5011
  %v5013 = vrot.slane %v5012, 2
  %v5014 = vadd.f32 %v5012, %v5013
  %v5015 = vrot.slane %v5014, 1
  %v5016 = vadd.f32 %v5014, %v5015
  %v5017 = vadd.f32 %v4910, %v4919
  %v5018 = vadd.f32 %v5017, %v4928
  %v5019 = vadd.f32 %v5018, %v4937
  %v5020 = vadd.f32 %v5019, %v4946
  %v5021 = vadd.f32 %v5020, %v4955
  %v5022 = vadd.f32 %v5021, %v4964
  %v5023 = vrot.slane %v5022, 4
  %v5024 = vadd.f32 %v5022, %v5023
  %v5025 = vrot.slane %v5024, 2
  %v5026 = vadd.f32 %v5024, %v5025
  %v5027 = vrot.slane %v5026, 1
  %v5028 = vadd.f32 %v5026, %v5027
  %v5029 = vadd.f32 %v4911, %v4920
  %v5030 = vadd.f32 %v5029, %v4929
  %v5031 = vadd.f32 %v5030, %v4938
  %v5032 = vadd.f32 %v5031, %v4947
  %v5033 = vadd.f32 %v5032, %v4956
  %v5034 = vadd.f32 %v5033, %v4965
  %v5035 = vrot.slane %v5034, 4
  %v5036 = vadd.f32 %v5034, %v5035
  %v5037 = vrot.slane %v5036, 2
  %v5038 = vadd.f32 %v5036, %v5037
  %v5039 = vrot.slane %v5038, 1
  %v5040 = vadd.f32 %v5038, %v5039
  %v5041 = vadd.f32 %v4912, %v4921
  %v5042 = vadd.f32 %v5041, %v4930
  %v5043 = vadd.f32 %v5042, %v4939
  %v5044 = vadd.f32 %v5043, %v4948
  %v5045 = vadd.f32 %v5044, %v4957
  %v5046 = vadd.f32 %v5045, %v4966
  %v5047 = vrot.slane %v5046, 4
  %v5048 = vadd.f32 %v5046, %v5047
  %v5049 = vrot.slane %v5048, 2
  %v5050 = vadd.f32 %v5048, %v5049
  %v5051 = vrot.slane %v5050, 1
  %v5052 = vadd.f32 %v5050, %v5051
  %v5053 = vadd.f32 %v4913, %v4922
  %v5054 = vadd.f32 %v5053, %v4931
  %v5055 = vadd.f32 %v5054, %v4940
  %v5056 = vadd.f32 %v5055, %v4949
  %v5057 = vadd.f32 %v5056, %v4958
  %v5058 = vadd.f32 %v5057, %v4967
  %v5059 = vrot.slane %v5058, 4
  %v5060 = vadd.f32 %v5058, %v5059
  %v5061 = vrot.slane %v5060, 2
  %v5062 = vadd.f32 %v5060, %v5061
  %v5063 = vrot.slane %v5062, 1
  %v5064 = vadd.f32 %v5062, %v5063
  %v5065 = vadd.f32 %v4914, %v4923
  %v5066 = vadd.f32 %v5065, %v4932
  %v5067 = vadd.f32 %v5066, %v4941
  %v5068 = vadd.f32 %v5067, %v4950
  %v5069 = vadd.f32 %v5068, %v4959
  %v5070 = vadd.f32 %v5069, %v4968
  %v5071 = vrot.slane %v5070, 4
  %v5072 = vadd.f32 %v5070, %v5071
  %v5073 = vrot.slane %v5072, 2
  %v5074 = vadd.f32 %v5072, %v5073
  %v5075 = vrot.slane %v5074, 1
  %v5076 = vadd.f32 %v5074, %v5075
  %v5077 = vmul.f32 %v4980, %v4896
  %v5078 = vmul.f32 %v4992, %v4896
  %v5079 = vmul.f32 %v5004, %v4896
  %v5080 = vmul.f32 %v5016, %v4896
  %v5081 = vmul.f32 %v5028, %v4896
  %v5082 = vmul.f32 %v5040, %v4896
  %v5083 = vmul.f32 %v5052, %v4896
  %v5084 = vmul.f32 %v5064, %v4896
  %v5085 = vmul.f32 %v5076, %v4896
  %v5086 = vmul.f32 %v4897, %v4897
  %v5087 = vmul.f32 %v4898, %v4898
  %v5088 = vmul.f32 %v4899, %v4899
  %v5089 = vmul.f32 %v4900, %v4900
  %v5090 = vmul.f32 %v4901, %v4901
  %v5091 = vmul.f32 %v4902, %v4902
  %v5092 = vmul.f32 %v4903, %v4903
  %v5093 = vmul.f32 %v4904, %v4904
  %v5094 = vmul.f32 %v4905, %v4905
  %v5095 = vsub.f32 %v5077, %v5086
  %v5096 = vsub.f32 %v5078, %v5087
  %v5097 = vsub.f32 %v5079, %v5088
  %v5098 = vsub.f32 %v5080, %v5089
  %v5099 = vsub.f32 %v5081, %v5090
  %v5100 = vsub.f32 %v5082, %v5091
  %v5101 = vsub.f32 %v5083, %v5092
  %v5102 = vsub.f32 %v5084, %v5093
  %v5103 = vsub.f32 %v5085, %v5094
  %v5104 = vmax.f32 %v5095, 0.0
  %v5105 = vmax.f32 %v5096, 0.0
  %v5106 = vmax.f32 %v5097, 0.0
  %v5107 = vmax.f32 %v5098, 0.0
  %v5108 = vmax.f32 %v5099, 0.0
  %v5109 = vmax.f32 %v5100, 0.0
  %v5110 = vmax.f32 %v5101, 0.0
  %v5111 = vmax.f32 %v5102, 0.0
  %v5112 = vmax.f32 %v5103, 0.0
  %v5113 = vld [vmem:[%s2] sm:$0xff]
  %v5114 = vld [vmem:[%s2 + $0x8] sm:$0x1]
  %v5115 = vld [vmem:[%s3] sm:$0xff]
  %v5116 = vld [vmem:[%s3 + $0x8] sm:$0x1]
  %v5117 = vadd.f32 %v5104, 0.001
  %v5118 = vadd.f32 %v5105, 0.001
  %v5119 = vadd.f32 %v5106, 0.001
  %v5120 = vadd.f32 %v5107, 0.001
  %v5121 = vadd.f32 %v5108, 0.001
  %v5122 = vadd.f32 %v5109, 0.001
  %v5123 = vadd.f32 %v5110, 0.001
  %v5124 = vadd.f32 %v5111, 0.001
  %v5125 = vadd.f32 %v5112, 0.001
  %v5126 = vrsqrt.pop %v5117
  %v5127 = vrsqrt.pop %v5118
  %v5128 = vrsqrt.pop %v5119
  %v5129 = vrsqrt.pop %v5120
  %v5130 = vrsqrt.pop %v5121
  %v5131 = vrsqrt.pop %v5122
  %v5132 = vrsqrt.pop %v5123
  %v5133 = vrsqrt.pop %v5124
  %v5134 = vrsqrt.pop %v5125
  %v5144 = vcombine.low %v5126, %v5127
  %v5145 = vcombine.low %v5128, %v5129
  %v5146 = vcombine.low %v5130, %v5131
  %v5147 = vcombine.low %v5132, %v5133
  %v5149 = vunpack.c.l.s4 1966171168
  %v5150 = vunpack.c.0.s8 %v5149
  %v5151 = vlaneseq
  %v5152 = vshrl.u32 %v5151, 7
  %v5153 = vsub.s32 %v5150, %v5152
  %v5154 = vrot.slane %v5144, %v5153
  %v5156 = vunpack.c.l.s4 1966171168
  %v5157 = vunpack.c.0.s8 %v5156
  %v5158 = vlaneseq
  %v5159 = vshrl.u32 %v5158, 7
  %v5160 = vsub.s32 %v5157, %v5159
  %v5161 = vrot.slane %v5145, %v5160
  %v5163 = vunpack.c.l.s4 1966171168
  %v5164 = vunpack.c.0.s8 %v5163
  %v5165 = vlaneseq
  %v5166 = vshrl.u32 %v5165, 7
  %v5167 = vsub.s32 %v5164, %v5166
  %v5168 = vrot.slane %v5146, %v5167
  %v5170 = vunpack.c.l.s4 1966171168
  %v5171 = vunpack.c.0.s8 %v5170
  %v5172 = vlaneseq
  %v5173 = vshrl.u32 %v5172, 7
  %v5174 = vsub.s32 %v5171, %v5173
  %v5175 = vrot.slane %v5147, %v5174
  %v5176 = vcombine.low %v5154, %v5161
  %v5177 = vcombine.low %v5168, %v5175
  %v5179 = vunpack.c.l.s4 1966171168
  %v5180 = vunpack.c.0.s8 %v5179
  %v5181 = vlaneseq
  %v5182 = vshrl.u32 %v5181, 7
  %v5183 = vsub.s32 %v5180, %v5182
  %v5184 = vrot.slane %v5176, %v5183
  %v5186 = vunpack.c.l.s4 1966171168
  %v5187 = vunpack.c.0.s8 %v5186
  %v5188 = vlaneseq
  %v5189 = vshrl.u32 %v5188, 7
  %v5190 = vsub.s32 %v5187, %v5189
  %v5191 = vrot.slane %v5177, %v5190
  %v5192 = vcombine.low %v5184, %v5191
  %v5194 = vunpack.c.l.s4 1966171168
  %v5195 = vunpack.c.0.s8 %v5194
  %v5196 = vlaneseq
  %v5197 = vshrl.u32 %v5196, 7
  %v5198 = vsub.s32 %v5195, %v5197
  %v5199 = vrot.slane %v5134, %v5198
  %v5201 = vunpack.c.l.s4 1966171168
  %v5202 = vunpack.c.0.s8 %v5201
  %v5203 = vlaneseq
  %v5204 = vshrl.u32 %v5203, 7
  %v5205 = vsub.s32 %v5202, %v5204
  %v5206 = vrot.slane %v5199, %v5205
  %v5209 = vmul.f32 %v5113, %v5192
  %v5210 = vmul.f32 %v5114, %v5206
  %v5213 = vlaneseq
  %v5214 = vshrl.u32 %v5213, 7
  %v5215 = vsub.s32 0, %v5214
  %v5216 = vrot.slane %v5209, %v5215
  %v5217 = vlaneseq
  %v5218 = vshrl.u32 %v5217, 7
  %v5219 = vsub.s32 1, %v5218
  %v5220 = vrot.slane %v5209, %v5219
  %v5221 = vlaneseq
  %v5222 = vshrl.u32 %v5221, 7
  %v5223 = vsub.s32 2, %v5222
  %v5224 = vrot.slane %v5209, %v5223
  %v5225 = vlaneseq
  %v5226 = vshrl.u32 %v5225, 7
  %v5227 = vsub.s32 3, %v5226
  %v5228 = vrot.slane %v5209, %v5227
  %v5229 = vlaneseq
  %v5230 = vshrl.u32 %v5229, 7
  %v5231 = vsub.s32 4, %v5230
  %v5232 = vrot.slane %v5209, %v5231
  %v5233 = vlaneseq
  %v5234 = vshrl.u32 %v5233, 7
  %v5235 = vsub.s32 5, %v5234
  %v5236 = vrot.slane %v5209, %v5235
  %v5237 = vlaneseq
  %v5238 = vshrl.u32 %v5237, 7
  %v5239 = vsub.s32 6, %v5238
  %v5240 = vrot.slane %v5209, %v5239
  %v5241 = vlaneseq
  %v5242 = vshrl.u32 %v5241, 7
  %v5243 = vsub.s32 7, %v5242
  %v5244 = vrot.slane %v5209, %v5243
  %v5245 = vlaneseq
  %v5246 = vshrl.u32 %v5245, 7
  %v5247 = vsub.s32 0, %v5246
  %v5248 = vrot.slane %v5210, %v5247
  %v5258 = vmul.f32 %v4897, %v5216
  %v5259 = vmul.f32 %v4898, %v5220
  %v5260 = vmul.f32 %v4899, %v5224
  %v5261 = vmul.f32 %v4900, %v5228
  %v5262 = vmul.f32 %v4901, %v5232
  %v5263 = vmul.f32 %v4902, %v5236
  %v5264 = vmul.f32 %v4903, %v5240
  %v5265 = vmul.f32 %v4904, %v5244
  %v5266 = vmul.f32 %v4905, %v5248
  %v5276 = vcombine.low %v5258, %v5259
  %v5277 = vcombine.low %v5260, %v5261
  %v5278 = vcombine.low %v5262, %v5263
  %v5279 = vcombine.low %v5264, %v5265
  %v5281 = vunpack.c.l.s4 1966171168
  %v5282 = vunpack.c.0.s8 %v5281
  %v5283 = vlaneseq
  %v5284 = vshrl.u32 %v5283, 7
  %v5285 = vsub.s32 %v5282, %v5284
  %v5286 = vrot.slane %v5276, %v5285
  %v5288 = vunpack.c.l.s4 1966171168
  %v5289 = vunpack.c.0.s8 %v5288
  %v5290 = vlaneseq
  %v5291 = vshrl.u32 %v5290, 7
  %v5292 = vsub.s32 %v5289, %v5291
  %v5293 = vrot.slane %v5277, %v5292
  %v5295 = vunpack.c.l.s4 1966171168
  %v5296 = vunpack.c.0.s8 %v5295
  %v5297 = vlaneseq
  %v5298 = vshrl.u32 %v5297, 7
  %v5299 = vsub.s32 %v5296, %v5298
  %v5300 = vrot.slane %v5278, %v5299
  %v5302 = vunpack.c.l.s4 1966171168
  %v5303 = vunpack.c.0.s8 %v5302
  %v5304 = vlaneseq
  %v5305 = vshrl.u32 %v5304, 7
  %v5306 = vsub.s32 %v5303, %v5305
  %v5307 = vrot.slane %v5279, %v5306
  %v5308 = vcombine.low %v5286, %v5293
  %v5309 = vcombine.low %v5300, %v5307
  %v5311 = vunpack.c.l.s4 1966171168
  %v5312 = vunpack.c.0.s8 %v5311
  %v5313 = vlaneseq
  %v5314 = vshrl.u32 %v5313, 7
  %v5315 = vsub.s32 %v5312, %v5314
  %v5316 = vrot.slane %v5308, %v5315
  %v5318 = vunpack.c.l.s4 1966171168
  %v5319 = vunpack.c.0.s8 %v5318
  %v5320 = vlaneseq
  %v5321 = vshrl.u32 %v5320, 7
  %v5322 = vsub.s32 %v5319, %v5321
  %v5323 = vrot.slane %v5309, %v5322
  %v5324 = vcombine.low %v5316, %v5323
  %v5326 = vunpack.c.l.s4 1966171168
  %v5327 = vunpack.c.0.s8 %v5326
  %v5328 = vlaneseq
  %v5329 = vshrl.u32 %v5328, 7
  %v5330 = vsub.s32 %v5327, %v5329
  %v5331 = vrot.slane %v5266, %v5330
  %v5333 = vunpack.c.l.s4 1966171168
  %v5334 = vunpack.c.0.s8 %v5333
  %v5335 = vlaneseq
  %v5336 = vshrl.u32 %v5335, 7
  %v5337 = vsub.s32 %v5334, %v5336
  %v5338 = vrot.slane %v5331, %v5337
  %v5341 = vsub.f32 %v5115, %v5324
  %v5342 = vsub.f32 %v5116, %v5338
  %v5343 = vmul.f32 %v4657, %v5216
  %v5344 = vmul.f32 %v4658, %v5220
  %v5345 = vmul.f32 %v4659, %v5224
  %v5346 = vmul.f32 %v4660, %v5228
  %v5347 = vmul.f32 %v4661, %v5232
  %v5348 = vmul.f32 %v4662, %v5236
  %v5349 = vmul.f32 %v4663, %v5240
  %v5350 = vmul.f32 %v4664, %v5244
  %v5351 = vmul.f32 %v4665, %v5248
  %v5352 = vmul.f32 %v4666, %v5216
  %v5353 = vmul.f32 %v4667, %v5220
  %v5354 = vmul.f32 %v4668, %v5224
  %v5355 = vmul.f32 %v4669, %v5228
  %v5356 = vmul.f32 %v4670, %v5232
  %v5357 = vmul.f32 %v4671, %v5236
  %v5358 = vmul.f32 %v4672, %v5240
  %v5359 = vmul.f32 %v4673, %v5244
  %v5360 = vmul.f32 %v4674, %v5248
  %v5361 = vmul.f32 %v4675, %v5216
  %v5362 = vmul.f32 %v4676, %v5220
  %v5363 = vmul.f32 %v4677, %v5224
  %v5364 = vmul.f32 %v4678, %v5228
  %v5365 = vmul.f32 %v4679, %v5232
  %v5366 = vmul.f32 %v4680, %v5236
  %v5367 = vmul.f32 %v4681, %v5240
  %v5368 = vmul.f32 %v4682, %v5244
  %v5369 = vmul.f32 %v4683, %v5248
  %v5370 = vmul.f32 %v4684, %v5216
  %v5371 = vmul.f32 %v4685, %v5220
  %v5372 = vmul.f32 %v4686, %v5224
  %v5373 = vmul.f32 %v4687, %v5228
  %v5374 = vmul.f32 %v4688, %v5232
  %v5375 = vmul.f32 %v4689, %v5236
  %v5376 = vmul.f32 %v4690, %v5240
  %v5377 = vmul.f32 %v4691, %v5244
  %v5378 = vmul.f32 %v4692, %v5248
  %v5379 = vmul.f32 %v4693, %v5216
  %v5380 = vmul.f32 %v4694, %v5220
  %v5381 = vmul.f32 %v4695, %v5224
  %v5382 = vmul.f32 %v4696, %v5228
  %v5383 = vmul.f32 %v4697, %v5232
  %v5384 = vmul.f32 %v4698, %v5236
  %v5385 = vmul.f32 %v4699, %v5240
  %v5386 = vmul.f32 %v4700, %v5244
  %v5387 = vmul.f32 %v4701, %v5248
  %v5388 = vmul.f32 %v4702, %v5216
  %v5389 = vmul.f32 %v4703, %v5220
  %v5390 = vmul.f32 %v4704, %v5224
  %v5391 = vmul.f32 %v4705, %v5228
  %v5392 = vmul.f32 %v4706, %v5232
  %v5393 = vmul.f32 %v4707, %v5236
  %v5394 = vmul.f32 %v4708, %v5240
  %v5395 = vmul.f32 %v4709, %v5244
  %v5396 = vmul.f32 %v4710, %v5248
  %v5397 = vmul.f32 %v4711, %v5216
  %v5398 = vmul.f32 %v4712, %v5220
  %v5399 = vmul.f32 %v4713, %v5224
  %v5400 = vmul.f32 %v4714, %v5228
  %v5401 = vmul.f32 %v4715, %v5232
  %v5402 = vmul.f32 %v4716, %v5236
  %v5403 = vmul.f32 %v4717, %v5240
  %v5404 = vmul.f32 %v4718, %v5244
  %v5405 = vmul.f32 %v4719, %v5248
  %v5408 = vlaneseq
  %v5409 = vshrl.u32 %v5408, 7
  %v5410 = vsub.s32 0, %v5409
  %v5411 = vrot.slane %v5341, %v5410
  %v5412 = vlaneseq
  %v5413 = vshrl.u32 %v5412, 7
  %v5414 = vsub.s32 1, %v5413
  %v5415 = vrot.slane %v5341, %v5414
  %v5416 = vlaneseq
  %v5417 = vshrl.u32 %v5416, 7
  %v5418 = vsub.s32 2, %v5417
  %v5419 = vrot.slane %v5341, %v5418
  %v5420 = vlaneseq
  %v5421 = vshrl.u32 %v5420, 7
  %v5422 = vsub.s32 3, %v5421
  %v5423 = vrot.slane %v5341, %v5422
  %v5424 = vlaneseq
  %v5425 = vshrl.u32 %v5424, 7
  %v5426 = vsub.s32 4, %v5425
  %v5427 = vrot.slane %v5341, %v5426
  %v5428 = vlaneseq
  %v5429 = vshrl.u32 %v5428, 7
  %v5430 = vsub.s32 5, %v5429
  %v5431 = vrot.slane %v5341, %v5430
  %v5432 = vlaneseq
  %v5433 = vshrl.u32 %v5432, 7
  %v5434 = vsub.s32 6, %v5433
  %v5435 = vrot.slane %v5341, %v5434
  %v5436 = vlaneseq
  %v5437 = vshrl.u32 %v5436, 7
  %v5438 = vsub.s32 7, %v5437
  %v5439 = vrot.slane %v5341, %v5438
  %v5440 = vlaneseq
  %v5441 = vshrl.u32 %v5440, 7
  %v5442 = vsub.s32 0, %v5441
  %v5443 = vrot.slane %v5342, %v5442
  %v5453 = vadd.f32 %v5343, %v5411
  %v5454 = vadd.f32 %v5344, %v5415
  %v5455 = vadd.f32 %v5345, %v5419
  %v5456 = vadd.f32 %v5346, %v5423
  %v5457 = vadd.f32 %v5347, %v5427
  %v5458 = vadd.f32 %v5348, %v5431
  %v5459 = vadd.f32 %v5349, %v5435
  %v5460 = vadd.f32 %v5350, %v5439
  %v5461 = vadd.f32 %v5351, %v5443
  %v5462 = vadd.f32 %v5352, %v5411
  %v5463 = vadd.f32 %v5353, %v5415
  %v5464 = vadd.f32 %v5354, %v5419
  %v5465 = vadd.f32 %v5355, %v5423
  %v5466 = vadd.f32 %v5356, %v5427
  %v5467 = vadd.f32 %v5357, %v5431
  %v5468 = vadd.f32 %v5358, %v5435
  %v5469 = vadd.f32 %v5359, %v5439
  %v5470 = vadd.f32 %v5360, %v5443
  %v5471 = vadd.f32 %v5361, %v5411
  %v5472 = vadd.f32 %v5362, %v5415
  %v5473 = vadd.f32 %v5363, %v5419
  %v5474 = vadd.f32 %v5364, %v5423
  %v5475 = vadd.f32 %v5365, %v5427
  %v5476 = vadd.f32 %v5366, %v5431
  %v5477 = vadd.f32 %v5367, %v5435
  %v5478 = vadd.f32 %v5368, %v5439
  %v5479 = vadd.f32 %v5369, %v5443
  %v5480 = vadd.f32 %v5370, %v5411
  %v5481 = vadd.f32 %v5371, %v5415
  %v5482 = vadd.f32 %v5372, %v5419
  %v5483 = vadd.f32 %v5373, %v5423
  %v5484 = vadd.f32 %v5374, %v5427
  %v5485 = vadd.f32 %v5375, %v5431
  %v5486 = vadd.f32 %v5376, %v5435
  %v5487 = vadd.f32 %v5377, %v5439
  %v5488 = vadd.f32 %v5378, %v5443
  %v5489 = vadd.f32 %v5379, %v5411
  %v5490 = vadd.f32 %v5380, %v5415
  %v5491 = vadd.f32 %v5381, %v5419
  %v5492 = vadd.f32 %v5382, %v5423
  %v5493 = vadd.f32 %v5383, %v5427
  %v5494 = vadd.f32 %v5384, %v5431
  %v5495 = vadd.f32 %v5385, %v5435
  %v5496 = vadd.f32 %v5386, %v5439
  %v5497 = vadd.f32 %v5387, %v5443
  %v5498 = vadd.f32 %v5388, %v5411
  %v5499 = vadd.f32 %v5389, %v5415
  %v5500 = vadd.f32 %v5390, %v5419
  %v5501 = vadd.f32 %v5391, %v5423
  %v5502 = vadd.f32 %v5392, %v5427
  %v5503 = vadd.f32 %v5393, %v5431
  %v5504 = vadd.f32 %v5394, %v5435
  %v5505 = vadd.f32 %v5395, %v5439
  %v5506 = vadd.f32 %v5396, %v5443
  %v5507 = vadd.f32 %v5397, %v5411
  %v5508 = vadd.f32 %v5398, %v5415
  %v5509 = vadd.f32 %v5399, %v5419
  %v5510 = vadd.f32 %v5400, %v5423
  %v5511 = vadd.f32 %v5401, %v5427
  %v5512 = vadd.f32 %v5402, %v5431
  %v5513 = vadd.f32 %v5403, %v5435
  %v5514 = vadd.f32 %v5404, %v5439
  %v5515 = vadd.f32 %v5405, %v5443
  %5516 = vst [vmem:[%s4] sm:$0xff] %v5453
  %5517 = vst [vmem:[%s4 + $0x8] sm:$0xff] %v5454
  %5518 = vst [vmem:[%s4 + $0x10] sm:$0xff] %v5455
  %5519 = vst [vmem:[%s4 + $0x18] sm:$0xff] %v5456
  %5520 = vst [vmem:[%s4 + $0x20] sm:$0xff] %v5457
  %5521 = vst [vmem:[%s4 + $0x28] sm:$0xff] %v5458
  %5522 = vst [vmem:[%s4 + $0x30] sm:$0xff] %v5459
  %5523 = vst [vmem:[%s4 + $0x38] sm:$0xff] %v5460
  %5524 = vst [vmem:[%s4 + $0x40] sm:$0xff] %v5461
  %5525 = vst [vmem:[%s4 + $0x48] sm:$0xff] %v5462
  %5526 = vst [vmem:[%s4 + $0x50] sm:$0xff] %v5463
  %5527 = vst [vmem:[%s4 + $0x58] sm:$0xff] %v5464
  %5528 = vst [vmem:[%s4 + $0x60] sm:$0xff] %v5465
  %5529 = vst [vmem:[%s4 + $0x68] sm:$0xff] %v5466
  %5530 = vst [vmem:[%s4 + $0x70] sm:$0xff] %v5467
  %5531 = vst [vmem:[%s4 + $0x78] sm:$0xff] %v5468
  %5532 = vst [vmem:[%s4 + $0x80] sm:$0xff] %v5469
  %5533 = vst [vmem:[%s4 + $0x88] sm:$0xff] %v5470
  %5534 = vst [vmem:[%s4 + $0x90] sm:$0xff] %v5471
  %5535 = vst [vmem:[%s4 + $0x98] sm:$0xff] %v5472
  %5536 = vst [vmem:[%s4 + $0xa0] sm:$0xff] %v5473
  %5537 = vst [vmem:[%s4 + $0xa8] sm:$0xff] %v5474
  %5538 = vst [vmem:[%s4 + $0xb0] sm:$0xff] %v5475
  %5539 = vst [vmem:[%s4 + $0xb8] sm:$0xff] %v5476
  %5540 = vst [vmem:[%s4 + $0xc0] sm:$0xff] %v5477
  %5541 = vst [vmem:[%s4 + $0xc8] sm:$0xff] %v5478
  %5542 = vst [vmem:[%s4 + $0xd0] sm:$0xff] %v5479
  %5543 = vst [vmem:[%s4 + $0xd8] sm:$0xff] %v5480
  %5544 = vst [vmem:[%s4 + $0xe0] sm:$0xff] %v5481
  %5545 = vst [vmem:[%s4 + $0xe8] sm:$0xff] %v5482
  %5546 = vst [vmem:[%s4 + $0xf0] sm:$0xff] %v5483
  %5547 = vst [vmem:[%s4 + $0xf8] sm:$0xff] %v5484
  %5548 = vst [vmem:[%s4 + $0x100] sm:$0xff] %v5485
  %5549 = vst [vmem:[%s4 + $0x108] sm:$0xff] %v5486
  %5550 = vst [vmem:[%s4 + $0x110] sm:$0xff] %v5487
  %5551 = vst [vmem:[%s4 + $0x118] sm:$0xff] %v5488
  %5552 = vst [vmem:[%s4 + $0x120] sm:$0xff] %v5489
  %5553 = vst [vmem:[%s4 + $0x128] sm:$0xff] %v5490
  %5554 = vst [vmem:[%s4 + $0x130] sm:$0xff] %v5491
  %5555 = vst [vmem:[%s4 + $0x138] sm:$0xff] %v5492
  %5556 = vst [vmem:[%s4 + $0x140] sm:$0xff] %v5493
  %5557 = vst [vmem:[%s4 + $0x148] sm:$0xff] %v5494
  %5558 = vst [vmem:[%s4 + $0x150] sm:$0xff] %v5495
  %5559 = vst [vmem:[%s4 + $0x158] sm:$0xff] %v5496
  %5560 = vst [vmem:[%s4 + $0x160] sm:$0xff] %v5497
  %5561 = vst [vmem:[%s4 + $0x168] sm:$0xff] %v5498
  %5562 = vst [vmem:[%s4 + $0x170] sm:$0xff] %v5499
  %5563 = vst [vmem:[%s4 + $0x178] sm:$0xff] %v5500
  %5564 = vst [vmem:[%s4 + $0x180] sm:$0xff] %v5501
  %5565 = vst [vmem:[%s4 + $0x188] sm:$0xff] %v5502
  %5566 = vst [vmem:[%s4 + $0x190] sm:$0xff] %v5503
  %5567 = vst [vmem:[%s4 + $0x198] sm:$0xff] %v5504
  %5568 = vst [vmem:[%s4 + $0x1a0] sm:$0xff] %v5505
  %5569 = vst [vmem:[%s4 + $0x1a8] sm:$0xff] %v5506
  %5570 = vst [vmem:[%s4 + $0x1b0] sm:$0xff] %v5507
  %5571 = vst [vmem:[%s4 + $0x1b8] sm:$0xff] %v5508
  %5572 = vst [vmem:[%s4 + $0x1c0] sm:$0xff] %v5509
  %5573 = vst [vmem:[%s4 + $0x1c8] sm:$0xff] %v5510
  %5574 = vst [vmem:[%s4 + $0x1d0] sm:$0xff] %v5511
  %5575 = vst [vmem:[%s4 + $0x1d8] sm:$0xff] %v5512
  %5576 = vst [vmem:[%s4 + $0x1e0] sm:$0xff] %v5513
  %5577 = vst [vmem:[%s4 + $0x1e8] sm:$0xff] %v5514
  %5578 = vst [vmem:[%s4 + $0x1f0] sm:$0xff] %v5515
  // Predicated region
  $region18: #{dwconv_bn.1} parent=0 // pred_check
    _
  $region19: #{dwconv_bn.1} parent=0 // pred_check_branch
    %5580 = sbr.rel (0) target = $region21
  $region20: #{dwconv_bn.1} parent=0 // pred_region
    _
  $region21: #{dwconv_bn.1} parent=0 // pred_fallthru
    _
  // Predicated region
  $region22: #{dwconv_bn.1} parent=0 // pred_check
    _
  $region23: #{dwconv_bn.1} parent=0 // pred_check_branch
    %5582 = sbr.rel (0) target = $region25
  $region24: #{dwconv_bn.1} parent=0 // pred_region
    _
  $region25: #{dwconv_bn.1} parent=0 // pred_fallthru
    _

</llo_original>
